<compile_context>
chip_gen: v7x
topology: tpu7x:2x2x1
jax: 0.10.0
libtpu: 0.0.40
codegen_flags: <defaults>
</compile_context>

<pallas_src>
import numpy as np

import jax
import jax.numpy as jnp
from jax.experimental import pallas as pl
from jax.experimental.pallas import tpu as pltpu


# ----------------------------------------------------------------------------
# Static 0/1 selection matrices (numpy, built at trace time)
# ----------------------------------------------------------------------------
def _conv_out(n, k, s, p):
    return (n + 2 * p - k) // s + 1


def _convt_out(n, k, s, p):
    return (n - 1) * s - 2 * p + k


def _conv_rowsel(oh, h, s, p, k):
    # A[i, o, r] = 1  iff  r == o*s - p + i   (out-of-range -> implicit 0-pad)
    a = np.zeros((k, oh, h), np.float32)
    for i in range(k):
        for o in range(oh):
            r = o * s - p + i
            if 0 <= r < h:
                a[i, o, r] = 1.0
    return a


def _conv_colsel(ow, w, s, p, k):
    # B[j, c, o] = 1  iff  c == o*s - p + j
    b = np.zeros((k, w, ow), np.float32)
    for j in range(k):
        for o in range(ow):
            c = o * s - p + j
            if 0 <= c < w:
                b[j, c, o] = 1.0
    return b


def _convt_rowsel(oh, h, s, p, k):
    # transposed conv scatter map:  o == r*s - p + i
    a = np.zeros((k, oh, h), np.float32)
    for i in range(k):
        for r in range(h):
            o = r * s - p + i
            if 0 <= o < oh:
                a[i, o, r] = 1.0
    return a


def _convt_colsel(ow, w, s, p, k):
    b = np.zeros((k, w, ow), np.float32)
    for j in range(k):
        for c in range(w):
            o = c * s - p + j
            if 0 <= o < ow:
                b[j, c, o] = 1.0
    return b


def _pool_rowsel(oh, h, s, k):
    a = np.zeros((k, oh, h), np.float32)
    for d in range(k):
        for o in range(oh):
            a[d, o, o * s + d] = 1.0
    return a


def _pool_colsel(c, w, ow, s, k):
    e = np.zeros((k, c * w, c * ow), np.float32)
    for d in range(k):
        for ch in range(c):
            for o in range(ow):
                e[d, ch * w + o * s + d, ch * ow + o] = 1.0
    return e


# ----------------------------------------------------------------------------
# Fold layer weights + column selection into per-tap matrices (tiny, host side)
# ----------------------------------------------------------------------------
def _conv_taps(w, colsel):
    # w: [Cout, Cin, KH, KW] (nn.Conv2d), colsel: [KW, Win, Wout]
    kh = w.shape[2]
    cin, cout = w.shape[1], w.shape[0]
    win, wout = colsel.shape[1], colsel.shape[2]
    m = jnp.einsum("ocij,jwv->icwov", w, jnp.asarray(colsel))
    return m.reshape(kh, cin * win, cout * wout)


def _convt_taps(w, colsel):
    # w: [Cin, Cout, KH, KW] (nn.ConvTranspose2d), colsel: [KW, Win, Wout]
    kh = w.shape[2]
    cin, cout = w.shape[0], w.shape[1]
    win, wout = colsel.shape[1], colsel.shape[2]
    m = jnp.einsum("coij,jwv->icwov", w, jnp.asarray(colsel))
    return m.reshape(kh, cin * win, cout * wout)


def _bias_row(b, wout):
    # bias per channel, repeated along the output width: row index c*wout + ow
    return jnp.repeat(b, wout).reshape(1, -1)


# ----------------------------------------------------------------------------
# The fused Pallas kernel (one grid step == one image)
# ----------------------------------------------------------------------------
def _autoencoder_kernel(x_ref,
                        e1a_ref, e1m_ref, e1b_ref, p1s_ref, p1e_ref,
                        e2a_ref, e2m_ref, e2b_ref, p2s_ref, p2e_ref,
                        d1a_ref, d1m_ref, d1b_ref,
                        d2a_ref, d2m_ref, d2b_ref,
                        d3a_ref, d3m_ref, d3b_ref,
                        enc_ref, dec_ref):
    f32 = jnp.float32

    def layer(h, a_ref, m_ref, b_ref, act):
        # h: [Hin, Cin*Win] -> [Hout, Cout*Wout]
        acc = None
        for i in range(a_ref.shape[0]):            # unrolled over kernel rows
            t = jnp.dot(a_ref[i], h, preferred_element_type=f32)
            t = jnp.dot(t, m_ref[i], preferred_element_type=f32)
            acc = t if acc is None else acc + t
        acc = acc + b_ref[...]
        if act == "relu":
            return jnp.maximum(acc, 0.0)
        return jnp.tanh(acc)

    def maxpool(h, s_ref, e_ref):
        out = None
        for di in range(s_ref.shape[0]):
            rows = jnp.dot(s_ref[di], h, preferred_element_type=f32)
            for dj in range(e_ref.shape[0]):
                v = jnp.dot(rows, e_ref[dj], preferred_element_type=f32)
                out = v if out is None else jnp.maximum(out, v)
        return out

    h = x_ref[0]                                        # [H, W]   (Cin == 1)
    h = layer(h, e1a_ref, e1m_ref, e1b_ref, "relu")     # [H1, 16*W1]
    h = maxpool(h, p1s_ref, p1e_ref)                    # [H2, 16*W2]
    h = layer(h, e2a_ref, e2m_ref, e2b_ref, "relu")     # [H3,  8*W3]
    h = maxpool(h, p2s_ref, p2e_ref)                    # [H4,  8*W4]
    enc_ref[0, :, :] = h
    h = layer(h, d1a_ref, d1m_ref, d1b_ref, "relu")     # [H5, 16*W5]
    h = layer(h, d2a_ref, d2m_ref, d2b_ref, "relu")     # [H6,  8*W6]
    h = layer(h, d3a_ref, d3m_ref, d3b_ref, "tanh")     # [H7,  1*W7]
    dec_ref[0, :, :] = h


# ----------------------------------------------------------------------------
# Forward wrapper (mirrors conv_autoencoder.forward, NCHW in / NCHW out)
# ----------------------------------------------------------------------------
def conv_autoencoder_forward(params, x):
    n, cin, h0, w0 = x.shape
    assert cin == 1, "conv_autoencoder expects single-channel input"

    # static per-layer spatial sizes
    h1, w1 = _conv_out(h0, 3, 3, 1), _conv_out(w0, 3, 3, 1)     # Conv2d(1,16,3,s3,p1)
    h2, w2 = _conv_out(h1, 2, 2, 0), _conv_out(w1, 2, 2, 0)     # MaxPool2d(2,2)
    h3, w3 = _conv_out(h2, 3, 2, 1), _conv_out(w2, 3, 2, 1)     # Conv2d(16,8,3,s2,p1)
    h4, w4 = _conv_out(h3, 2, 1, 0), _conv_out(w3, 2, 1, 0)     # MaxPool2d(2,1)
    h5, w5 = _convt_out(h4, 3, 2, 0), _convt_out(w4, 3, 2, 0)   # ConvT(8,16,3,s2)
    h6, w6 = _convt_out(h5, 5, 3, 1), _convt_out(w5, 5, 3, 1)   # ConvT(16,8,5,s3,p1)
    h7, w7 = _convt_out(h6, 2, 2, 1), _convt_out(w6, 2, 2, 1)   # ConvT(8,1,2,s2,p1)

    # constant 0/1 selection matrices
    e1_a = _conv_rowsel(h1, h0, 3, 1, 3)
    e2_a = _conv_rowsel(h3, h2, 2, 1, 3)
    d1_a = _convt_rowsel(h5, h4, 2, 0, 3)
    d2_a = _convt_rowsel(h6, h5, 3, 1, 5)
    d3_a = _convt_rowsel(h7, h6, 2, 1, 2)
    p1_s = _pool_rowsel(h2, h1, 2, 2)
    p1_e = _pool_colsel(16, w1, w2, 2, 2)
    p2_s = _pool_rowsel(h4, h3, 1, 2)
    p2_e = _pool_colsel(8, w3, w4, 1, 2)

    # per-tap (column-selection x channel-mix) matrices from the weights
    e1_m = _conv_taps(params["enc1_w"], _conv_colsel(w1, w0, 3, 1, 3))
    e2_m = _conv_taps(params["enc2_w"], _conv_colsel(w3, w2, 2, 1, 3))
    d1_m = _convt_taps(params["dec1_w"], _convt_colsel(w5, w4, 2, 0, 3))
    d2_m = _convt_taps(params["dec2_w"], _convt_colsel(w6, w5, 3, 1, 5))
    d3_m = _convt_taps(params["dec3_w"], _convt_colsel(w7, w6, 2, 1, 2))
    e1_b = _bias_row(params["enc1_b"], w1)
    e2_b = _bias_row(params["enc2_b"], w3)
    d1_b = _bias_row(params["dec1_b"], w5)
    d2_b = _bias_row(params["dec2_b"], w6)
    d3_b = _bias_row(params["dec3_b"], w7)

    consts = [e1_a, e1_m, e1_b, p1_s, p1_e,
              e2_a, e2_m, e2_b, p2_s, p2_e,
              d1_a, d1_m, d1_b,
              d2_a, d2_m, d2_b,
              d3_a, d3_m, d3_b]
    consts = [jnp.asarray(c, jnp.float32) for c in consts]

    def _const_spec(arr):
        nd = arr.ndim
        return pl.BlockSpec(arr.shape, lambda b, _nd=nd: (0,) * _nd)

    x_img = x.reshape(n, h0, w0)          # Cin == 1: per-image tile [H, Cin*W]

    enc2d, dec2d = pl.pallas_call(
        _autoencoder_kernel,
        grid=(n,),
        in_specs=[pl.BlockSpec((1, h0, w0), lambda b: (b, 0, 0))]
                 + [_const_spec(c) for c in consts],
        out_specs=[pl.BlockSpec((1, h4, 8 * w4), lambda b: (b, 0, 0)),
                   pl.BlockSpec((1, h7, w7), lambda b: (b, 0, 0))],
        out_shape=(jax.ShapeDtypeStruct((n, h4, 8 * w4), jnp.float32),
                   jax.ShapeDtypeStruct((n, h7, w7), jnp.float32)),
        compiler_params=pltpu.CompilerParams(
            dimension_semantics=("parallel",)),
    )(x_img, *consts)

    # kernel layout [b, oh, c*OW + ow] -> NCHW
    encode = enc2d.reshape(n, h4, 8, w4).transpose(0, 2, 1, 3)
    decode = dec2d.reshape(n, 1, h7, w7)
    return encode, decode


# ----------------------------------------------------------------------------
# Pure-JAX/XLA reference of the same PyTorch module (for the correctness check)
# ----------------------------------------------------------------------------
def reference_forward(params, x):
    dn = ("NCHW", "OIHW", "NCHW")
    prec = jax.lax.Precision.HIGHEST

    def conv(x, w, b, s, p):
        y = jax.lax.conv_general_dilated(
            x, w, (s, s), [(p, p), (p, p)], dimension_numbers=dn, precision=prec)
        return y + b.reshape(1, -1, 1, 1)

    def convt(x, w, b, s, p):
        k = w.shape[2]
        w_t = jnp.flip(w, (2, 3)).transpose(1, 0, 2, 3)
        y = jax.lax.conv_general_dilated(
            x, w_t, (1, 1), [(k - 1 - p, k - 1 - p)] * 2, lhs_dilation=(s, s),
            dimension_numbers=dn, precision=prec)
        return y + b.reshape(1, -1, 1, 1)

    def pool(x, k, s):
        return jax.lax.reduce_window(
            x, -jnp.inf, jax.lax.max, (1, 1, k, k), (1, 1, s, s), "VALID")

    h = jax.nn.relu(conv(x, params["enc1_w"], params["enc1_b"], 3, 1))
    h = pool(h, 2, 2)
    h = jax.nn.relu(conv(h, params["enc2_w"], params["enc2_b"], 2, 1))
    encode = pool(h, 2, 1)
    d = jax.nn.relu(convt(encode, params["dec1_w"], params["dec1_b"], 2, 0))
    d = jax.nn.relu(convt(d, params["dec2_w"], params["dec2_b"], 3, 1))
    decode = jnp.tanh(convt(d, params["dec3_w"], params["dec3_b"], 2, 1))
    return encode, decode


# ----------------------------------------------------------------------------
# Parameters (PyTorch layouts: Conv2d [Cout,Cin,kh,kw], ConvT [Cin,Cout,kh,kw])
# ----------------------------------------------------------------------------
def init_params(key):
    keys = jax.random.split(key, 10)

    def w_init(k, shape, fan_in):
        return jax.random.normal(k, shape, jnp.float32) * (1.0 / jnp.sqrt(fan_in))

    return {
        "enc1_w": w_init(keys[0], (16, 1, 3, 3), 1 * 3 * 3),
        "enc1_b": w_init(keys[1], (16,), 1 * 3 * 3),
        "enc2_w": w_init(keys[2], (8, 16, 3, 3), 16 * 3 * 3),
        "enc2_b": w_init(keys[3], (8,), 16 * 3 * 3),
        "dec1_w": w_init(keys[4], (8, 16, 3, 3), 8 * 3 * 3),
        "dec1_b": w_init(keys[5], (16,), 8 * 3 * 3),
        "dec2_w": w_init(keys[6], (16, 8, 5, 5), 16 * 5 * 5),
        "dec2_b": w_init(keys[7], (8,), 16 * 5 * 5),
        "dec3_w": w_init(keys[8], (8, 1, 2, 2), 8 * 2 * 2),
        "dec3_b": w_init(keys[9], (1,), 8 * 2 * 2),
    }


if __name__ == "__main__":
    key = jax.random.PRNGKey(0)
    pkey, xkey = jax.random.split(key)
    params = init_params(pkey)

    # MNIST-style input implied by the architecture: [N, 1, 28, 28]
    x = jax.random.normal(xkey, (2, 1, 28, 28), jnp.float32)

    encode, decode = jax.jit(conv_autoencoder_forward)(params, x)
    jax.block_until_ready((encode, decode))

    assert encode.shape == (2, 8, 2, 2), encode.shape
    assert decode.shape == (2, 1, 28, 28), decode.shape
    assert bool(jnp.all(jnp.isfinite(encode))) and bool(jnp.all(jnp.isfinite(decode)))

    # numerical check against the XLA reference implementation
    enc_xla, dec_xla = jax.jit(reference_forward)(params, x)
    assert jnp.allclose(encode, enc_xla, rtol=2e-2, atol=2e-2), \
        float(jnp.max(jnp.abs(encode - enc_xla)))
    assert jnp.allclose(decode, dec_xla, rtol=2e-2, atol=2e-2), \
        float(jnp.max(jnp.abs(decode - dec_xla)))

    print("KERNEL_OK")
</pallas_src>

<mosaic_0001>
module attributes {stable_mosaic.version = 11 : i64} {
  func.func @_autoencoder_kernel(%arg0: i32, %arg1: memref<1x28x28xf32, #tpu.memory_space<vmem>>, %arg2: memref<3x10x28xf32, #tpu.memory_space<vmem>>, %arg3: memref<3x28x160xf32, #tpu.memory_space<vmem>>, %arg4: memref<1x160xf32, #tpu.memory_space<vmem>>, %arg5: memref<2x5x10xf32, #tpu.memory_space<vmem>>, %arg6: memref<2x160x80xf32, #tpu.memory_space<vmem>>, %arg7: memref<3x3x5xf32, #tpu.memory_space<vmem>>, %arg8: memref<3x80x24xf32, #tpu.memory_space<vmem>>, %arg9: memref<1x24xf32, #tpu.memory_space<vmem>>, %arg10: memref<2x2x3xf32, #tpu.memory_space<vmem>>, %arg11: memref<2x24x16xf32, #tpu.memory_space<vmem>>, %arg12: memref<3x5x2xf32, #tpu.memory_space<vmem>>, %arg13: memref<3x16x80xf32, #tpu.memory_space<vmem>>, %arg14: memref<1x80xf32, #tpu.memory_space<vmem>>, %arg15: memref<5x15x5xf32, #tpu.memory_space<vmem>>, %arg16: memref<5x80x120xf32, #tpu.memory_space<vmem>>, %arg17: memref<1x120xf32, #tpu.memory_space<vmem>>, %arg18: memref<2x28x15xf32, #tpu.memory_space<vmem>>, %arg19: memref<2x120x28xf32, #tpu.memory_space<vmem>>, %arg20: memref<1x28xf32, #tpu.memory_space<vmem>>, %arg21: memref<1x2x16xf32, #tpu.memory_space<vmem>>, %arg22: memref<1x28x28xf32, #tpu.memory_space<vmem>>) attributes {dimension_semantics = [#tpu.dimension_semantics<parallel>], iteration_bounds = array<i64: 2>, scalar_prefetch = 0 : i64, scratch_operands = 0 : i64, tpu.core_type = #tpu.core_type<tc>, window_params = [{transform_indices = @transform_0, window_bounds = array<i64: 1, 28, 28>}, {pipeline_mode = #tpu.pipeline_mode<synchronous>, transform_indices = @transform_1, window_bounds = array<i64: 3, 10, 28>}, {pipeline_mode = #tpu.pipeline_mode<synchronous>, transform_indices = @transform_2, window_bounds = array<i64: 3, 28, 160>}, {pipeline_mode = #tpu.pipeline_mode<synchronous>, transform_indices = @transform_3, window_bounds = array<i64: 1, 160>}, {pipeline_mode = #tpu.pipeline_mode<synchronous>, transform_indices = @transform_4, window_bounds = array<i64: 2, 5, 10>}, {pipeline_mode = #tpu.pipeline_mode<synchronous>, transform_indices = @transform_5, window_bounds = array<i64: 2, 160, 80>}, {pipeline_mode = #tpu.pipeline_mode<synchronous>, transform_indices = @transform_6, window_bounds = array<i64: 3, 3, 5>}, {pipeline_mode = #tpu.pipeline_mode<synchronous>, transform_indices = @transform_7, window_bounds = array<i64: 3, 80, 24>}, {pipeline_mode = #tpu.pipeline_mode<synchronous>, transform_indices = @transform_8, window_bounds = array<i64: 1, 24>}, {pipeline_mode = #tpu.pipeline_mode<synchronous>, transform_indices = @transform_9, window_bounds = array<i64: 2, 2, 3>}, {pipeline_mode = #tpu.pipeline_mode<synchronous>, transform_indices = @transform_10, window_bounds = array<i64: 2, 24, 16>}, {pipeline_mode = #tpu.pipeline_mode<synchronous>, transform_indices = @transform_11, window_bounds = array<i64: 3, 5, 2>}, {pipeline_mode = #tpu.pipeline_mode<synchronous>, transform_indices = @transform_12, window_bounds = array<i64: 3, 16, 80>}, {pipeline_mode = #tpu.pipeline_mode<synchronous>, transform_indices = @transform_13, window_bounds = array<i64: 1, 80>}, {pipeline_mode = #tpu.pipeline_mode<synchronous>, transform_indices = @transform_14, window_bounds = array<i64: 5, 15, 5>}, {pipeline_mode = #tpu.pipeline_mode<synchronous>, transform_indices = @transform_15, window_bounds = array<i64: 5, 80, 120>}, {pipeline_mode = #tpu.pipeline_mode<synchronous>, transform_indices = @transform_16, window_bounds = array<i64: 1, 120>}, {pipeline_mode = #tpu.pipeline_mode<synchronous>, transform_indices = @transform_17, window_bounds = array<i64: 2, 28, 15>}, {pipeline_mode = #tpu.pipeline_mode<synchronous>, transform_indices = @transform_18, window_bounds = array<i64: 2, 120, 28>}, {pipeline_mode = #tpu.pipeline_mode<synchronous>, transform_indices = @transform_19, window_bounds = array<i64: 1, 28>}, {transform_indices = @transform_20, window_bounds = array<i64: 1, 2, 16>}, {transform_indices = @transform_21, window_bounds = array<i64: 1, 28, 28>}]} {
    %c0 = arith.constant 0 : index
    %c0_0 = arith.constant 0 : index
    %c0_1 = arith.constant 0 : index
    %0 = vector.load %arg1[%c0, %c0_0, %c0_1] : memref<1x28x28xf32, #tpu.memory_space<vmem>>, vector<1x28x28xf32>
    %1 = vector.shape_cast %0 : vector<1x28x28xf32> to vector<28x28xf32>
    %c0_2 = arith.constant 0 : index
    %c0_3 = arith.constant 0 : index
    %c0_4 = arith.constant 0 : index
    %2 = vector.load %arg2[%c0_2, %c0_3, %c0_4] : memref<3x10x28xf32, #tpu.memory_space<vmem>>, vector<1x10x28xf32>
    %3 = vector.shape_cast %2 : vector<1x10x28xf32> to vector<10x28xf32>
    %cst = arith.constant dense<0.000000e+00> : vector<10x28xf32>
    %4 = tpu.matmul %3, %1, %cst {dimension_numbers = #tpu.dot_dimension_numbers<[1], [0], [0], [1], [0, 0, 1, 1], [], []>} : vector<10x28xf32>, vector<28x28xf32>, vector<10x28xf32> -> vector<10x28xf32>
    %c0_5 = arith.constant 0 : index
    %c0_6 = arith.constant 0 : index
    %c0_7 = arith.constant 0 : index
    %5 = vector.load %arg3[%c0_5, %c0_6, %c0_7] : memref<3x28x160xf32, #tpu.memory_space<vmem>>, vector<1x28x160xf32>
    %6 = vector.shape_cast %5 : vector<1x28x160xf32> to vector<28x160xf32>
    %cst_8 = arith.constant dense<0.000000e+00> : vector<10x160xf32>
    %7 = tpu.matmul %4, %6, %cst_8 {dimension_numbers = #tpu.dot_dimension_numbers<[1], [0], [0], [1], [0, 0, 1, 1], [], []>} : vector<10x28xf32>, vector<28x160xf32>, vector<10x160xf32> -> vector<10x160xf32>
    %c1 = arith.constant 1 : index
    %c0_9 = arith.constant 0 : index
    %c0_10 = arith.constant 0 : index
    %8 = vector.load %arg2[%c1, %c0_9, %c0_10] : memref<3x10x28xf32, #tpu.memory_space<vmem>>, vector<1x10x28xf32>
    %9 = vector.shape_cast %8 : vector<1x10x28xf32> to vector<10x28xf32>
    %cst_11 = arith.constant dense<0.000000e+00> : vector<10x28xf32>
    %10 = tpu.matmul %9, %1, %cst_11 {dimension_numbers = #tpu.dot_dimension_numbers<[1], [0], [0], [1], [0, 0, 1, 1], [], []>} : vector<10x28xf32>, vector<28x28xf32>, vector<10x28xf32> -> vector<10x28xf32>
    %c1_12 = arith.constant 1 : index
    %c0_13 = arith.constant 0 : index
    %c0_14 = arith.constant 0 : index
    %11 = vector.load %arg3[%c1_12, %c0_13, %c0_14] : memref<3x28x160xf32, #tpu.memory_space<vmem>>, vector<1x28x160xf32>
    %12 = vector.shape_cast %11 : vector<1x28x160xf32> to vector<28x160xf32>
    %cst_15 = arith.constant dense<0.000000e+00> : vector<10x160xf32>
    %13 = tpu.matmul %10, %12, %cst_15 {dimension_numbers = #tpu.dot_dimension_numbers<[1], [0], [0], [1], [0, 0, 1, 1], [], []>} : vector<10x28xf32>, vector<28x160xf32>, vector<10x160xf32> -> vector<10x160xf32>
    %14 = arith.addf %7, %13 : vector<10x160xf32>
    %c2 = arith.constant 2 : index
    %c0_16 = arith.constant 0 : index
    %c0_17 = arith.constant 0 : index
    %15 = vector.load %arg2[%c2, %c0_16, %c0_17] : memref<3x10x28xf32, #tpu.memory_space<vmem>>, vector<1x10x28xf32>
    %16 = vector.shape_cast %15 : vector<1x10x28xf32> to vector<10x28xf32>
    %cst_18 = arith.constant dense<0.000000e+00> : vector<10x28xf32>
    %17 = tpu.matmul %16, %1, %cst_18 {dimension_numbers = #tpu.dot_dimension_numbers<[1], [0], [0], [1], [0, 0, 1, 1], [], []>} : vector<10x28xf32>, vector<28x28xf32>, vector<10x28xf32> -> vector<10x28xf32>
    %c2_19 = arith.constant 2 : index
    %c0_20 = arith.constant 0 : index
    %c0_21 = arith.constant 0 : index
    %18 = vector.load %arg3[%c2_19, %c0_20, %c0_21] : memref<3x28x160xf32, #tpu.memory_space<vmem>>, vector<1x28x160xf32>
    %19 = vector.shape_cast %18 : vector<1x28x160xf32> to vector<28x160xf32>
    %cst_22 = arith.constant dense<0.000000e+00> : vector<10x160xf32>
    %20 = tpu.matmul %17, %19, %cst_22 {dimension_numbers = #tpu.dot_dimension_numbers<[1], [0], [0], [1], [0, 0, 1, 1], [], []>} : vector<10x28xf32>, vector<28x160xf32>, vector<10x160xf32> -> vector<10x160xf32>
    %21 = arith.addf %14, %20 : vector<10x160xf32>
    %c0_23 = arith.constant 0 : index
    %c0_24 = arith.constant 0 : index
    %22 = vector.load %arg4[%c0_23, %c0_24] : memref<1x160xf32, #tpu.memory_space<vmem>>, vector<1x160xf32>
    %23 = vector.broadcast %22 : vector<1x160xf32> to vector<10x160xf32>
    %24 = arith.addf %21, %23 : vector<10x160xf32>
    %cst_25 = arith.constant 0.000000e+00 : f32
    %25 = vector.broadcast %cst_25 : f32 to vector<10x160xf32>
    %26 = arith.maximumf %24, %25 : vector<10x160xf32>
    %c0_26 = arith.constant 0 : index
    %c0_27 = arith.constant 0 : index
    %c0_28 = arith.constant 0 : index
    %27 = vector.load %arg5[%c0_26, %c0_27, %c0_28] : memref<2x5x10xf32, #tpu.memory_space<vmem>>, vector<1x5x10xf32>
    %28 = vector.shape_cast %27 : vector<1x5x10xf32> to vector<5x10xf32>
    %cst_29 = arith.constant dense<0.000000e+00> : vector<5x160xf32>
    %29 = tpu.matmul %28, %26, %cst_29 {dimension_numbers = #tpu.dot_dimension_numbers<[1], [0], [0], [1], [0, 0, 1, 1], [], []>} : vector<5x10xf32>, vector<10x160xf32>, vector<5x160xf32> -> vector<5x160xf32>
    %c0_30 = arith.constant 0 : index
    %c0_31 = arith.constant 0 : index
    %c0_32 = arith.constant 0 : index
    %30 = vector.load %arg6[%c0_30, %c0_31, %c0_32] : memref<2x160x80xf32, #tpu.memory_space<vmem>>, vector<1x160x80xf32>
    %31 = vector.shape_cast %30 : vector<1x160x80xf32> to vector<160x80xf32>
    %cst_33 = arith.constant dense<0.000000e+00> : vector<5x80xf32>
    %32 = tpu.matmul %29, %31, %cst_33 {dimension_numbers = #tpu.dot_dimension_numbers<[1], [0], [0], [1], [0, 0, 1, 1], [], []>} : vector<5x160xf32>, vector<160x80xf32>, vector<5x80xf32> -> vector<5x80xf32>
    %c1_34 = arith.constant 1 : index
    %c0_35 = arith.constant 0 : index
    %c0_36 = arith.constant 0 : index
    %33 = vector.load %arg6[%c1_34, %c0_35, %c0_36] : memref<2x160x80xf32, #tpu.memory_space<vmem>>, vector<1x160x80xf32>
    %34 = vector.shape_cast %33 : vector<1x160x80xf32> to vector<160x80xf32>
    %cst_37 = arith.constant dense<0.000000e+00> : vector<5x80xf32>
    %35 = tpu.matmul %29, %34, %cst_37 {dimension_numbers = #tpu.dot_dimension_numbers<[1], [0], [0], [1], [0, 0, 1, 1], [], []>} : vector<5x160xf32>, vector<160x80xf32>, vector<5x80xf32> -> vector<5x80xf32>
    %36 = arith.maximumf %32, %35 : vector<5x80xf32>
    %c1_38 = arith.constant 1 : index
    %c0_39 = arith.constant 0 : index
    %c0_40 = arith.constant 0 : index
    %37 = vector.load %arg5[%c1_38, %c0_39, %c0_40] : memref<2x5x10xf32, #tpu.memory_space<vmem>>, vector<1x5x10xf32>
    %38 = vector.shape_cast %37 : vector<1x5x10xf32> to vector<5x10xf32>
    %cst_41 = arith.constant dense<0.000000e+00> : vector<5x160xf32>
    %39 = tpu.matmul %38, %26, %cst_41 {dimension_numbers = #tpu.dot_dimension_numbers<[1], [0], [0], [1], [0, 0, 1, 1], [], []>} : vector<5x10xf32>, vector<10x160xf32>, vector<5x160xf32> -> vector<5x160xf32>
    %c0_42 = arith.constant 0 : index
    %c0_43 = arith.constant 0 : index
    %c0_44 = arith.constant 0 : index
    %40 = vector.load %arg6[%c0_42, %c0_43, %c0_44] : memref<2x160x80xf32, #tpu.memory_space<vmem>>, vector<1x160x80xf32>
    %41 = vector.shape_cast %40 : vector<1x160x80xf32> to vector<160x80xf32>
    %cst_45 = arith.constant dense<0.000000e+00> : vector<5x80xf32>
    %42 = tpu.matmul %39, %41, %cst_45 {dimension_numbers = #tpu.dot_dimension_numbers<[1], [0], [0], [1], [0, 0, 1, 1], [], []>} : vector<5x160xf32>, vector<160x80xf32>, vector<5x80xf32> -> vector<5x80xf32>
    %43 = arith.maximumf %36, %42 : vector<5x80xf32>
    %c1_46 = arith.constant 1 : index
    %c0_47 = arith.constant 0 : index
    %c0_48 = arith.constant 0 : index
    %44 = vector.load %arg6[%c1_46, %c0_47, %c0_48] : memref<2x160x80xf32, #tpu.memory_space<vmem>>, vector<1x160x80xf32>
    %45 = vector.shape_cast %44 : vector<1x160x80xf32> to vector<160x80xf32>
    %cst_49 = arith.constant dense<0.000000e+00> : vector<5x80xf32>
    %46 = tpu.matmul %39, %45, %cst_49 {dimension_numbers = #tpu.dot_dimension_numbers<[1], [0], [0], [1], [0, 0, 1, 1], [], []>} : vector<5x160xf32>, vector<160x80xf32>, vector<5x80xf32> -> vector<5x80xf32>
    %47 = arith.maximumf %43, %46 : vector<5x80xf32>
    %c0_50 = arith.constant 0 : index
    %c0_51 = arith.constant 0 : index
    %c0_52 = arith.constant 0 : index
    %48 = vector.load %arg7[%c0_50, %c0_51, %c0_52] : memref<3x3x5xf32, #tpu.memory_space<vmem>>, vector<1x3x5xf32>
    %49 = vector.shape_cast %48 : vector<1x3x5xf32> to vector<3x5xf32>
    %cst_53 = arith.constant dense<0.000000e+00> : vector<3x80xf32>
    %50 = tpu.matmul %49, %47, %cst_53 {dimension_numbers = #tpu.dot_dimension_numbers<[1], [0], [0], [1], [0, 0, 1, 1], [], []>} : vector<3x5xf32>, vector<5x80xf32>, vector<3x80xf32> -> vector<3x80xf32>
    %c0_54 = arith.constant 0 : index
    %c0_55 = arith.constant 0 : index
    %c0_56 = arith.constant 0 : index
    %51 = vector.load %arg8[%c0_54, %c0_55, %c0_56] : memref<3x80x24xf32, #tpu.memory_space<vmem>>, vector<1x80x24xf32>
    %52 = vector.shape_cast %51 : vector<1x80x24xf32> to vector<80x24xf32>
    %cst_57 = arith.constant dense<0.000000e+00> : vector<3x24xf32>
    %53 = tpu.matmul %50, %52, %cst_57 {dimension_numbers = #tpu.dot_dimension_numbers<[1], [0], [0], [1], [0, 0, 1, 1], [], []>} : vector<3x80xf32>, vector<80x24xf32>, vector<3x24xf32> -> vector<3x24xf32>
    %c1_58 = arith.constant 1 : index
    %c0_59 = arith.constant 0 : index
    %c0_60 = arith.constant 0 : index
    %54 = vector.load %arg7[%c1_58, %c0_59, %c0_60] : memref<3x3x5xf32, #tpu.memory_space<vmem>>, vector<1x3x5xf32>
    %55 = vector.shape_cast %54 : vector<1x3x5xf32> to vector<3x5xf32>
    %cst_61 = arith.constant dense<0.000000e+00> : vector<3x80xf32>
    %56 = tpu.matmul %55, %47, %cst_61 {dimension_numbers = #tpu.dot_dimension_numbers<[1], [0], [0], [1], [0, 0, 1, 1], [], []>} : vector<3x5xf32>, vector<5x80xf32>, vector<3x80xf32> -> vector<3x80xf32>
    %c1_62 = arith.constant 1 : index
    %c0_63 = arith.constant 0 : index
    %c0_64 = arith.constant 0 : index
    %57 = vector.load %arg8[%c1_62, %c0_63, %c0_64] : memref<3x80x24xf32, #tpu.memory_space<vmem>>, vector<1x80x24xf32>
    %58 = vector.shape_cast %57 : vector<1x80x24xf32> to vector<80x24xf32>
    %cst_65 = arith.constant dense<0.000000e+00> : vector<3x24xf32>
    %59 = tpu.matmul %56, %58, %cst_65 {dimension_numbers = #tpu.dot_dimension_numbers<[1], [0], [0], [1], [0, 0, 1, 1], [], []>} : vector<3x80xf32>, vector<80x24xf32>, vector<3x24xf32> -> vector<3x24xf32>
    %60 = arith.addf %53, %59 : vector<3x24xf32>
    %c2_66 = arith.constant 2 : index
    %c0_67 = arith.constant 0 : index
    %c0_68 = arith.constant 0 : index
    %61 = vector.load %arg7[%c2_66, %c0_67, %c0_68] : memref<3x3x5xf32, #tpu.memory_space<vmem>>, vector<1x3x5xf32>
    %62 = vector.shape_cast %61 : vector<1x3x5xf32> to vector<3x5xf32>
    %cst_69 = arith.constant dense<0.000000e+00> : vector<3x80xf32>
    %63 = tpu.matmul %62, %47, %cst_69 {dimension_numbers = #tpu.dot_dimension_numbers<[1], [0], [0], [1], [0, 0, 1, 1], [], []>} : vector<3x5xf32>, vector<5x80xf32>, vector<3x80xf32> -> vector<3x80xf32>
    %c2_70 = arith.constant 2 : index
    %c0_71 = arith.constant 0 : index
    %c0_72 = arith.constant 0 : index
    %64 = vector.load %arg8[%c2_70, %c0_71, %c0_72] : memref<3x80x24xf32, #tpu.memory_space<vmem>>, vector<1x80x24xf32>
    %65 = vector.shape_cast %64 : vector<1x80x24xf32> to vector<80x24xf32>
    %cst_73 = arith.constant dense<0.000000e+00> : vector<3x24xf32>
    %66 = tpu.matmul %63, %65, %cst_73 {dimension_numbers = #tpu.dot_dimension_numbers<[1], [0], [0], [1], [0, 0, 1, 1], [], []>} : vector<3x80xf32>, vector<80x24xf32>, vector<3x24xf32> -> vector<3x24xf32>
    %67 = arith.addf %60, %66 : vector<3x24xf32>
    %c0_74 = arith.constant 0 : index
    %c0_75 = arith.constant 0 : index
    %68 = vector.load %arg9[%c0_74, %c0_75] : memref<1x24xf32, #tpu.memory_space<vmem>>, vector<1x24xf32>
    %69 = vector.broadcast %68 : vector<1x24xf32> to vector<3x24xf32>
    %70 = arith.addf %67, %69 : vector<3x24xf32>
    %cst_76 = arith.constant 0.000000e+00 : f32
    %71 = vector.broadcast %cst_76 : f32 to vector<3x24xf32>
    %72 = arith.maximumf %70, %71 : vector<3x24xf32>
    %c0_77 = arith.constant 0 : index
    %c0_78 = arith.constant 0 : index
    %c0_79 = arith.constant 0 : index
    %73 = vector.load %arg10[%c0_77, %c0_78, %c0_79] : memref<2x2x3xf32, #tpu.memory_space<vmem>>, vector<1x2x3xf32>
    %74 = vector.shape_cast %73 : vector<1x2x3xf32> to vector<2x3xf32>
    %cst_80 = arith.constant dense<0.000000e+00> : vector<2x24xf32>
    %75 = tpu.matmul %74, %72, %cst_80 {dimension_numbers = #tpu.dot_dimension_numbers<[1], [0], [0], [1], [0, 0, 1, 1], [], []>} : vector<2x3xf32>, vector<3x24xf32>, vector<2x24xf32> -> vector<2x24xf32>
    %c0_81 = arith.constant 0 : index
    %c0_82 = arith.constant 0 : index
    %c0_83 = arith.constant 0 : index
    %76 = vector.load %arg11[%c0_81, %c0_82, %c0_83] : memref<2x24x16xf32, #tpu.memory_space<vmem>>, vector<1x24x16xf32>
    %77 = vector.shape_cast %76 : vector<1x24x16xf32> to vector<24x16xf32>
    %cst_84 = arith.constant dense<0.000000e+00> : vector<2x16xf32>
    %78 = tpu.matmul %75, %77, %cst_84 {dimension_numbers = #tpu.dot_dimension_numbers<[1], [0], [0], [1], [0, 0, 1, 1], [], []>} : vector<2x24xf32>, vector<24x16xf32>, vector<2x16xf32> -> vector<2x16xf32>
    %c1_85 = arith.constant 1 : index
    %c0_86 = arith.constant 0 : index
    %c0_87 = arith.constant 0 : index
    %79 = vector.load %arg11[%c1_85, %c0_86, %c0_87] : memref<2x24x16xf32, #tpu.memory_space<vmem>>, vector<1x24x16xf32>
    %80 = vector.shape_cast %79 : vector<1x24x16xf32> to vector<24x16xf32>
    %cst_88 = arith.constant dense<0.000000e+00> : vector<2x16xf32>
    %81 = tpu.matmul %75, %80, %cst_88 {dimension_numbers = #tpu.dot_dimension_numbers<[1], [0], [0], [1], [0, 0, 1, 1], [], []>} : vector<2x24xf32>, vector<24x16xf32>, vector<2x16xf32> -> vector<2x16xf32>
    %82 = arith.maximumf %78, %81 : vector<2x16xf32>
    %c1_89 = arith.constant 1 : index
    %c0_90 = arith.constant 0 : index
    %c0_91 = arith.constant 0 : index
    %83 = vector.load %arg10[%c1_89, %c0_90, %c0_91] : memref<2x2x3xf32, #tpu.memory_space<vmem>>, vector<1x2x3xf32>
    %84 = vector.shape_cast %83 : vector<1x2x3xf32> to vector<2x3xf32>
    %cst_92 = arith.constant dense<0.000000e+00> : vector<2x24xf32>
    %85 = tpu.matmul %84, %72, %cst_92 {dimension_numbers = #tpu.dot_dimension_numbers<[1], [0], [0], [1], [0, 0, 1, 1], [], []>} : vector<2x3xf32>, vector<3x24xf32>, vector<2x24xf32> -> vector<2x24xf32>
    %c0_93 = arith.constant 0 : index
    %c0_94 = arith.constant 0 : index
    %c0_95 = arith.constant 0 : index
    %86 = vector.load %arg11[%c0_93, %c0_94, %c0_95] : memref<2x24x16xf32, #tpu.memory_space<vmem>>, vector<1x24x16xf32>
    %87 = vector.shape_cast %86 : vector<1x24x16xf32> to vector<24x16xf32>
    %cst_96 = arith.constant dense<0.000000e+00> : vector<2x16xf32>
    %88 = tpu.matmul %85, %87, %cst_96 {dimension_numbers = #tpu.dot_dimension_numbers<[1], [0], [0], [1], [0, 0, 1, 1], [], []>} : vector<2x24xf32>, vector<24x16xf32>, vector<2x16xf32> -> vector<2x16xf32>
    %89 = arith.maximumf %82, %88 : vector<2x16xf32>
    %c1_97 = arith.constant 1 : index
    %c0_98 = arith.constant 0 : index
    %c0_99 = arith.constant 0 : index
    %90 = vector.load %arg11[%c1_97, %c0_98, %c0_99] : memref<2x24x16xf32, #tpu.memory_space<vmem>>, vector<1x24x16xf32>
    %91 = vector.shape_cast %90 : vector<1x24x16xf32> to vector<24x16xf32>
    %cst_100 = arith.constant dense<0.000000e+00> : vector<2x16xf32>
    %92 = tpu.matmul %85, %91, %cst_100 {dimension_numbers = #tpu.dot_dimension_numbers<[1], [0], [0], [1], [0, 0, 1, 1], [], []>} : vector<2x24xf32>, vector<24x16xf32>, vector<2x16xf32> -> vector<2x16xf32>
    %93 = arith.maximumf %89, %92 : vector<2x16xf32>
    %c0_101 = arith.constant 0 : index
    %c0_102 = arith.constant 0 : index
    %c0_103 = arith.constant 0 : index
    %94 = vector.load %arg21[%c0_101, %c0_102, %c0_103] : memref<1x2x16xf32, #tpu.memory_space<vmem>>, vector<1x2x16xf32>
    %95 = vector.shape_cast %94 : vector<1x2x16xf32> to vector<2x16xf32>
    %96 = vector.shape_cast %93 : vector<2x16xf32> to vector<1x2x16xf32>
    tpu.vector_store %arg21[%c0_101, %c0_102, %c0_103], %96 {strides = array<i32>} : memref<1x2x16xf32, #tpu.memory_space<vmem>>, vector<1x2x16xf32>,
    %c0_104 = arith.constant 0 : index
    %c0_105 = arith.constant 0 : index
    %c0_106 = arith.constant 0 : index
    %97 = vector.load %arg12[%c0_104, %c0_105, %c0_106] : memref<3x5x2xf32, #tpu.memory_space<vmem>>, vector<1x5x2xf32>
    %98 = vector.shape_cast %97 : vector<1x5x2xf32> to vector<5x2xf32>
    %cst_107 = arith.constant dense<0.000000e+00> : vector<5x16xf32>
    %99 = tpu.matmul %98, %93, %cst_107 {dimension_numbers = #tpu.dot_dimension_numbers<[1], [0], [0], [1], [0, 0, 1, 1], [], []>} : vector<5x2xf32>, vector<2x16xf32>, vector<5x16xf32> -> vector<5x16xf32>
    %c0_108 = arith.constant 0 : index
    %c0_109 = arith.constant 0 : index
    %c0_110 = arith.constant 0 : index
    %100 = vector.load %arg13[%c0_108, %c0_109, %c0_110] : memref<3x16x80xf32, #tpu.memory_space<vmem>>, vector<1x16x80xf32>
    %101 = vector.shape_cast %100 : vector<1x16x80xf32> to vector<16x80xf32>
    %cst_111 = arith.constant dense<0.000000e+00> : vector<5x80xf32>
    %102 = tpu.matmul %99, %101, %cst_111 {dimension_numbers = #tpu.dot_dimension_numbers<[1], [0], [0], [1], [0, 0, 1, 1], [], []>} : vector<5x16xf32>, vector<16x80xf32>, vector<5x80xf32> -> vector<5x80xf32>
    %c1_112 = arith.constant 1 : index
    %c0_113 = arith.constant 0 : index
    %c0_114 = arith.constant 0 : index
    %103 = vector.load %arg12[%c1_112, %c0_113, %c0_114] : memref<3x5x2xf32, #tpu.memory_space<vmem>>, vector<1x5x2xf32>
    %104 = vector.shape_cast %103 : vector<1x5x2xf32> to vector<5x2xf32>
    %cst_115 = arith.constant dense<0.000000e+00> : vector<5x16xf32>
    %105 = tpu.matmul %104, %93, %cst_115 {dimension_numbers = #tpu.dot_dimension_numbers<[1], [0], [0], [1], [0, 0, 1, 1], [], []>} : vector<5x2xf32>, vector<2x16xf32>, vector<5x16xf32> -> vector<5x16xf32>
    %c1_116 = arith.constant 1 : index
    %c0_117 = arith.constant 0 : index
    %c0_118 = arith.constant 0 : index
    %106 = vector.load %arg13[%c1_116, %c0_117, %c0_118] : memref<3x16x80xf32, #tpu.memory_space<vmem>>, vector<1x16x80xf32>
    %107 = vector.shape_cast %106 : vector<1x16x80xf32> to vector<16x80xf32>
    %cst_119 = arith.constant dense<0.000000e+00> : vector<5x80xf32>
    %108 = tpu.matmul %105, %107, %cst_119 {dimension_numbers = #tpu.dot_dimension_numbers<[1], [0], [0], [1], [0, 0, 1, 1], [], []>} : vector<5x16xf32>, vector<16x80xf32>, vector<5x80xf32> -> vector<5x80xf32>
    %109 = arith.addf %102, %108 : vector<5x80xf32>
    %c2_120 = arith.constant 2 : index
    %c0_121 = arith.constant 0 : index
    %c0_122 = arith.constant 0 : index
    %110 = vector.load %arg12[%c2_120, %c0_121, %c0_122] : memref<3x5x2xf32, #tpu.memory_space<vmem>>, vector<1x5x2xf32>
    %111 = vector.shape_cast %110 : vector<1x5x2xf32> to vector<5x2xf32>
    %cst_123 = arith.constant dense<0.000000e+00> : vector<5x16xf32>
    %112 = tpu.matmul %111, %93, %cst_123 {dimension_numbers = #tpu.dot_dimension_numbers<[1], [0], [0], [1], [0, 0, 1, 1], [], []>} : vector<5x2xf32>, vector<2x16xf32>, vector<5x16xf32> -> vector<5x16xf32>
    %c2_124 = arith.constant 2 : index
    %c0_125 = arith.constant 0 : index
    %c0_126 = arith.constant 0 : index
    %113 = vector.load %arg13[%c2_124, %c0_125, %c0_126] : memref<3x16x80xf32, #tpu.memory_space<vmem>>, vector<1x16x80xf32>
    %114 = vector.shape_cast %113 : vector<1x16x80xf32> to vector<16x80xf32>
    %cst_127 = arith.constant dense<0.000000e+00> : vector<5x80xf32>
    %115 = tpu.matmul %112, %114, %cst_127 {dimension_numbers = #tpu.dot_dimension_numbers<[1], [0], [0], [1], [0, 0, 1, 1], [], []>} : vector<5x16xf32>, vector<16x80xf32>, vector<5x80xf32> -> vector<5x80xf32>
    %116 = arith.addf %109, %115 : vector<5x80xf32>
    %c0_128 = arith.constant 0 : index
    %c0_129 = arith.constant 0 : index
    %117 = vector.load %arg14[%c0_128, %c0_129] : memref<1x80xf32, #tpu.memory_space<vmem>>, vector<1x80xf32>
    %118 = vector.broadcast %117 : vector<1x80xf32> to vector<5x80xf32>
    %119 = arith.addf %116, %118 : vector<5x80xf32>
    %cst_130 = arith.constant 0.000000e+00 : f32
    %120 = vector.broadcast %cst_130 : f32 to vector<5x80xf32>
    %121 = arith.maximumf %119, %120 : vector<5x80xf32>
    %c0_131 = arith.constant 0 : index
    %c0_132 = arith.constant 0 : index
    %c0_133 = arith.constant 0 : index
    %122 = vector.load %arg15[%c0_131, %c0_132, %c0_133] : memref<5x15x5xf32, #tpu.memory_space<vmem>>, vector<1x15x5xf32>
    %123 = vector.shape_cast %122 : vector<1x15x5xf32> to vector<15x5xf32>
    %cst_134 = arith.constant dense<0.000000e+00> : vector<15x80xf32>
    %124 = tpu.matmul %123, %121, %cst_134 {dimension_numbers = #tpu.dot_dimension_numbers<[1], [0], [0], [1], [0, 0, 1, 1], [], []>} : vector<15x5xf32>, vector<5x80xf32>, vector<15x80xf32> -> vector<15x80xf32>
    %c0_135 = arith.constant 0 : index
    %c0_136 = arith.constant 0 : index
    %c0_137 = arith.constant 0 : index
    %125 = vector.load %arg16[%c0_135, %c0_136, %c0_137] : memref<5x80x120xf32, #tpu.memory_space<vmem>>, vector<1x80x120xf32>
    %126 = vector.shape_cast %125 : vector<1x80x120xf32> to vector<80x120xf32>
    %cst_138 = arith.constant dense<0.000000e+00> : vector<15x120xf32>
    %127 = tpu.matmul %124, %126, %cst_138 {dimension_numbers = #tpu.dot_dimension_numbers<[1], [0], [0], [1], [0, 0, 1, 1], [], []>} : vector<15x80xf32>, vector<80x120xf32>, vector<15x120xf32> -> vector<15x120xf32>
    %c1_139 = arith.constant 1 : index
    %c0_140 = arith.constant 0 : index
    %c0_141 = arith.constant 0 : index
    %128 = vector.load %arg15[%c1_139, %c0_140, %c0_141] : memref<5x15x5xf32, #tpu.memory_space<vmem>>, vector<1x15x5xf32>
    %129 = vector.shape_cast %128 : vector<1x15x5xf32> to vector<15x5xf32>
    %cst_142 = arith.constant dense<0.000000e+00> : vector<15x80xf32>
    %130 = tpu.matmul %129, %121, %cst_142 {dimension_numbers = #tpu.dot_dimension_numbers<[1], [0], [0], [1], [0, 0, 1, 1], [], []>} : vector<15x5xf32>, vector<5x80xf32>, vector<15x80xf32> -> vector<15x80xf32>
    %c1_143 = arith.constant 1 : index
    %c0_144 = arith.constant 0 : index
    %c0_145 = arith.constant 0 : index
    %131 = vector.load %arg16[%c1_143, %c0_144, %c0_145] : memref<5x80x120xf32, #tpu.memory_space<vmem>>, vector<1x80x120xf32>
    %132 = vector.shape_cast %131 : vector<1x80x120xf32> to vector<80x120xf32>
    %cst_146 = arith.constant dense<0.000000e+00> : vector<15x120xf32>
    %133 = tpu.matmul %130, %132, %cst_146 {dimension_numbers = #tpu.dot_dimension_numbers<[1], [0], [0], [1], [0, 0, 1, 1], [], []>} : vector<15x80xf32>, vector<80x120xf32>, vector<15x120xf32> -> vector<15x120xf32>
    %134 = arith.addf %127, %133 : vector<15x120xf32>
    %c2_147 = arith.constant 2 : index
    %c0_148 = arith.constant 0 : index
    %c0_149 = arith.constant 0 : index
    %135 = vector.load %arg15[%c2_147, %c0_148, %c0_149] : memref<5x15x5xf32, #tpu.memory_space<vmem>>, vector<1x15x5xf32>
    %136 = vector.shape_cast %135 : vector<1x15x5xf32> to vector<15x5xf32>
    %cst_150 = arith.constant dense<0.000000e+00> : vector<15x80xf32>
    %137 = tpu.matmul %136, %121, %cst_150 {dimension_numbers = #tpu.dot_dimension_numbers<[1], [0], [0], [1], [0, 0, 1, 1], [], []>} : vector<15x5xf32>, vector<5x80xf32>, vector<15x80xf32> -> vector<15x80xf32>
    %c2_151 = arith.constant 2 : index
    %c0_152 = arith.constant 0 : index
    %c0_153 = arith.constant 0 : index
    %138 = vector.load %arg16[%c2_151, %c0_152, %c0_153] : memref<5x80x120xf32, #tpu.memory_space<vmem>>, vector<1x80x120xf32>
    %139 = vector.shape_cast %138 : vector<1x80x120xf32> to vector<80x120xf32>
    %cst_154 = arith.constant dense<0.000000e+00> : vector<15x120xf32>
    %140 = tpu.matmul %137, %139, %cst_154 {dimension_numbers = #tpu.dot_dimension_numbers<[1], [0], [0], [1], [0, 0, 1, 1], [], []>} : vector<15x80xf32>, vector<80x120xf32>, vector<15x120xf32> -> vector<15x120xf32>
    %141 = arith.addf %134, %140 : vector<15x120xf32>
    %c3 = arith.constant 3 : index
    %c0_155 = arith.constant 0 : index
    %c0_156 = arith.constant 0 : index
    %142 = vector.load %arg15[%c3, %c0_155, %c0_156] : memref<5x15x5xf32, #tpu.memory_space<vmem>>, vector<1x15x5xf32>
    %143 = vector.shape_cast %142 : vector<1x15x5xf32> to vector<15x5xf32>
    %cst_157 = arith.constant dense<0.000000e+00> : vector<15x80xf32>
    %144 = tpu.matmul %143, %121, %cst_157 {dimension_numbers = #tpu.dot_dimension_numbers<[1], [0], [0], [1], [0, 0, 1, 1], [], []>} : vector<15x5xf32>, vector<5x80xf32>, vector<15x80xf32> -> vector<15x80xf32>
    %c3_158 = arith.constant 3 : index
    %c0_159 = arith.constant 0 : index
    %c0_160 = arith.constant 0 : index
    %145 = vector.load %arg16[%c3_158, %c0_159, %c0_160] : memref<5x80x120xf32, #tpu.memory_space<vmem>>, vector<1x80x120xf32>
    %146 = vector.shape_cast %145 : vector<1x80x120xf32> to vector<80x120xf32>
    %cst_161 = arith.constant dense<0.000000e+00> : vector<15x120xf32>
    %147 = tpu.matmul %144, %146, %cst_161 {dimension_numbers = #tpu.dot_dimension_numbers<[1], [0], [0], [1], [0, 0, 1, 1], [], []>} : vector<15x80xf32>, vector<80x120xf32>, vector<15x120xf32> -> vector<15x120xf32>
    %148 = arith.addf %141, %147 : vector<15x120xf32>
    %c4 = arith.constant 4 : index
    %c0_162 = arith.constant 0 : index
    %c0_163 = arith.constant 0 : index
    %149 = vector.load %arg15[%c4, %c0_162, %c0_163] : memref<5x15x5xf32, #tpu.memory_space<vmem>>, vector<1x15x5xf32>
    %150 = vector.shape_cast %149 : vector<1x15x5xf32> to vector<15x5xf32>
    %cst_164 = arith.constant dense<0.000000e+00> : vector<15x80xf32>
    %151 = tpu.matmul %150, %121, %cst_164 {dimension_numbers = #tpu.dot_dimension_numbers<[1], [0], [0], [1], [0, 0, 1, 1], [], []>} : vector<15x5xf32>, vector<5x80xf32>, vector<15x80xf32> -> vector<15x80xf32>
    %c4_165 = arith.constant 4 : index
    %c0_166 = arith.constant 0 : index
    %c0_167 = arith.constant 0 : index
    %152 = vector.load %arg16[%c4_165, %c0_166, %c0_167] : memref<5x80x120xf32, #tpu.memory_space<vmem>>, vector<1x80x120xf32>
    %153 = vector.shape_cast %152 : vector<1x80x120xf32> to vector<80x120xf32>
    %cst_168 = arith.constant dense<0.000000e+00> : vector<15x120xf32>
    %154 = tpu.matmul %151, %153, %cst_168 {dimension_numbers = #tpu.dot_dimension_numbers<[1], [0], [0], [1], [0, 0, 1, 1], [], []>} : vector<15x80xf32>, vector<80x120xf32>, vector<15x120xf32> -> vector<15x120xf32>
    %155 = arith.addf %148, %154 : vector<15x120xf32>
    %c0_169 = arith.constant 0 : index
    %c0_170 = arith.constant 0 : index
    %156 = vector.load %arg17[%c0_169, %c0_170] : memref<1x120xf32, #tpu.memory_space<vmem>>, vector<1x120xf32>
    %157 = vector.broadcast %156 : vector<1x120xf32> to vector<15x120xf32>
    %158 = arith.addf %155, %157 : vector<15x120xf32>
    %cst_171 = arith.constant 0.000000e+00 : f32
    %159 = vector.broadcast %cst_171 : f32 to vector<15x120xf32>
    %160 = arith.maximumf %158, %159 : vector<15x120xf32>
    %c0_172 = arith.constant 0 : index
    %c0_173 = arith.constant 0 : index
    %c0_174 = arith.constant 0 : index
    %161 = vector.load %arg18[%c0_172, %c0_173, %c0_174] : memref<2x28x15xf32, #tpu.memory_space<vmem>>, vector<1x28x15xf32>
    %162 = vector.shape_cast %161 : vector<1x28x15xf32> to vector<28x15xf32>
    %cst_175 = arith.constant dense<0.000000e+00> : vector<28x120xf32>
    %163 = tpu.matmul %162, %160, %cst_175 {dimension_numbers = #tpu.dot_dimension_numbers<[1], [0], [0], [1], [0, 0, 1, 1], [], []>} : vector<28x15xf32>, vector<15x120xf32>, vector<28x120xf32> -> vector<28x120xf32>
    %c0_176 = arith.constant 0 : index
    %c0_177 = arith.constant 0 : index
    %c0_178 = arith.constant 0 : index
    %164 = vector.load %arg19[%c0_176, %c0_177, %c0_178] : memref<2x120x28xf32, #tpu.memory_space<vmem>>, vector<1x120x28xf32>
    %165 = vector.shape_cast %164 : vector<1x120x28xf32> to vector<120x28xf32>
    %cst_179 = arith.constant dense<0.000000e+00> : vector<28x28xf32>
    %166 = tpu.matmul %163, %165, %cst_179 {dimension_numbers = #tpu.dot_dimension_numbers<[1], [0], [0], [1], [0, 0, 1, 1], [], []>} : vector<28x120xf32>, vector<120x28xf32>, vector<28x28xf32> -> vector<28x28xf32>
    %c1_180 = arith.constant 1 : index
    %c0_181 = arith.constant 0 : index
    %c0_182 = arith.constant 0 : index
    %167 = vector.load %arg18[%c1_180, %c0_181, %c0_182] : memref<2x28x15xf32, #tpu.memory_space<vmem>>, vector<1x28x15xf32>
    %168 = vector.shape_cast %167 : vector<1x28x15xf32> to vector<28x15xf32>
    %cst_183 = arith.constant dense<0.000000e+00> : vector<28x120xf32>
    %169 = tpu.matmul %168, %160, %cst_183 {dimension_numbers = #tpu.dot_dimension_numbers<[1], [0], [0], [1], [0, 0, 1, 1], [], []>} : vector<28x15xf32>, vector<15x120xf32>, vector<28x120xf32> -> vector<28x120xf32>
    %c1_184 = arith.constant 1 : index
    %c0_185 = arith.constant 0 : index
    %c0_186 = arith.constant 0 : index
    %170 = vector.load %arg19[%c1_184, %c0_185, %c0_186] : memref<2x120x28xf32, #tpu.memory_space<vmem>>, vector<1x120x28xf32>
    %171 = vector.shape_cast %170 : vector<1x120x28xf32> to vector<120x28xf32>
    %cst_187 = arith.constant dense<0.000000e+00> : vector<28x28xf32>
    %172 = tpu.matmul %169, %171, %cst_187 {dimension_numbers = #tpu.dot_dimension_numbers<[1], [0], [0], [1], [0, 0, 1, 1], [], []>} : vector<28x120xf32>, vector<120x28xf32>, vector<28x28xf32> -> vector<28x28xf32>
    %173 = arith.addf %166, %172 : vector<28x28xf32>
    %c0_188 = arith.constant 0 : index
    %c0_189 = arith.constant 0 : index
    %174 = vector.load %arg20[%c0_188, %c0_189] : memref<1x28xf32, #tpu.memory_space<vmem>>, vector<1x28xf32>
    %175 = vector.broadcast %174 : vector<1x28xf32> to vector<28x28xf32>
    %176 = arith.addf %173, %175 : vector<28x28xf32>
    %177 = math.tanh %176 : vector<28x28xf32>
    %c0_190 = arith.constant 0 : index
    %c0_191 = arith.constant 0 : index
    %c0_192 = arith.constant 0 : index
    %178 = vector.load %arg22[%c0_190, %c0_191, %c0_192] : memref<1x28x28xf32, #tpu.memory_space<vmem>>, vector<1x28x28xf32>
    %179 = vector.shape_cast %178 : vector<1x28x28xf32> to vector<28x28xf32>
    %180 = vector.shape_cast %177 : vector<28x28xf32> to vector<1x28x28xf32>
    tpu.vector_store %arg22[%c0_190, %c0_191, %c0_192], %180 {strides = array<i32>} : memref<1x28x28xf32, #tpu.memory_space<vmem>>, vector<1x28x28xf32>,
    return
  }
  func.func @transform_0(%arg0: i32) -> (i32, i32, i32) {
    %c0_i32 = arith.constant 0 : i32
    %c0_i32_0 = arith.constant 0 : i32
    %c0_i32_1 = arith.constant 0 : i32
    return %arg0, %c0_i32, %c0_i32_0 : i32, i32, i32
  }
  func.func @transform_1(%arg0: i32) -> (i32, i32, i32) {
    %c0_i32 = arith.constant 0 : i32
    %c0_i32_0 = arith.constant 0 : i32
    %c0_i32_1 = arith.constant 0 : i32
    %c0_i32_2 = arith.constant 0 : i32
    return %c0_i32, %c0_i32_0, %c0_i32_1 : i32, i32, i32
  }
  func.func @transform_2(%arg0: i32) -> (i32, i32, i32) {
    %c0_i32 = arith.constant 0 : i32
    %c0_i32_0 = arith.constant 0 : i32
    %c0_i32_1 = arith.constant 0 : i32
    %c0_i32_2 = arith.constant 0 : i32
    return %c0_i32, %c0_i32_0, %c0_i32_1 : i32, i32, i32
  }
  func.func @transform_3(%arg0: i32) -> (i32, i32) {
    %c0_i32 = arith.constant 0 : i32
    %c0_i32_0 = arith.constant 0 : i32
    %c0_i32_1 = arith.constant 0 : i32
    return %c0_i32, %c0_i32_0 : i32, i32
  }
  func.func @transform_4(%arg0: i32) -> (i32, i32, i32) {
    %c0_i32 = arith.constant 0 : i32
    %c0_i32_0 = arith.constant 0 : i32
    %c0_i32_1 = arith.constant 0 : i32
    %c0_i32_2 = arith.constant 0 : i32
    return %c0_i32, %c0_i32_0, %c0_i32_1 : i32, i32, i32
  }
  func.func @transform_5(%arg0: i32) -> (i32, i32, i32) {
    %c0_i32 = arith.constant 0 : i32
    %c0_i32_0 = arith.constant 0 : i32
    %c0_i32_1 = arith.constant 0 : i32
    %c0_i32_2 = arith.constant 0 : i32
    return %c0_i32, %c0_i32_0, %c0_i32_1 : i32, i32, i32
  }
  func.func @transform_6(%arg0: i32) -> (i32, i32, i32) {
    %c0_i32 = arith.constant 0 : i32
    %c0_i32_0 = arith.constant 0 : i32
    %c0_i32_1 = arith.constant 0 : i32
    %c0_i32_2 = arith.constant 0 : i32
    return %c0_i32, %c0_i32_0, %c0_i32_1 : i32, i32, i32
  }
  func.func @transform_7(%arg0: i32) -> (i32, i32, i32) {
    %c0_i32 = arith.constant 0 : i32
    %c0_i32_0 = arith.constant 0 : i32
    %c0_i32_1 = arith.constant 0 : i32
    %c0_i32_2 = arith.constant 0 : i32
    return %c0_i32, %c0_i32_0, %c0_i32_1 : i32, i32, i32
  }
  func.func @transform_8(%arg0: i32) -> (i32, i32) {
    %c0_i32 = arith.constant 0 : i32
    %c0_i32_0 = arith.constant 0 : i32
    %c0_i32_1 = arith.constant 0 : i32
    return %c0_i32, %c0_i32_0 : i32, i32
  }
  func.func @transform_9(%arg0: i32) -> (i32, i32, i32) {
    %c0_i32 = arith.constant 0 : i32
    %c0_i32_0 = arith.constant 0 : i32
    %c0_i32_1 = arith.constant 0 : i32
    %c0_i32_2 = arith.constant 0 : i32
    return %c0_i32, %c0_i32_0, %c0_i32_1 : i32, i32, i32
  }
  func.func @transform_10(%arg0: i32) -> (i32, i32, i32) {
    %c0_i32 = arith.constant 0 : i32
    %c0_i32_0 = arith.constant 0 : i32
    %c0_i32_1 = arith.constant 0 : i32
    %c0_i32_2 = arith.constant 0 : i32
    return %c0_i32, %c0_i32_0, %c0_i32_1 : i32, i32, i32
  }
  func.func @transform_11(%arg0: i32) -> (i32, i32, i32) {
    %c0_i32 = arith.constant 0 : i32
    %c0_i32_0 = arith.constant 0 : i32
    %c0_i32_1 = arith.constant 0 : i32
    %c0_i32_2 = arith.constant 0 : i32
    return %c0_i32, %c0_i32_0, %c0_i32_1 : i32, i32, i32
  }
  func.func @transform_12(%arg0: i32) -> (i32, i32, i32) {
    %c0_i32 = arith.constant 0 : i32
    %c0_i32_0 = arith.constant 0 : i32
    %c0_i32_1 = arith.constant 0 : i32
    %c0_i32_2 = arith.constant 0 : i32
    return %c0_i32, %c0_i32_0, %c0_i32_1 : i32, i32, i32
  }
  func.func @transform_13(%arg0: i32) -> (i32, i32) {
    %c0_i32 = arith.constant 0 : i32
    %c0_i32_0 = arith.constant 0 : i32
    %c0_i32_1 = arith.constant 0 : i32
    return %c0_i32, %c0_i32_0 : i32, i32
  }
  func.func @transform_14(%arg0: i32) -> (i32, i32, i32) {
    %c0_i32 = arith.constant 0 : i32
    %c0_i32_0 = arith.constant 0 : i32
    %c0_i32_1 = arith.constant 0 : i32
    %c0_i32_2 = arith.constant 0 : i32
    return %c0_i32, %c0_i32_0, %c0_i32_1 : i32, i32, i32
  }
  func.func @transform_15(%arg0: i32) -> (i32, i32, i32) {
    %c0_i32 = arith.constant 0 : i32
    %c0_i32_0 = arith.constant 0 : i32
    %c0_i32_1 = arith.constant 0 : i32
    %c0_i32_2 = arith.constant 0 : i32
    return %c0_i32, %c0_i32_0, %c0_i32_1 : i32, i32, i32
  }
  func.func @transform_16(%arg0: i32) -> (i32, i32) {
    %c0_i32 = arith.constant 0 : i32
    %c0_i32_0 = arith.constant 0 : i32
    %c0_i32_1 = arith.constant 0 : i32
    return %c0_i32, %c0_i32_0 : i32, i32
  }
  func.func @transform_17(%arg0: i32) -> (i32, i32, i32) {
    %c0_i32 = arith.constant 0 : i32
    %c0_i32_0 = arith.constant 0 : i32
    %c0_i32_1 = arith.constant 0 : i32
    %c0_i32_2 = arith.constant 0 : i32
    return %c0_i32, %c0_i32_0, %c0_i32_1 : i32, i32, i32
  }
  func.func @transform_18(%arg0: i32) -> (i32, i32, i32) {
    %c0_i32 = arith.constant 0 : i32
    %c0_i32_0 = arith.constant 0 : i32
    %c0_i32_1 = arith.constant 0 : i32
    %c0_i32_2 = arith.constant 0 : i32
    return %c0_i32, %c0_i32_0, %c0_i32_1 : i32, i32, i32
  }
  func.func @transform_19(%arg0: i32) -> (i32, i32) {
    %c0_i32 = arith.constant 0 : i32
    %c0_i32_0 = arith.constant 0 : i32
    %c0_i32_1 = arith.constant 0 : i32
    return %c0_i32, %c0_i32_0 : i32, i32
  }
  func.func @transform_20(%arg0: i32) -> (i32, i32, i32) {
    %c0_i32 = arith.constant 0 : i32
    %c0_i32_0 = arith.constant 0 : i32
    %c0_i32_1 = arith.constant 0 : i32
    return %arg0, %c0_i32, %c0_i32_0 : i32, i32, i32
  }
  func.func @transform_21(%arg0: i32) -> (i32, i32, i32) {
    %c0_i32 = arith.constant 0 : i32
    %c0_i32_0 = arith.constant 0 : i32
    %c0_i32_1 = arith.constant 0 : i32
    return %arg0, %c0_i32, %c0_i32_0 : i32, i32, i32
  }
}

</mosaic_0001>

<llo_original>
// kernel: conv_autoencoder_forward.1
$region0: #{conv_autoencoder_forward.1}
  #allocation0 [shape = 'u32[]', space=smem, size = 0x4, offset = 0x4, fixed_abs, tag = 'smem constant byte address 0x4 - core index']
  #allocation1 [shape = 'u32[144,128]{1,0:T(1,128)}', space=vmem, size = 0x12000, scoped, tag = 'internal scratch']
  %s0 = inlined_call_operand.vmem [shape: f32[2,28,28], index: 0, kind: input, shape index: {}]
  %s1 = inlined_call_operand.vmem [shape: f32[3,10,28], index: 1, kind: input, shape index: {}]
  %s2 = inlined_call_operand.vmem [shape: f32[3,28,160], index: 2, kind: input, shape index: {}]
  %s3 = inlined_call_operand.vmem [shape: f32[1,160], index: 3, kind: input, shape index: {}]
  %s4 = inlined_call_operand.vmem [shape: f32[2,5,10], index: 4, kind: input, shape index: {}]
  %s5 = inlined_call_operand.vmem [shape: f32[2,160,80], index: 5, kind: input, shape index: {}]
  %s6 = inlined_call_operand.vmem [shape: f32[3,3,5], index: 6, kind: input, shape index: {}]
  %s7 = inlined_call_operand.vmem [shape: f32[3,80,24], index: 7, kind: input, shape index: {}]
  %s8 = inlined_call_operand.vmem [shape: f32[1,24], index: 8, kind: input, shape index: {}]
  %s9 = inlined_call_operand.vmem [shape: f32[2,2,3], index: 9, kind: input, shape index: {}]
  %s10 = inlined_call_operand.vmem [shape: f32[2,24,16], index: 10, kind: input, shape index: {}]
  %s11 = inlined_call_operand.vmem [shape: f32[3,5,2], index: 11, kind: input, shape index: {}]
  %s12 = inlined_call_operand.vmem [shape: f32[3,16,80], index: 12, kind: input, shape index: {}]
  %s13 = inlined_call_operand.vmem [shape: f32[1,80], index: 13, kind: input, shape index: {}]
  %s14 = inlined_call_operand.vmem [shape: f32[5,15,5], index: 14, kind: input, shape index: {}]
  %s15 = inlined_call_operand.vmem [shape: f32[5,80,120], index: 15, kind: input, shape index: {}]
  %s16 = inlined_call_operand.vmem [shape: f32[1,120], index: 16, kind: input, shape index: {}]
  %s17 = inlined_call_operand.vmem [shape: f32[2,28,15], index: 17, kind: input, shape index: {}]
  %s18 = inlined_call_operand.vmem [shape: f32[2,120,28], index: 18, kind: input, shape index: {}]
  %s19 = inlined_call_operand.vmem [shape: f32[1,28], index: 19, kind: input, shape index: {}]
  %s20 = inlined_call_operand.vmem [shape: f32[2,2,16], index: 20, kind: output, shape index: {0}]
  %s21 = inlined_call_operand.vmem [shape: f32[2,28,28], index: 21, kind: output, shape index: {1}]
  %22 = xla_tuple %s20, %s21
  %s23 = sld [smem:[#allocation0]]
  $region121: #{conv_autoencoder_forward.1} parent=0
    _
  %s25 = ssub.s32 1, %s23
  %s26 = scalar_select 0, %s25, %s23
  loop: start=0, step=1, limit=4
  $region2: #{conv_autoencoder_forward.1} parent=0 // loop_pre_header
    _
  $region3: #{conv_autoencoder_forward.1} parent=0 // loop_header
    %s28 = sphi 0, %s32
    %p29 = scmp.ge.s32.totalorder %s28, 4
    %s38 = sphi 0, %s40
    %s41 = sphi 0, %s38
    %s42 = sphi 0, %s41
    %s58 = sphi 0, %s42
    %s62 = sphi 0, %s62
    %s64 = sphi 0, %s62
    %s65 = sphi 0, %s64
    %s79 = sphi 0, %s65
    %s83 = sphi 0, %s83
    %s85 = sphi 0, %s83
    %s86 = sphi 0, %s85
    %s100 = sphi 0, %s86
    %s104 = sphi 0, %s104
    %s106 = sphi 0, %s104
    %s107 = sphi 0, %s106
    %s121 = sphi 0, %s107
    %s125 = sphi 0, %s125
    %s127 = sphi 0, %s125
    %s128 = sphi 0, %s127
    %s142 = sphi 0, %s128
    %s146 = sphi 0, %s146
    %s148 = sphi 0, %s146
    %s149 = sphi 0, %s148
    %s163 = sphi 0, %s149
    %s167 = sphi 0, %s167
    %s169 = sphi 0, %s167
    %s170 = sphi 0, %s169
    %s184 = sphi 0, %s170
    %s188 = sphi 0, %s188
    %s190 = sphi 0, %s188
    %s191 = sphi 0, %s190
    %s205 = sphi 0, %s191
    %s209 = sphi 0, %s209
    %s211 = sphi 0, %s209
    %s212 = sphi 0, %s211
    %s226 = sphi 0, %s212
    %s230 = sphi 0, %s230
    %s232 = sphi 0, %s230
    %s233 = sphi 0, %s232
    %s247 = sphi 0, %s233
    %s251 = sphi 0, %s251
    %s253 = sphi 0, %s251
    %s254 = sphi 0, %s253
    %s268 = sphi 0, %s254
    %s272 = sphi 0, %s272
    %s274 = sphi 0, %s272
    %s275 = sphi 0, %s274
    %s289 = sphi 0, %s275
    %s293 = sphi 0, %s293
    %s295 = sphi 0, %s293
    %s296 = sphi 0, %s295
    %s310 = sphi 0, %s296
    %s314 = sphi 0, %s314
    %s316 = sphi 0, %s314
    %s317 = sphi 0, %s316
    %s331 = sphi 0, %s317
    %s335 = sphi 0, %s335
    %s337 = sphi 0, %s335
    %s338 = sphi 0, %s337
    %s352 = sphi 0, %s338
    %s356 = sphi 0, %s356
    %s358 = sphi 0, %s356
    %s359 = sphi 0, %s358
    %s373 = sphi 0, %s359
    %s377 = sphi 0, %s377
    %s379 = sphi 0, %s377
    %s380 = sphi 0, %s379
    %s394 = sphi 0, %s380
    %s398 = sphi 0, %s398
    %s400 = sphi 0, %s398
    %s401 = sphi 0, %s400
    %s415 = sphi 0, %s401
    %s419 = sphi 0, %s419
    %s421 = sphi 0, %s419
    %s422 = sphi 0, %s421
    %s436 = sphi 0, %s422
    %s440 = sphi 0, %s440
    %s442 = sphi 0, %s440
    %s443 = sphi 0, %s442
    %s457 = sphi 0, %s443
    %s463 = sphi 0, %s465
    %s466 = sphi 0, %s463
    %s467 = sphi 0, %s466
    %s483 = sphi 0, %s467
    %s489 = sphi 0, %s491
    %s492 = sphi 0, %s489
    %s493 = sphi 0, %s492
    %s509 = sphi 0, %s493
  $region4: #{conv_autoencoder_forward.1} parent=0 // loop_header_branch
    %31 = sbr.rel (%p29) target = $region8
  $region5: #{conv_autoencoder_forward.1} parent=0 // loop_body
    %s33 = ssub.s32 %s28, 1
    %s34 = ssub.s32 %s28, 2
    %s35 = sadd.s32 %s28, 1
    %s36 = ssub.s32 %s28, %s35
    %p37 = scmp.eq.s32.totalorder %s36, 0
    %s39 = sadd.s32 %s38, 1
    %s40 = scalar_select %p37, %s38, %s39
    %p43 = pneg %p37
    %p44 = scmp.eq.s32.totalorder %s28, 1
    %p45 = por %p43, %p44
    %p46 = scmp.ne.s32.totalorder %s38, %s41
    %p47 = scmp.eq.s32.totalorder %s28, 0
    %p48 = por %p46, %p47
    %p49 = scmp.ne.s32.totalorder %s38, %s41
    %p50 = scmp.eq.s32.totalorder %s33, 1
    %p51 = por %p49, %p50
    %p52 = scmp.ne.s32.totalorder %s41, %s42
    %p53 = scmp.eq.s32.totalorder %s33, 0
    %p54 = por %p52, %p53
    %p55 = scmp.ne.s32.totalorder %s41, %s42
    %p56 = scmp.eq.s32.totalorder %s34, 1
    %p57 = por %p55, %p56
    %p59 = scmp.ne.s32.totalorder %s42, %s58
    %p60 = scmp.eq.s32.totalorder %s34, 0
    %p61 = por %p59, %p60
    %s63 = sadd.s32 %s62, 1
    %p66 = scmp.eq.s32.totalorder %s28, 1
    %p67 = scmp.ne.s32.totalorder %s62, %s64
    %p68 = scmp.eq.s32.totalorder %s28, 0
    %p69 = por %p67, %p68
    %p70 = scmp.ne.s32.totalorder %s62, %s64
    %p71 = scmp.eq.s32.totalorder %s33, 1
    %p72 = por %p70, %p71
    %p73 = scmp.ne.s32.totalorder %s64, %s65
    %p74 = scmp.eq.s32.totalorder %s33, 0
    %p75 = por %p73, %p74
    %p76 = scmp.ne.s32.totalorder %s64, %s65
    %p77 = scmp.eq.s32.totalorder %s34, 1
    %p78 = por %p76, %p77
    %p80 = scmp.ne.s32.totalorder %s65, %s79
    %p81 = scmp.eq.s32.totalorder %s34, 0
    %p82 = por %p80, %p81
    %s84 = sadd.s32 %s83, 1
    %p87 = scmp.eq.s32.totalorder %s28, 1
    %p88 = scmp.ne.s32.totalorder %s83, %s85
    %p89 = scmp.eq.s32.totalorder %s28, 0
    %p90 = por %p88, %p89
    %p91 = scmp.ne.s32.totalorder %s83, %s85
    %p92 = scmp.eq.s32.totalorder %s33, 1
    %p93 = por %p91, %p92
    %p94 = scmp.ne.s32.totalorder %s85, %s86
    %p95 = scmp.eq.s32.totalorder %s33, 0
    %p96 = por %p94, %p95
    %p97 = scmp.ne.s32.totalorder %s85, %s86
    %p98 = scmp.eq.s32.totalorder %s34, 1
    %p99 = por %p97, %p98
    %p101 = scmp.ne.s32.totalorder %s86, %s100
    %p102 = scmp.eq.s32.totalorder %s34, 0
    %p103 = por %p101, %p102
    %s105 = sadd.s32 %s104, 1
    %p108 = scmp.eq.s32.totalorder %s28, 1
    %p109 = scmp.ne.s32.totalorder %s104, %s106
    %p110 = scmp.eq.s32.totalorder %s28, 0
    %p111 = por %p109, %p110
    %p112 = scmp.ne.s32.totalorder %s104, %s106
    %p113 = scmp.eq.s32.totalorder %s33, 1
    %p114 = por %p112, %p113
    %p115 = scmp.ne.s32.totalorder %s106, %s107
    %p116 = scmp.eq.s32.totalorder %s33, 0
    %p117 = por %p115, %p116
    %p118 = scmp.ne.s32.totalorder %s106, %s107
    %p119 = scmp.eq.s32.totalorder %s34, 1
    %p120 = por %p118, %p119
    %p122 = scmp.ne.s32.totalorder %s107, %s121
    %p123 = scmp.eq.s32.totalorder %s34, 0
    %p124 = por %p122, %p123
    %s126 = sadd.s32 %s125, 1
    %p129 = scmp.eq.s32.totalorder %s28, 1
    %p130 = scmp.ne.s32.totalorder %s125, %s127
    %p131 = scmp.eq.s32.totalorder %s28, 0
    %p132 = por %p130, %p131
    %p133 = scmp.ne.s32.totalorder %s125, %s127
    %p134 = scmp.eq.s32.totalorder %s33, 1
    %p135 = por %p133, %p134
    %p136 = scmp.ne.s32.totalorder %s127, %s128
    %p137 = scmp.eq.s32.totalorder %s33, 0
    %p138 = por %p136, %p137
    %p139 = scmp.ne.s32.totalorder %s127, %s128
    %p140 = scmp.eq.s32.totalorder %s34, 1
    %p141 = por %p139, %p140
    %p143 = scmp.ne.s32.totalorder %s128, %s142
    %p144 = scmp.eq.s32.totalorder %s34, 0
    %p145 = por %p143, %p144
    %s147 = sadd.s32 %s146, 1
    %p150 = scmp.eq.s32.totalorder %s28, 1
    %p151 = scmp.ne.s32.totalorder %s146, %s148
    %p152 = scmp.eq.s32.totalorder %s28, 0
    %p153 = por %p151, %p152
    %p154 = scmp.ne.s32.totalorder %s146, %s148
    %p155 = scmp.eq.s32.totalorder %s33, 1
    %p156 = por %p154, %p155
    %p157 = scmp.ne.s32.totalorder %s148, %s149
    %p158 = scmp.eq.s32.totalorder %s33, 0
    %p159 = por %p157, %p158
    %p160 = scmp.ne.s32.totalorder %s148, %s149
    %p161 = scmp.eq.s32.totalorder %s34, 1
    %p162 = por %p160, %p161
    %p164 = scmp.ne.s32.totalorder %s149, %s163
    %p165 = scmp.eq.s32.totalorder %s34, 0
    %p166 = por %p164, %p165
    %s168 = sadd.s32 %s167, 1
    %p171 = scmp.eq.s32.totalorder %s28, 1
    %p172 = scmp.ne.s32.totalorder %s167, %s169
    %p173 = scmp.eq.s32.totalorder %s28, 0
    %p174 = por %p172, %p173
    %p175 = scmp.ne.s32.totalorder %s167, %s169
    %p176 = scmp.eq.s32.totalorder %s33, 1
    %p177 = por %p175, %p176
    %p178 = scmp.ne.s32.totalorder %s169, %s170
    %p179 = scmp.eq.s32.totalorder %s33, 0
    %p180 = por %p178, %p179
    %p181 = scmp.ne.s32.totalorder %s169, %s170
    %p182 = scmp.eq.s32.totalorder %s34, 1
    %p183 = por %p181, %p182
    %p185 = scmp.ne.s32.totalorder %s170, %s184
    %p186 = scmp.eq.s32.totalorder %s34, 0
    %p187 = por %p185, %p186
    %s189 = sadd.s32 %s188, 1
    %p192 = scmp.eq.s32.totalorder %s28, 1
    %p193 = scmp.ne.s32.totalorder %s188, %s190
    %p194 = scmp.eq.s32.totalorder %s28, 0
    %p195 = por %p193, %p194
    %p196 = scmp.ne.s32.totalorder %s188, %s190
    %p197 = scmp.eq.s32.totalorder %s33, 1
    %p198 = por %p196, %p197
    %p199 = scmp.ne.s32.totalorder %s190, %s191
    %p200 = scmp.eq.s32.totalorder %s33, 0
    %p201 = por %p199, %p200
    %p202 = scmp.ne.s32.totalorder %s190, %s191
    %p203 = scmp.eq.s32.totalorder %s34, 1
    %p204 = por %p202, %p203
    %p206 = scmp.ne.s32.totalorder %s191, %s205
    %p207 = scmp.eq.s32.totalorder %s34, 0
    %p208 = por %p206, %p207
    %s210 = sadd.s32 %s209, 1
    %p213 = scmp.eq.s32.totalorder %s28, 1
    %p214 = scmp.ne.s32.totalorder %s209, %s211
    %p215 = scmp.eq.s32.totalorder %s28, 0
    %p216 = por %p214, %p215
    %p217 = scmp.ne.s32.totalorder %s209, %s211
    %p218 = scmp.eq.s32.totalorder %s33, 1
    %p219 = por %p217, %p218
    %p220 = scmp.ne.s32.totalorder %s211, %s212
    %p221 = scmp.eq.s32.totalorder %s33, 0
    %p222 = por %p220, %p221
    %p223 = scmp.ne.s32.totalorder %s211, %s212
    %p224 = scmp.eq.s32.totalorder %s34, 1
    %p225 = por %p223, %p224
    %p227 = scmp.ne.s32.totalorder %s212, %s226
    %p228 = scmp.eq.s32.totalorder %s34, 0
    %p229 = por %p227, %p228
    %s231 = sadd.s32 %s230, 1
    %p234 = scmp.eq.s32.totalorder %s28, 1
    %p235 = scmp.ne.s32.totalorder %s230, %s232
    %p236 = scmp.eq.s32.totalorder %s28, 0
    %p237 = por %p235, %p236
    %p238 = scmp.ne.s32.totalorder %s230, %s232
    %p239 = scmp.eq.s32.totalorder %s33, 1
    %p240 = por %p238, %p239
    %p241 = scmp.ne.s32.totalorder %s232, %s233
    %p242 = scmp.eq.s32.totalorder %s33, 0
    %p243 = por %p241, %p242
    %p244 = scmp.ne.s32.totalorder %s232, %s233
    %p245 = scmp.eq.s32.totalorder %s34, 1
    %p246 = por %p244, %p245
    %p248 = scmp.ne.s32.totalorder %s233, %s247
    %p249 = scmp.eq.s32.totalorder %s34, 0
    %p250 = por %p248, %p249
    %s252 = sadd.s32 %s251, 1
    %p255 = scmp.eq.s32.totalorder %s28, 1
    %p256 = scmp.ne.s32.totalorder %s251, %s253
    %p257 = scmp.eq.s32.totalorder %s28, 0
    %p258 = por %p256, %p257
    %p259 = scmp.ne.s32.totalorder %s251, %s253
    %p260 = scmp.eq.s32.totalorder %s33, 1
    %p261 = por %p259, %p260
    %p262 = scmp.ne.s32.totalorder %s253, %s254
    %p263 = scmp.eq.s32.totalorder %s33, 0
    %p264 = por %p262, %p263
    %p265 = scmp.ne.s32.totalorder %s253, %s254
    %p266 = scmp.eq.s32.totalorder %s34, 1
    %p267 = por %p265, %p266
    %p269 = scmp.ne.s32.totalorder %s254, %s268
    %p270 = scmp.eq.s32.totalorder %s34, 0
    %p271 = por %p269, %p270
    %s273 = sadd.s32 %s272, 1
    %p276 = scmp.eq.s32.totalorder %s28, 1
    %p277 = scmp.ne.s32.totalorder %s272, %s274
    %p278 = scmp.eq.s32.totalorder %s28, 0
    %p279 = por %p277, %p278
    %p280 = scmp.ne.s32.totalorder %s272, %s274
    %p281 = scmp.eq.s32.totalorder %s33, 1
    %p282 = por %p280, %p281
    %p283 = scmp.ne.s32.totalorder %s274, %s275
    %p284 = scmp.eq.s32.totalorder %s33, 0
    %p285 = por %p283, %p284
    %p286 = scmp.ne.s32.totalorder %s274, %s275
    %p287 = scmp.eq.s32.totalorder %s34, 1
    %p288 = por %p286, %p287
    %p290 = scmp.ne.s32.totalorder %s275, %s289
    %p291 = scmp.eq.s32.totalorder %s34, 0
    %p292 = por %p290, %p291
    %s294 = sadd.s32 %s293, 1
    %p297 = scmp.eq.s32.totalorder %s28, 1
    %p298 = scmp.ne.s32.totalorder %s293, %s295
    %p299 = scmp.eq.s32.totalorder %s28, 0
    %p300 = por %p298, %p299
    %p301 = scmp.ne.s32.totalorder %s293, %s295
    %p302 = scmp.eq.s32.totalorder %s33, 1
    %p303 = por %p301, %p302
    %p304 = scmp.ne.s32.totalorder %s295, %s296
    %p305 = scmp.eq.s32.totalorder %s33, 0
    %p306 = por %p304, %p305
    %p307 = scmp.ne.s32.totalorder %s295, %s296
    %p308 = scmp.eq.s32.totalorder %s34, 1
    %p309 = por %p307, %p308
    %p311 = scmp.ne.s32.totalorder %s296, %s310
    %p312 = scmp.eq.s32.totalorder %s34, 0
    %p313 = por %p311, %p312
    %s315 = sadd.s32 %s314, 1
    %p318 = scmp.eq.s32.totalorder %s28, 1
    %p319 = scmp.ne.s32.totalorder %s314, %s316
    %p320 = scmp.eq.s32.totalorder %s28, 0
    %p321 = por %p319, %p320
    %p322 = scmp.ne.s32.totalorder %s314, %s316
    %p323 = scmp.eq.s32.totalorder %s33, 1
    %p324 = por %p322, %p323
    %p325 = scmp.ne.s32.totalorder %s316, %s317
    %p326 = scmp.eq.s32.totalorder %s33, 0
    %p327 = por %p325, %p326
    %p328 = scmp.ne.s32.totalorder %s316, %s317
    %p329 = scmp.eq.s32.totalorder %s34, 1
    %p330 = por %p328, %p329
    %p332 = scmp.ne.s32.totalorder %s317, %s331
    %p333 = scmp.eq.s32.totalorder %s34, 0
    %p334 = por %p332, %p333
    %s336 = sadd.s32 %s335, 1
    %p339 = scmp.eq.s32.totalorder %s28, 1
    %p340 = scmp.ne.s32.totalorder %s335, %s337
    %p341 = scmp.eq.s32.totalorder %s28, 0
    %p342 = por %p340, %p341
    %p343 = scmp.ne.s32.totalorder %s335, %s337
    %p344 = scmp.eq.s32.totalorder %s33, 1
    %p345 = por %p343, %p344
    %p346 = scmp.ne.s32.totalorder %s337, %s338
    %p347 = scmp.eq.s32.totalorder %s33, 0
    %p348 = por %p346, %p347
    %p349 = scmp.ne.s32.totalorder %s337, %s338
    %p350 = scmp.eq.s32.totalorder %s34, 1
    %p351 = por %p349, %p350
    %p353 = scmp.ne.s32.totalorder %s338, %s352
    %p354 = scmp.eq.s32.totalorder %s34, 0
    %p355 = por %p353, %p354
    %s357 = sadd.s32 %s356, 1
    %p360 = scmp.eq.s32.totalorder %s28, 1
    %p361 = scmp.ne.s32.totalorder %s356, %s358
    %p362 = scmp.eq.s32.totalorder %s28, 0
    %p363 = por %p361, %p362
    %p364 = scmp.ne.s32.totalorder %s356, %s358
    %p365 = scmp.eq.s32.totalorder %s33, 1
    %p366 = por %p364, %p365
    %p367 = scmp.ne.s32.totalorder %s358, %s359
    %p368 = scmp.eq.s32.totalorder %s33, 0
    %p369 = por %p367, %p368
    %p370 = scmp.ne.s32.totalorder %s358, %s359
    %p371 = scmp.eq.s32.totalorder %s34, 1
    %p372 = por %p370, %p371
    %p374 = scmp.ne.s32.totalorder %s359, %s373
    %p375 = scmp.eq.s32.totalorder %s34, 0
    %p376 = por %p374, %p375
    %s378 = sadd.s32 %s377, 1
    %p381 = scmp.eq.s32.totalorder %s28, 1
    %p382 = scmp.ne.s32.totalorder %s377, %s379
    %p383 = scmp.eq.s32.totalorder %s28, 0
    %p384 = por %p382, %p383
    %p385 = scmp.ne.s32.totalorder %s377, %s379
    %p386 = scmp.eq.s32.totalorder %s33, 1
    %p387 = por %p385, %p386
    %p388 = scmp.ne.s32.totalorder %s379, %s380
    %p389 = scmp.eq.s32.totalorder %s33, 0
    %p390 = por %p388, %p389
    %p391 = scmp.ne.s32.totalorder %s379, %s380
    %p392 = scmp.eq.s32.totalorder %s34, 1
    %p393 = por %p391, %p392
    %p395 = scmp.ne.s32.totalorder %s380, %s394
    %p396 = scmp.eq.s32.totalorder %s34, 0
    %p397 = por %p395, %p396
    %s399 = sadd.s32 %s398, 1
    %p402 = scmp.eq.s32.totalorder %s28, 1
    %p403 = scmp.ne.s32.totalorder %s398, %s400
    %p404 = scmp.eq.s32.totalorder %s28, 0
    %p405 = por %p403, %p404
    %p406 = scmp.ne.s32.totalorder %s398, %s400
    %p407 = scmp.eq.s32.totalorder %s33, 1
    %p408 = por %p406, %p407
    %p409 = scmp.ne.s32.totalorder %s400, %s401
    %p410 = scmp.eq.s32.totalorder %s33, 0
    %p411 = por %p409, %p410
    %p412 = scmp.ne.s32.totalorder %s400, %s401
    %p413 = scmp.eq.s32.totalorder %s34, 1
    %p414 = por %p412, %p413
    %p416 = scmp.ne.s32.totalorder %s401, %s415
    %p417 = scmp.eq.s32.totalorder %s34, 0
    %p418 = por %p416, %p417
    %s420 = sadd.s32 %s419, 1
    %p423 = scmp.eq.s32.totalorder %s28, 1
    %p424 = scmp.ne.s32.totalorder %s419, %s421
    %p425 = scmp.eq.s32.totalorder %s28, 0
    %p426 = por %p424, %p425
    %p427 = scmp.ne.s32.totalorder %s419, %s421
    %p428 = scmp.eq.s32.totalorder %s33, 1
    %p429 = por %p427, %p428
    %p430 = scmp.ne.s32.totalorder %s421, %s422
    %p431 = scmp.eq.s32.totalorder %s33, 0
    %p432 = por %p430, %p431
    %p433 = scmp.ne.s32.totalorder %s421, %s422
    %p434 = scmp.eq.s32.totalorder %s34, 1
    %p435 = por %p433, %p434
    %p437 = scmp.ne.s32.totalorder %s422, %s436
    %p438 = scmp.eq.s32.totalorder %s34, 0
    %p439 = por %p437, %p438
    %s441 = sadd.s32 %s440, 1
    %p444 = scmp.eq.s32.totalorder %s28, 1
    %p445 = scmp.ne.s32.totalorder %s440, %s442
    %p446 = scmp.eq.s32.totalorder %s28, 0
    %p447 = por %p445, %p446
    %p448 = scmp.ne.s32.totalorder %s440, %s442
    %p449 = scmp.eq.s32.totalorder %s33, 1
    %p450 = por %p448, %p449
    %p451 = scmp.ne.s32.totalorder %s442, %s443
    %p452 = scmp.eq.s32.totalorder %s33, 0
    %p453 = por %p451, %p452
    %p454 = scmp.ne.s32.totalorder %s442, %s443
    %p455 = scmp.eq.s32.totalorder %s34, 1
    %p456 = por %p454, %p455
    %p458 = scmp.ne.s32.totalorder %s443, %s457
    %p459 = scmp.eq.s32.totalorder %s34, 0
    %p460 = por %p458, %p459
    %s461 = ssub.s32 %s28, %s35
    %p462 = scmp.eq.s32.totalorder %s461, 0
    %s464 = sadd.s32 %s463, 1
    %s465 = scalar_select %p462, %s463, %s464
    %p468 = pneg %p462
    %p469 = scmp.eq.s32.totalorder %s28, 1
    %p470 = por %p468, %p469
    %p471 = scmp.ne.s32.totalorder %s463, %s466
    %p472 = scmp.eq.s32.totalorder %s28, 0
    %p473 = por %p471, %p472
    %p474 = scmp.ne.s32.totalorder %s463, %s466
    %p475 = scmp.eq.s32.totalorder %s33, 1
    %p476 = por %p474, %p475
    %p477 = scmp.ne.s32.totalorder %s466, %s467
    %p478 = scmp.eq.s32.totalorder %s33, 0
    %p479 = por %p477, %p478
    %p480 = scmp.ne.s32.totalorder %s466, %s467
    %p481 = scmp.eq.s32.totalorder %s34, 1
    %p482 = por %p480, %p481
    %p484 = scmp.ne.s32.totalorder %s467, %s483
    %p485 = scmp.eq.s32.totalorder %s34, 0
    %p486 = por %p484, %p485
    %s487 = ssub.s32 %s28, %s35
    %p488 = scmp.eq.s32.totalorder %s487, 0
    %s490 = sadd.s32 %s489, 1
    %s491 = scalar_select %p488, %s489, %s490
    %p494 = pneg %p488
    %p495 = scmp.eq.s32.totalorder %s28, 1
    %p496 = por %p494, %p495
    %p497 = scmp.ne.s32.totalorder %s489, %s492
    %p498 = scmp.eq.s32.totalorder %s28, 0
    %p499 = por %p497, %p498
    %p500 = scmp.ne.s32.totalorder %s489, %s492
    %p501 = scmp.eq.s32.totalorder %s33, 1
    %p502 = por %p500, %p501
    %p503 = scmp.ne.s32.totalorder %s492, %s493
    %p504 = scmp.eq.s32.totalorder %s33, 0
    %p505 = por %p503, %p504
    %p506 = scmp.ne.s32.totalorder %s492, %s493
    %p507 = scmp.eq.s32.totalorder %s34, 1
    %p508 = por %p506, %p507
    %p510 = scmp.ne.s32.totalorder %s493, %s509
    %p511 = scmp.eq.s32.totalorder %s34, 0
    %p512 = por %p510, %p511
    %p513 = scmp.le.s32.totalorder 1, %s28
    %p514 = scmp.lt.s32.totalorder %s28, 3
    %p515 = pnand %p513, %p514
    %p516 = pneg %p515
    // Predicated region
    $region9: #{conv_autoencoder_forward.1} parent=5 // pred_check
      _
    $region10: #{conv_autoencoder_forward.1} parent=5 // pred_check_branch
      %518 = sbr.rel (%p515) target = $region12
    $region11: #{conv_autoencoder_forward.1} parent=5 // pred_region
      %s519 = ssub.s32 %s28, 1
      // Predicated region
      $region13: #{conv_autoencoder_forward.1} parent=11 // pred_check
        %p520 = pneg %p75
      $region14: #{conv_autoencoder_forward.1} parent=11 // pred_check_branch
        %522 = sbr.rel (%p520) target = $region16
      $region15: #{conv_autoencoder_forward.1} parent=11 // pred_region
        _
      $region16: #{conv_autoencoder_forward.1} parent=11 // pred_fallthru
        _
      // Predicated region
      $region17: #{conv_autoencoder_forward.1} parent=11 // pred_check
        %p523 = pneg %p96
      $region18: #{conv_autoencoder_forward.1} parent=11 // pred_check_branch
        %525 = sbr.rel (%p523) target = $region20
      $region19: #{conv_autoencoder_forward.1} parent=11 // pred_region
        _
      $region20: #{conv_autoencoder_forward.1} parent=11 // pred_fallthru
        _
      // Predicated region
      $region21: #{conv_autoencoder_forward.1} parent=11 // pred_check
        %p526 = pneg %p117
      $region22: #{conv_autoencoder_forward.1} parent=11 // pred_check_branch
        %528 = sbr.rel (%p526) target = $region24
      $region23: #{conv_autoencoder_forward.1} parent=11 // pred_region
        _
      $region24: #{conv_autoencoder_forward.1} parent=11 // pred_fallthru
        _
      // Predicated region
      $region25: #{conv_autoencoder_forward.1} parent=11 // pred_check
        %p529 = pneg %p138
      $region26: #{conv_autoencoder_forward.1} parent=11 // pred_check_branch
        %531 = sbr.rel (%p529) target = $region28
      $region27: #{conv_autoencoder_forward.1} parent=11 // pred_region
        _
      $region28: #{conv_autoencoder_forward.1} parent=11 // pred_fallthru
        _
      // Predicated region
      $region29: #{conv_autoencoder_forward.1} parent=11 // pred_check
        %p532 = pneg %p159
      $region30: #{conv_autoencoder_forward.1} parent=11 // pred_check_branch
        %534 = sbr.rel (%p532) target = $region32
      $region31: #{conv_autoencoder_forward.1} parent=11 // pred_region
        _
      $region32: #{conv_autoencoder_forward.1} parent=11 // pred_fallthru
        _
      // Predicated region
      $region33: #{conv_autoencoder_forward.1} parent=11 // pred_check
        %p535 = pneg %p180
      $region34: #{conv_autoencoder_forward.1} parent=11 // pred_check_branch
        %537 = sbr.rel (%p535) target = $region36
      $region35: #{conv_autoencoder_forward.1} parent=11 // pred_region
        _
      $region36: #{conv_autoencoder_forward.1} parent=11 // pred_fallthru
        _
      // Predicated region
      $region37: #{conv_autoencoder_forward.1} parent=11 // pred_check
        %p538 = pneg %p201
      $region38: #{conv_autoencoder_forward.1} parent=11 // pred_check_branch
        %540 = sbr.rel (%p538) target = $region40
      $region39: #{conv_autoencoder_forward.1} parent=11 // pred_region
        _
      $region40: #{conv_autoencoder_forward.1} parent=11 // pred_fallthru
        _
      // Predicated region
      $region41: #{conv_autoencoder_forward.1} parent=11 // pred_check
        %p541 = pneg %p222
      $region42: #{conv_autoencoder_forward.1} parent=11 // pred_check_branch
        %543 = sbr.rel (%p541) target = $region44
      $region43: #{conv_autoencoder_forward.1} parent=11 // pred_region
        _
      $region44: #{conv_autoencoder_forward.1} parent=11 // pred_fallthru
        _
      // Predicated region
      $region45: #{conv_autoencoder_forward.1} parent=11 // pred_check
        %p544 = pneg %p243
      $region46: #{conv_autoencoder_forward.1} parent=11 // pred_check_branch
        %546 = sbr.rel (%p544) target = $region48
      $region47: #{conv_autoencoder_forward.1} parent=11 // pred_region
        _
      $region48: #{conv_autoencoder_forward.1} parent=11 // pred_fallthru
        _
      // Predicated region
      $region49: #{conv_autoencoder_forward.1} parent=11 // pred_check
        %p547 = pneg %p264
      $region50: #{conv_autoencoder_forward.1} parent=11 // pred_check_branch
        %549 = sbr.rel (%p547) target = $region52
      $region51: #{conv_autoencoder_forward.1} parent=11 // pred_region
        _
      $region52: #{conv_autoencoder_forward.1} parent=11 // pred_fallthru
        _
      // Predicated region
      $region53: #{conv_autoencoder_forward.1} parent=11 // pred_check
        %p550 = pneg %p285
      $region54: #{conv_autoencoder_forward.1} parent=11 // pred_check_branch
        %552 = sbr.rel (%p550) target = $region56
      $region55: #{conv_autoencoder_forward.1} parent=11 // pred_region
        _
      $region56: #{conv_autoencoder_forward.1} parent=11 // pred_fallthru
        _
      // Predicated region
      $region57: #{conv_autoencoder_forward.1} parent=11 // pred_check
        %p553 = pneg %p306
      $region58: #{conv_autoencoder_forward.1} parent=11 // pred_check_branch
        %555 = sbr.rel (%p553) target = $region60
      $region59: #{conv_autoencoder_forward.1} parent=11 // pred_region
        _
      $region60: #{conv_autoencoder_forward.1} parent=11 // pred_fallthru
        _
      // Predicated region
      $region61: #{conv_autoencoder_forward.1} parent=11 // pred_check
        %p556 = pneg %p327
      $region62: #{conv_autoencoder_forward.1} parent=11 // pred_check_branch
        %558 = sbr.rel (%p556) target = $region64
      $region63: #{conv_autoencoder_forward.1} parent=11 // pred_region
        _
      $region64: #{conv_autoencoder_forward.1} parent=11 // pred_fallthru
        _
      // Predicated region
      $region65: #{conv_autoencoder_forward.1} parent=11 // pred_check
        %p559 = pneg %p348
      $region66: #{conv_autoencoder_forward.1} parent=11 // pred_check_branch
        %561 = sbr.rel (%p559) target = $region68
      $region67: #{conv_autoencoder_forward.1} parent=11 // pred_region
        _
      $region68: #{conv_autoencoder_forward.1} parent=11 // pred_fallthru
        _
      // Predicated region
      $region69: #{conv_autoencoder_forward.1} parent=11 // pred_check
        %p562 = pneg %p369
      $region70: #{conv_autoencoder_forward.1} parent=11 // pred_check_branch
        %564 = sbr.rel (%p562) target = $region72
      $region71: #{conv_autoencoder_forward.1} parent=11 // pred_region
        _
      $region72: #{conv_autoencoder_forward.1} parent=11 // pred_fallthru
        _
      // Predicated region
      $region73: #{conv_autoencoder_forward.1} parent=11 // pred_check
        %p565 = pneg %p390
      $region74: #{conv_autoencoder_forward.1} parent=11 // pred_check_branch
        %567 = sbr.rel (%p565) target = $region76
      $region75: #{conv_autoencoder_forward.1} parent=11 // pred_region
        _
      $region76: #{conv_autoencoder_forward.1} parent=11 // pred_fallthru
        _
      // Predicated region
      $region77: #{conv_autoencoder_forward.1} parent=11 // pred_check
        %p568 = pneg %p411
      $region78: #{conv_autoencoder_forward.1} parent=11 // pred_check_branch
        %570 = sbr.rel (%p568) target = $region80
      $region79: #{conv_autoencoder_forward.1} parent=11 // pred_region
        _
      $region80: #{conv_autoencoder_forward.1} parent=11 // pred_fallthru
        _
      // Predicated region
      $region81: #{conv_autoencoder_forward.1} parent=11 // pred_check
        %p571 = pneg %p432
      $region82: #{conv_autoencoder_forward.1} parent=11 // pred_check_branch
        %573 = sbr.rel (%p571) target = $region84
      $region83: #{conv_autoencoder_forward.1} parent=11 // pred_region
        _
      $region84: #{conv_autoencoder_forward.1} parent=11 // pred_fallthru
        _
      // Predicated region
      $region85: #{conv_autoencoder_forward.1} parent=11 // pred_check
        %p574 = pneg %p453
      $region86: #{conv_autoencoder_forward.1} parent=11 // pred_check_branch
        %576 = sbr.rel (%p574) target = $region88
      $region87: #{conv_autoencoder_forward.1} parent=11 // pred_region
        _
      $region88: #{conv_autoencoder_forward.1} parent=11 // pred_fallthru
        _
    $region12: #{conv_autoencoder_forward.1} parent=5 // pred_fallthru
      _
    %p577 = scmp.lt.s32.totalorder %s28, 2
    // Predicated region
    $region89: #{conv_autoencoder_forward.1} parent=5 // pred_check
      %p578 = pneg %p577
    $region90: #{conv_autoencoder_forward.1} parent=5 // pred_check_branch
      %580 = sbr.rel (%p578) target = $region92
    $region91: #{conv_autoencoder_forward.1} parent=5 // pred_region
      // Predicated region
      $region93: #{conv_autoencoder_forward.1} parent=91 // pred_check
        %p581 = pneg %p48
      $region94: #{conv_autoencoder_forward.1} parent=91 // pred_check_branch
        %583 = sbr.rel (%p581) target = $region96
      $region95: #{conv_autoencoder_forward.1} parent=91 // pred_region
        %p584 = scmp.lt.s32.totalorder %s28, 1
        %s585 = scalar_select %p584, %s28, 1
        %s586 = smul.addr %s585, 4
        %s587 = smul.addr %s586, 8
        %s588 = scalar_lea.vmem %s0, %s587
      $region96: #{conv_autoencoder_forward.1} parent=91 // pred_fallthru
        _
    $region92: #{conv_autoencoder_forward.1} parent=5 // pred_fallthru
      _
    %p589 = scmp.le.s32.totalorder 1, %s28
    %p590 = scmp.lt.s32.totalorder %s28, 3
    %p591 = pnand %p589, %p590
    %p592 = pneg %p591
    // Predicated region
    $region97: #{conv_autoencoder_forward.1} parent=5 // pred_check
      _
    $region98: #{conv_autoencoder_forward.1} parent=5 // pred_check_branch
      %594 = sbr.rel (%p591) target = $region100
    $region99: #{conv_autoencoder_forward.1} parent=5 // pred_region
      %s595 = ssub.s32 %s28, 1
      %p596 = scmp.lt.s32.totalorder %s33, 1
      %s597 = scalar_select %p596, %s33, 1
      %s598 = smul.addr %s597, 4
      %s599 = smul.addr %s598, 8
      %s600 = scalar_lea.vmem %s0, %s599
      %p601 = pneg %p54
      %p602 = pneg %p51
      %p603 = pneg %p75
      %p604 = pneg %p72
      %p605 = pneg %p96
      %p606 = pneg %p93
      %p607 = pneg %p117
      %p608 = pneg %p114
      %p609 = pneg %p138
      %p610 = pneg %p135
      %p611 = pneg %p159
      %p612 = pneg %p156
      %p613 = pneg %p180
      %p614 = pneg %p177
      %p615 = pneg %p201
      %p616 = pneg %p198
      %p617 = pneg %p222
      %p618 = pneg %p219
      %p619 = pneg %p243
      %p620 = pneg %p240
      %p621 = pneg %p264
      %p622 = pneg %p261
      %p623 = pneg %p285
      %p624 = pneg %p282
      %p625 = pneg %p306
      %p626 = pneg %p303
      %p627 = pneg %p327
      %p628 = pneg %p324
      %p629 = pneg %p348
      %p630 = pneg %p345
      %p631 = pneg %p369
      %p632 = pneg %p366
      %p633 = pneg %p390
      %p634 = pneg %p387
      %p635 = pneg %p411
      %p636 = pneg %p408
      %p637 = pneg %p432
      %p638 = pneg %p429
      %p639 = pneg %p453
      %p640 = pneg %p450
      %p641 = pneg %p479
      %p642 = pneg %p476
      %p643 = scmp.lt.s32.totalorder %s33, 1
      %s644 = scalar_select %p643, %s33, 1
      %s645 = smul.addr %s644, 2
      %s646 = scalar_lea.vmem %s20, %s645
      %p647 = pneg %p505
      %p648 = pneg %p502
      %p649 = scmp.lt.s32.totalorder %s33, 1
      %s650 = scalar_select %p649, %s33, 1
      %s651 = smul.addr %s650, 4
      %s652 = smul.addr %s651, 8
      %s653 = scalar_lea.vmem %s21, %s652
      %p654 = scmp.lt.s32.totalorder %s33, 1
      %s655 = scalar_select %p654, %s33, 1
      %s656 = smul.addr %s655, 4
      %s657 = smul.addr %s656, 8
      %s658 = scalar_lea.vmem %s0, %s657
      %p659 = scmp.lt.s32.totalorder %s33, 1
      %s660 = scalar_select %p659, %s33, 1
      %s661 = smul.addr %s660, 2
      %s662 = scalar_lea.vmem %s20, %s661
      %p663 = scmp.lt.s32.totalorder %s33, 1
      %s664 = scalar_select %p663, %s33, 1
      %s665 = smul.addr %s664, 4
      %s666 = smul.addr %s665, 8
      %s667 = scalar_lea.vmem %s21, %s666
      %v668 = vld [vmem:[%s658] sm:$0xff]
      %v669 = vld [vmem:[%s658 + $0x8] sm:$0xff]
      %v670 = vld [vmem:[%s658 + $0x10] sm:$0xff]
      %v671 = vld [vmem:[%s658 + $0x18] sm:$0xf]
      %v672 = vld [vmem:[%s1] sm:$0xff]
      %v673 = vld [vmem:[%s1 + $0x8] sm:$0x3]
      %vm674 = vcmask 228352
      %v676 = vsel %vm674, %v672, 0
      %v679 = vsel %vm674, %v673, 0
      %vm681 = vcmask 1043456
      %v683 = vsel %vm681, %v671, 0
      %685 = vmatprep.subr.mxu0 0.0
      %686 = vmatpush1.msra.mxu0 %v668
      %687 = vmatprep.subr.mxu0 0.0
      %688 = vmatpush1.msra.mxu0 %v669
      %689 = vmatprep.subr.mxu0 0.0
      %690 = vmatpush1.msra.mxu0 %v670
      %691 = vmatprep.subr.mxu0 0.0
      %692 = vmatpush1.msra.mxu0 %v683
      %693 = vmatprep.subr.mxu0 0.0
      %694 = vmatpush1.msra.mxu0 0.0
      %695 = vmatprep.subr.mxu0 0.0
      %696 = vmatpush1.msra.mxu0 0.0
      %697 = vmatprep.subr.mxu0 0.0
      %698 = vmatpush1.msra.mxu0 0.0
      %699 = vmatprep.subr.mxu0 0.0
      %700 = vmatpush1.msra.mxu0 0.0
      %701 = vmatprep.subr.mxu0 0.0
      %702 = vmatpush1.msra.mxu0 0.0
      %703 = vmatprep.subr.mxu0 0.0
      %704 = vmatpush1.msra.mxu0 0.0
      %705 = vmatprep.subr.mxu0 0.0
      %706 = vmatpush1.msra.mxu0 0.0
      %707 = vmatprep.subr.mxu0 0.0
      %708 = vmatpush1.msra.mxu0 0.0
      %709 = vmatprep.subr.mxu0 0.0
      %710 = vmatpush1.msra.mxu0 0.0
      %711 = vmatprep.subr.mxu0 0.0
      %712 = vmatpush1.msra.mxu0 0.0
      %713 = vmatprep.subr.mxu0 0.0
      %714 = vmatpush1.msra.mxu0 0.0
      %715 = vmatprep.subr.mxu0 0.0
      %716 = vmatpush1.msra.mxu0 0.0
      %717 = vmatprep.subr.mxu0 0.0
      %718 = vmatpush1.msra.mxu0 0.0
      %719 = vmatprep.subr.mxu0 0.0
      %720 = vmatpush1.msra.mxu0 0.0
      %721 = vmatprep.subr.mxu0 0.0
      %722 = vmatpush1.msra.mxu0 0.0
      %723 = vmatprep.subr.mxu0 0.0
      %724 = vmatpush1.msra.mxu0 0.0
      %725 = vmatprep.subr.mxu0 0.0
      %726 = vmatpush1.msra.mxu0 0.0
      %727 = vmatprep.subr.mxu0 0.0
      %728 = vmatpush1.msra.mxu0 0.0
      %729 = vmatprep.subr.mxu0 0.0
      %730 = vmatpush1.msra.mxu0 0.0
      %731 = vmatprep.subr.mxu0 0.0
      %732 = vmatpush1.msra.mxu0 0.0
      %733 = vmatprep.subr.mxu0 0.0
      %734 = vmatpush1.msra.mxu0 0.0
      %735 = vmatprep.subr.mxu0 0.0
      %736 = vmatpush1.msra.mxu0 0.0
      %737 = vmatprep.subr.mxu0 0.0
      %738 = vmatpush1.msra.mxu0 0.0
      %739 = vmatprep.subr.mxu0 0.0
      %740 = vmatpush1.msra.mxu0 0.0
      %741 = vmatprep.subr.mxu0 0.0
      %742 = vmatpush1.msra.mxu0 0.0
      %743 = vmatprep.subr.mxu0 0.0
      %744 = vmatpush1.msra.mxu0 0.0
      %745 = vmatprep.subr.mxu0 0.0
      %746 = vmatpush1.msra.mxu0 0.0
      %747 = vmatprep.subr.mxu0 0.0
      %748 = vmatpush1.msra.mxu0 0.0
      %749 = vmatprep.mubr.f32.mxu0 0.0
      %750 = vmatmul.mubr.f32.gmra.mrb[0].mxu0 %v676
      %v751 = vpop.f32.mrb[0].mxu0
      %v752 = vadd.f32 0.0, %v751
      %v753 = vpop.f32.mrb[0].mxu0
      %754 = vmatprep.mubr.f32.mxu0 0.0
      %755 = vmatmul.mubr.f32.gmra.mrb[0].mxu0 %v679
      %v756 = vpop.f32.mrb[0].mxu0
      %v757 = vadd.f32 0.0, %v756
      %v758 = vpop.f32.mrb[0].mxu0
      %759 = vdwg.mxu0
      %v760 = vld [vmem:[%s2] sm:$0xff]
      %v761 = vld [vmem:[%s2 + $0x8] sm:$0xff]
      %v762 = vld [vmem:[%s2 + $0x10] sm:$0xff]
      %v763 = vld [vmem:[%s2 + $0x18] sm:$0xff]
      %v764 = vld [vmem:[%s2 + $0x20] sm:$0xff]
      %v765 = vld [vmem:[%s2 + $0x28] sm:$0xff]
      %v766 = vld [vmem:[%s2 + $0x30] sm:$0xf]
      %v767 = vld [vmem:[%s2 + $0x38] sm:$0xf]
      %s768 = scalar_lea.vmem %s1, 16
      %v769 = vld [vmem:[%s768] sm:$0xff]
      %v770 = vld [vmem:[%s768 + $0x8] sm:$0x3]
      %v772 = vsel %vm674, %v769, 0
      %v775 = vsel %vm674, %v770, 0
      %777 = vmatprep.subr.mxu0 0.0
      %778 = vmatpush1.msra.mxu0 %v668
      %779 = vmatprep.subr.mxu0 0.0
      %780 = vmatpush1.msra.mxu0 %v669
      %781 = vmatprep.subr.mxu0 0.0
      %782 = vmatpush1.msra.mxu0 %v670
      %783 = vmatprep.subr.mxu0 0.0
      %784 = vmatpush1.msra.mxu0 %v683
      %785 = vmatprep.subr.mxu0 0.0
      %786 = vmatpush1.msra.mxu0 0.0
      %787 = vmatprep.subr.mxu0 0.0
      %788 = vmatpush1.msra.mxu0 0.0
      %789 = vmatprep.subr.mxu0 0.0
      %790 = vmatpush1.msra.mxu0 0.0
      %791 = vmatprep.subr.mxu0 0.0
      %792 = vmatpush1.msra.mxu0 0.0
      %793 = vmatprep.subr.mxu0 0.0
      %794 = vmatpush1.msra.mxu0 0.0
      %795 = vmatprep.subr.mxu0 0.0
      %796 = vmatpush1.msra.mxu0 0.0
      %797 = vmatprep.subr.mxu0 0.0
      %798 = vmatpush1.msra.mxu0 0.0
      %799 = vmatprep.subr.mxu0 0.0
      %800 = vmatpush1.msra.mxu0 0.0
      %801 = vmatprep.subr.mxu0 0.0
      %802 = vmatpush1.msra.mxu0 0.0
      %803 = vmatprep.subr.mxu0 0.0
      %804 = vmatpush1.msra.mxu0 0.0
      %805 = vmatprep.subr.mxu0 0.0
      %806 = vmatpush1.msra.mxu0 0.0
      %807 = vmatprep.subr.mxu0 0.0
      %808 = vmatpush1.msra.mxu0 0.0
      %809 = vmatprep.subr.mxu0 0.0
      %810 = vmatpush1.msra.mxu0 0.0
      %811 = vmatprep.subr.mxu0 0.0
      %812 = vmatpush1.msra.mxu0 0.0
      %813 = vmatprep.subr.mxu0 0.0
      %814 = vmatpush1.msra.mxu0 0.0
      %815 = vmatprep.subr.mxu0 0.0
      %816 = vmatpush1.msra.mxu0 0.0
      %817 = vmatprep.subr.mxu0 0.0
      %818 = vmatpush1.msra.mxu0 0.0
      %819 = vmatprep.subr.mxu0 0.0
      %820 = vmatpush1.msra.mxu0 0.0
      %821 = vmatprep.subr.mxu0 0.0
      %822 = vmatpush1.msra.mxu0 0.0
      %823 = vmatprep.subr.mxu0 0.0
      %824 = vmatpush1.msra.mxu0 0.0
      %825 = vmatprep.subr.mxu0 0.0
      %826 = vmatpush1.msra.mxu0 0.0
      %827 = vmatprep.subr.mxu0 0.0
      %828 = vmatpush1.msra.mxu0 0.0
      %829 = vmatprep.subr.mxu0 0.0
      %830 = vmatpush1.msra.mxu0 0.0
      %831 = vmatprep.subr.mxu0 0.0
      %832 = vmatpush1.msra.mxu0 0.0
      %833 = vmatprep.subr.mxu0 0.0
      %834 = vmatpush1.msra.mxu0 0.0
      %835 = vmatprep.subr.mxu0 0.0
      %836 = vmatpush1.msra.mxu0 0.0
      %837 = vmatprep.subr.mxu0 0.0
      %838 = vmatpush1.msra.mxu0 0.0
      %839 = vmatprep.subr.mxu0 0.0
      %840 = vmatpush1.msra.mxu0 0.0
      %841 = vmatprep.mubr.f32.mxu0 0.0
      %842 = vmatmul.mubr.f32.gmra.mrb[0].mxu0 %v772
      %v843 = vpop.f32.mrb[0].mxu0
      %v844 = vadd.f32 0.0, %v843
      %v845 = vpop.f32.mrb[0].mxu0
      %846 = vmatprep.mubr.f32.mxu0 0.0
      %847 = vmatmul.mubr.f32.gmra.mrb[0].mxu0 %v775
      %v848 = vpop.f32.mrb[0].mxu0
      %v849 = vadd.f32 0.0, %v848
      %v850 = vpop.f32.mrb[0].mxu0
      %851 = vdwg.mxu0
      %s852 = scalar_lea.vmem %s2, 64
      %v853 = vld [vmem:[%s852] sm:$0xff]
      %v854 = vld [vmem:[%s852 + $0x8] sm:$0xff]
      %v855 = vld [vmem:[%s852 + $0x10] sm:$0xff]
      %v856 = vld [vmem:[%s852 + $0x18] sm:$0xff]
      %v857 = vld [vmem:[%s852 + $0x20] sm:$0xff]
      %v858 = vld [vmem:[%s852 + $0x28] sm:$0xff]
      %v859 = vld [vmem:[%s852 + $0x30] sm:$0xf]
      %v860 = vld [vmem:[%s852 + $0x38] sm:$0xf]
      %v862 = vsel %vm674, %v844, 0
      %v865 = vsel %vm674, %v849, 0
      %v868 = vsel %vm681, %v859, 0
      %v871 = vsel %vm681, %v860, 0
      %873 = vmatprep.subr.mxu0 %v854
      %874 = vmatpush1.msra.mxu0 %v853
      %875 = vmatprep.subr.mxu0 %v856
      %876 = vmatpush1.msra.mxu0 %v855
      %877 = vmatprep.subr.mxu0 %v858
      %878 = vmatpush1.msra.mxu0 %v857
      %879 = vmatprep.subr.mxu0 %v871
      %880 = vmatpush1.msra.mxu0 %v868
      %881 = vmatprep.subr.mxu0 0.0
      %882 = vmatpush1.msra.mxu0 0.0
      %883 = vmatprep.subr.mxu0 0.0
      %884 = vmatpush1.msra.mxu0 0.0
      %885 = vmatprep.subr.mxu0 0.0
      %886 = vmatpush1.msra.mxu0 0.0
      %887 = vmatprep.subr.mxu0 0.0
      %888 = vmatpush1.msra.mxu0 0.0
      %889 = vmatprep.subr.mxu0 0.0
      %890 = vmatpush1.msra.mxu0 0.0
      %891 = vmatprep.subr.mxu0 0.0
      %892 = vmatpush1.msra.mxu0 0.0
      %893 = vmatprep.subr.mxu0 0.0
      %894 = vmatpush1.msra.mxu0 0.0
      %895 = vmatprep.subr.mxu0 0.0
      %896 = vmatpush1.msra.mxu0 0.0
      %897 = vmatprep.subr.mxu0 0.0
      %898 = vmatpush1.msra.mxu0 0.0
      %899 = vmatprep.subr.mxu0 0.0
      %900 = vmatpush1.msra.mxu0 0.0
      %901 = vmatprep.subr.mxu0 0.0
      %902 = vmatpush1.msra.mxu0 0.0
      %903 = vmatprep.subr.mxu0 0.0
      %904 = vmatpush1.msra.mxu0 0.0
      %905 = vmatprep.subr.mxu0 0.0
      %906 = vmatpush1.msra.mxu0 0.0
      %907 = vmatprep.subr.mxu0 0.0
      %908 = vmatpush1.msra.mxu0 0.0
      %909 = vmatprep.subr.mxu0 0.0
      %910 = vmatpush1.msra.mxu0 0.0
      %911 = vmatprep.subr.mxu0 0.0
      %912 = vmatpush1.msra.mxu0 0.0
      %913 = vmatprep.subr.mxu0 0.0
      %914 = vmatpush1.msra.mxu0 0.0
      %915 = vmatprep.subr.mxu0 0.0
      %916 = vmatpush1.msra.mxu0 0.0
      %917 = vmatprep.subr.mxu0 0.0
      %918 = vmatpush1.msra.mxu0 0.0
      %919 = vmatprep.subr.mxu0 0.0
      %920 = vmatpush1.msra.mxu0 0.0
      %921 = vmatprep.subr.mxu0 0.0
      %922 = vmatpush1.msra.mxu0 0.0
      %923 = vmatprep.subr.mxu0 0.0
      %924 = vmatpush1.msra.mxu0 0.0
      %925 = vmatprep.subr.mxu0 0.0
      %926 = vmatpush1.msra.mxu0 0.0
      %927 = vmatprep.subr.mxu0 0.0
      %928 = vmatpush1.msra.mxu0 0.0
      %929 = vmatprep.subr.mxu0 0.0
      %930 = vmatpush1.msra.mxu0 0.0
      %931 = vmatprep.subr.mxu0 0.0
      %932 = vmatpush1.msra.mxu0 0.0
      %933 = vmatprep.subr.mxu0 0.0
      %934 = vmatpush1.msra.mxu0 0.0
      %935 = vmatprep.subr.mxu0 0.0
      %936 = vmatpush1.msra.mxu0 0.0
      %937 = vmatprep.mubr.f32.mxu0 0.0
      %938 = vmatmul.mubr.f32.gmra.mrb[0].mxu0 %v862
      %v939 = vpop.f32.mrb[0].mxu0
      %v940 = vadd.f32 0.0, %v939
      %v941 = vpop.f32.mrb[0].mxu0
      %v942 = vadd.f32 0.0, %v941
      %943 = vmatprep.mubr.f32.mxu0 0.0
      %944 = vmatmul.mubr.f32.gmra.mrb[0].mxu0 %v865
      %v945 = vpop.f32.mrb[0].mxu0
      %v946 = vadd.f32 0.0, %v945
      %v947 = vpop.f32.mrb[0].mxu0
      %v948 = vadd.f32 0.0, %v947
      %949 = vdwg.mxu0
      %v951 = vsel %vm674, %v752, 0
      %v954 = vsel %vm674, %v757, 0
      %v957 = vsel %vm681, %v766, 0
      %v960 = vsel %vm681, %v767, 0
      %962 = vmatprep.subr.mxu0 %v761
      %963 = vmatpush1.msra.mxu0 %v760
      %964 = vmatprep.subr.mxu0 %v763
      %965 = vmatpush1.msra.mxu0 %v762
      %966 = vmatprep.subr.mxu0 %v765
      %967 = vmatpush1.msra.mxu0 %v764
      %968 = vmatprep.subr.mxu0 %v960
      %969 = vmatpush1.msra.mxu0 %v957
      %970 = vmatprep.subr.mxu0 0.0
      %971 = vmatpush1.msra.mxu0 0.0
      %972 = vmatprep.subr.mxu0 0.0
      %973 = vmatpush1.msra.mxu0 0.0
      %974 = vmatprep.subr.mxu0 0.0
      %975 = vmatpush1.msra.mxu0 0.0
      %976 = vmatprep.subr.mxu0 0.0
      %977 = vmatpush1.msra.mxu0 0.0
      %978 = vmatprep.subr.mxu0 0.0
      %979 = vmatpush1.msra.mxu0 0.0
      %980 = vmatprep.subr.mxu0 0.0
      %981 = vmatpush1.msra.mxu0 0.0
      %982 = vmatprep.subr.mxu0 0.0
      %983 = vmatpush1.msra.mxu0 0.0
      %984 = vmatprep.subr.mxu0 0.0
      %985 = vmatpush1.msra.mxu0 0.0
      %986 = vmatprep.subr.mxu0 0.0
      %987 = vmatpush1.msra.mxu0 0.0
      %988 = vmatprep.subr.mxu0 0.0
      %989 = vmatpush1.msra.mxu0 0.0
      %990 = vmatprep.subr.mxu0 0.0
      %991 = vmatpush1.msra.mxu0 0.0
      %992 = vmatprep.subr.mxu0 0.0
      %993 = vmatpush1.msra.mxu0 0.0
      %994 = vmatprep.subr.mxu0 0.0
      %995 = vmatpush1.msra.mxu0 0.0
      %996 = vmatprep.subr.mxu0 0.0
      %997 = vmatpush1.msra.mxu0 0.0
      %998 = vmatprep.subr.mxu0 0.0
      %999 = vmatpush1.msra.mxu0 0.0
      %1000 = vmatprep.subr.mxu0 0.0
      %1001 = vmatpush1.msra.mxu0 0.0
      %1002 = vmatprep.subr.mxu0 0.0
      %1003 = vmatpush1.msra.mxu0 0.0
      %1004 = vmatprep.subr.mxu0 0.0
      %1005 = vmatpush1.msra.mxu0 0.0
      %1006 = vmatprep.subr.mxu0 0.0
      %1007 = vmatpush1.msra.mxu0 0.0
      %1008 = vmatprep.subr.mxu0 0.0
      %1009 = vmatpush1.msra.mxu0 0.0
      %1010 = vmatprep.subr.mxu0 0.0
      %1011 = vmatpush1.msra.mxu0 0.0
      %1012 = vmatprep.subr.mxu0 0.0
      %1013 = vmatpush1.msra.mxu0 0.0
      %1014 = vmatprep.subr.mxu0 0.0
      %1015 = vmatpush1.msra.mxu0 0.0
      %1016 = vmatprep.subr.mxu0 0.0
      %1017 = vmatpush1.msra.mxu0 0.0
      %1018 = vmatprep.subr.mxu0 0.0
      %1019 = vmatpush1.msra.mxu0 0.0
      %1020 = vmatprep.subr.mxu0 0.0
      %1021 = vmatpush1.msra.mxu0 0.0
      %1022 = vmatprep.subr.mxu0 0.0
      %1023 = vmatpush1.msra.mxu0 0.0
      %1024 = vmatprep.subr.mxu0 0.0
      %1025 = vmatpush1.msra.mxu0 0.0
      %1026 = vmatprep.mubr.f32.mxu0 0.0
      %1027 = vmatmul.mubr.f32.gmra.mrb[0].mxu0 %v951
      %v1028 = vpop.f32.mrb[0].mxu0
      %v1029 = vadd.f32 %v940, %v1028
      %v1030 = vpop.f32.mrb[0].mxu0
      %v1031 = vadd.f32 %v942, %v1030
      %1032 = vmatprep.mubr.f32.mxu0 0.0
      %1033 = vmatmul.mubr.f32.gmra.mrb[0].mxu0 %v954
      %v1034 = vpop.f32.mrb[0].mxu0
      %v1035 = vadd.f32 %v946, %v1034
      %v1036 = vpop.f32.mrb[0].mxu0
      %v1037 = vadd.f32 %v948, %v1036
      %1038 = vdwg.mxu0
      %s1039 = scalar_lea.vmem %s1, 32
      %v1040 = vld [vmem:[%s1039] sm:$0xff]
      %v1041 = vld [vmem:[%s1039 + $0x8] sm:$0x3]
      %v1043 = vsel %vm674, %v1040, 0
      %v1046 = vsel %vm674, %v1041, 0
      %1048 = vmatprep.subr.mxu0 0.0
      %1049 = vmatpush1.msra.mxu0 %v668
      %1050 = vmatprep.subr.mxu0 0.0
      %1051 = vmatpush1.msra.mxu0 %v669
      %1052 = vmatprep.subr.mxu0 0.0
      %1053 = vmatpush1.msra.mxu0 %v670
      %1054 = vmatprep.subr.mxu0 0.0
      %1055 = vmatpush1.msra.mxu0 %v683
      %1056 = vmatprep.subr.mxu0 0.0
      %1057 = vmatpush1.msra.mxu0 0.0
      %1058 = vmatprep.subr.mxu0 0.0
      %1059 = vmatpush1.msra.mxu0 0.0
      %1060 = vmatprep.subr.mxu0 0.0
      %1061 = vmatpush1.msra.mxu0 0.0
      %1062 = vmatprep.subr.mxu0 0.0
      %1063 = vmatpush1.msra.mxu0 0.0
      %1064 = vmatprep.subr.mxu0 0.0
      %1065 = vmatpush1.msra.mxu0 0.0
      %1066 = vmatprep.subr.mxu0 0.0
      %1067 = vmatpush1.msra.mxu0 0.0
      %1068 = vmatprep.subr.mxu0 0.0
      %1069 = vmatpush1.msra.mxu0 0.0
      %1070 = vmatprep.subr.mxu0 0.0
      %1071 = vmatpush1.msra.mxu0 0.0
      %1072 = vmatprep.subr.mxu0 0.0
      %1073 = vmatpush1.msra.mxu0 0.0
      %1074 = vmatprep.subr.mxu0 0.0
      %1075 = vmatpush1.msra.mxu0 0.0
      %1076 = vmatprep.subr.mxu0 0.0
      %1077 = vmatpush1.msra.mxu0 0.0
      %1078 = vmatprep.subr.mxu0 0.0
      %1079 = vmatpush1.msra.mxu0 0.0
      %1080 = vmatprep.subr.mxu0 0.0
      %1081 = vmatpush1.msra.mxu0 0.0
      %1082 = vmatprep.subr.mxu0 0.0
      %1083 = vmatpush1.msra.mxu0 0.0
      %1084 = vmatprep.subr.mxu0 0.0
      %1085 = vmatpush1.msra.mxu0 0.0
      %1086 = vmatprep.subr.mxu0 0.0
      %1087 = vmatpush1.msra.mxu0 0.0
      %1088 = vmatprep.subr.mxu0 0.0
      %1089 = vmatpush1.msra.mxu0 0.0
      %1090 = vmatprep.subr.mxu0 0.0
      %1091 = vmatpush1.msra.mxu0 0.0
      %1092 = vmatprep.subr.mxu0 0.0
      %1093 = vmatpush1.msra.mxu0 0.0
      %1094 = vmatprep.subr.mxu0 0.0
      %1095 = vmatpush1.msra.mxu0 0.0
      %1096 = vmatprep.subr.mxu0 0.0
      %1097 = vmatpush1.msra.mxu0 0.0
      %1098 = vmatprep.subr.mxu0 0.0
      %1099 = vmatpush1.msra.mxu0 0.0
      %1100 = vmatprep.subr.mxu0 0.0
      %1101 = vmatpush1.msra.mxu0 0.0
      %1102 = vmatprep.subr.mxu0 0.0
      %1103 = vmatpush1.msra.mxu0 0.0
      %1104 = vmatprep.subr.mxu0 0.0
      %1105 = vmatpush1.msra.mxu0 0.0
      %1106 = vmatprep.subr.mxu0 0.0
      %1107 = vmatpush1.msra.mxu0 0.0
      %1108 = vmatprep.subr.mxu0 0.0
      %1109 = vmatpush1.msra.mxu0 0.0
      %1110 = vmatprep.subr.mxu0 0.0
      %1111 = vmatpush1.msra.mxu0 0.0
      %1112 = vmatprep.mubr.f32.mxu0 0.0
      %1113 = vmatmul.mubr.f32.gmra.mrb[0].mxu0 %v1043
      %v1114 = vpop.f32.mrb[0].mxu0
      %v1115 = vadd.f32 0.0, %v1114
      %v1116 = vpop.f32.mrb[0].mxu0
      %1117 = vmatprep.mubr.f32.mxu0 0.0
      %1118 = vmatmul.mubr.f32.gmra.mrb[0].mxu0 %v1046
      %v1119 = vpop.f32.mrb[0].mxu0
      %v1120 = vadd.f32 0.0, %v1119
      %v1121 = vpop.f32.mrb[0].mxu0
      %1122 = vdwg.mxu0
      %s1123 = scalar_lea.vmem %s2, 128
      %v1124 = vld [vmem:[%s1123] sm:$0xff]
      %v1125 = vld [vmem:[%s1123 + $0x8] sm:$0xff]
      %v1126 = vld [vmem:[%s1123 + $0x10] sm:$0xff]
      %v1127 = vld [vmem:[%s1123 + $0x18] sm:$0xff]
      %v1128 = vld [vmem:[%s1123 + $0x20] sm:$0xff]
      %v1129 = vld [vmem:[%s1123 + $0x28] sm:$0xff]
      %v1130 = vld [vmem:[%s1123 + $0x30] sm:$0xf]
      %v1131 = vld [vmem:[%s1123 + $0x38] sm:$0xf]
      %v1133 = vsel %vm674, %v1115, 0
      %v1136 = vsel %vm674, %v1120, 0
      %v1139 = vsel %vm681, %v1130, 0
      %v1142 = vsel %vm681, %v1131, 0
      %1144 = vmatprep.subr.mxu0 %v1125
      %1145 = vmatpush1.msra.mxu0 %v1124
      %1146 = vmatprep.subr.mxu0 %v1127
      %1147 = vmatpush1.msra.mxu0 %v1126
      %1148 = vmatprep.subr.mxu0 %v1129
      %1149 = vmatpush1.msra.mxu0 %v1128
      %1150 = vmatprep.subr.mxu0 %v1142
      %1151 = vmatpush1.msra.mxu0 %v1139
      %1152 = vmatprep.subr.mxu0 0.0
      %1153 = vmatpush1.msra.mxu0 0.0
      %1154 = vmatprep.subr.mxu0 0.0
      %1155 = vmatpush1.msra.mxu0 0.0
      %1156 = vmatprep.subr.mxu0 0.0
      %1157 = vmatpush1.msra.mxu0 0.0
      %1158 = vmatprep.subr.mxu0 0.0
      %1159 = vmatpush1.msra.mxu0 0.0
      %1160 = vmatprep.subr.mxu0 0.0
      %1161 = vmatpush1.msra.mxu0 0.0
      %1162 = vmatprep.subr.mxu0 0.0
      %1163 = vmatpush1.msra.mxu0 0.0
      %1164 = vmatprep.subr.mxu0 0.0
      %1165 = vmatpush1.msra.mxu0 0.0
      %1166 = vmatprep.subr.mxu0 0.0
      %1167 = vmatpush1.msra.mxu0 0.0
      %1168 = vmatprep.subr.mxu0 0.0
      %1169 = vmatpush1.msra.mxu0 0.0
      %1170 = vmatprep.subr.mxu0 0.0
      %1171 = vmatpush1.msra.mxu0 0.0
      %1172 = vmatprep.subr.mxu0 0.0
      %1173 = vmatpush1.msra.mxu0 0.0
      %1174 = vmatprep.subr.mxu0 0.0
      %1175 = vmatpush1.msra.mxu0 0.0
      %1176 = vmatprep.subr.mxu0 0.0
      %1177 = vmatpush1.msra.mxu0 0.0
      %1178 = vmatprep.subr.mxu0 0.0
      %1179 = vmatpush1.msra.mxu0 0.0
      %1180 = vmatprep.subr.mxu0 0.0
      %1181 = vmatpush1.msra.mxu0 0.0
      %1182 = vmatprep.subr.mxu0 0.0
      %1183 = vmatpush1.msra.mxu0 0.0
      %1184 = vmatprep.subr.mxu0 0.0
      %1185 = vmatpush1.msra.mxu0 0.0
      %1186 = vmatprep.subr.mxu0 0.0
      %1187 = vmatpush1.msra.mxu0 0.0
      %1188 = vmatprep.subr.mxu0 0.0
      %1189 = vmatpush1.msra.mxu0 0.0
      %1190 = vmatprep.subr.mxu0 0.0
      %1191 = vmatpush1.msra.mxu0 0.0
      %1192 = vmatprep.subr.mxu0 0.0
      %1193 = vmatpush1.msra.mxu0 0.0
      %1194 = vmatprep.subr.mxu0 0.0
      %1195 = vmatpush1.msra.mxu0 0.0
      %1196 = vmatprep.subr.mxu0 0.0
      %1197 = vmatpush1.msra.mxu0 0.0
      %1198 = vmatprep.subr.mxu0 0.0
      %1199 = vmatpush1.msra.mxu0 0.0
      %1200 = vmatprep.subr.mxu0 0.0
      %1201 = vmatpush1.msra.mxu0 0.0
      %1202 = vmatprep.subr.mxu0 0.0
      %1203 = vmatpush1.msra.mxu0 0.0
      %1204 = vmatprep.subr.mxu0 0.0
      %1205 = vmatpush1.msra.mxu0 0.0
      %1206 = vmatprep.subr.mxu0 0.0
      %1207 = vmatpush1.msra.mxu0 0.0
      %1208 = vmatprep.mubr.f32.mxu0 0.0
      %1209 = vmatmul.mubr.f32.gmra.mrb[0].mxu0 %v1133
      %v1210 = vpop.f32.mrb[0].mxu0
      %v1211 = vadd.f32 0.0, %v1210
      %v1212 = vpop.f32.mrb[0].mxu0
      %v1213 = vadd.f32 0.0, %v1212
      %1214 = vmatprep.mubr.f32.mxu0 0.0
      %1215 = vmatmul.mubr.f32.gmra.mrb[0].mxu0 %v1136
      %v1216 = vpop.f32.mrb[0].mxu0
      %v1217 = vadd.f32 0.0, %v1216
      %v1218 = vpop.f32.mrb[0].mxu0
      %v1219 = vadd.f32 0.0, %v1218
      %1220 = vdwg.mxu0
      %v1221 = vadd.f32 %v1029, %v1211
      %v1222 = vadd.f32 %v1031, %v1213
      %v1223 = vadd.f32 %v1035, %v1217
      %v1224 = vadd.f32 %v1037, %v1219
      %v1225 = vld [vmem:[%s3] sm:$0x3]
      %v1227 = vlaneseq
      %v1228 = vshrl.u32 %v1227, 7
      %v1229 = vsub.s32 0, %v1228
      %v1230 = vrot.slane %v1225, %v1229
      %v1231 = vlaneseq
      %v1232 = vshrl.u32 %v1231, 7
      %v1233 = vsub.s32 1, %v1232
      %v1234 = vrot.slane %v1225, %v1233
      %v1237 = vadd.f32 %v1221, %v1230
      %v1238 = vadd.f32 %v1222, %v1234
      %v1239 = vadd.f32 %v1223, %v1230
      %v1240 = vadd.f32 %v1224, %v1234
      %v1241 = vmax.f32 %v1237, 0.0
      %v1242 = vmax.f32 %v1238, 0.0
      %v1243 = vmax.f32 %v1239, 0.0
      %v1244 = vmax.f32 %v1240, 0.0
      %v1245 = vld [vmem:[%s4] sm:$0x1f]
      %vm1246 = vcmask 80896
      %v1248 = vsel %vm1246, %v1245, 0
      %vm1250 = vcmask 1041408
      %v1252 = vsel %vm1250, %v1243, 0
      %v1255 = vsel %vm1250, %v1244, 0
      %1257 = vmatprep.subr.mxu0 %v1242
      %1258 = vmatpush1.msra.mxu0 %v1241
      %1259 = vmatprep.subr.mxu0 %v1255
      %1260 = vmatpush1.msra.mxu0 %v1252
      %1261 = vmatprep.subr.mxu0 0.0
      %1262 = vmatpush1.msra.mxu0 0.0
      %1263 = vmatprep.subr.mxu0 0.0
      %1264 = vmatpush1.msra.mxu0 0.0
      %1265 = vmatprep.subr.mxu0 0.0
      %1266 = vmatpush1.msra.mxu0 0.0
      %1267 = vmatprep.subr.mxu0 0.0
      %1268 = vmatpush1.msra.mxu0 0.0
      %1269 = vmatprep.subr.mxu0 0.0
      %1270 = vmatpush1.msra.mxu0 0.0
      %1271 = vmatprep.subr.mxu0 0.0
      %1272 = vmatpush1.msra.mxu0 0.0
      %1273 = vmatprep.subr.mxu0 0.0
      %1274 = vmatpush1.msra.mxu0 0.0
      %1275 = vmatprep.subr.mxu0 0.0
      %1276 = vmatpush1.msra.mxu0 0.0
      %1277 = vmatprep.subr.mxu0 0.0
      %1278 = vmatpush1.msra.mxu0 0.0
      %1279 = vmatprep.subr.mxu0 0.0
      %1280 = vmatpush1.msra.mxu0 0.0
      %1281 = vmatprep.subr.mxu0 0.0
      %1282 = vmatpush1.msra.mxu0 0.0
      %1283 = vmatprep.subr.mxu0 0.0
      %1284 = vmatpush1.msra.mxu0 0.0
      %1285 = vmatprep.subr.mxu0 0.0
      %1286 = vmatpush1.msra.mxu0 0.0
      %1287 = vmatprep.subr.mxu0 0.0
      %1288 = vmatpush1.msra.mxu0 0.0
      %1289 = vmatprep.subr.mxu0 0.0
      %1290 = vmatpush1.msra.mxu0 0.0
      %1291 = vmatprep.subr.mxu0 0.0
      %1292 = vmatpush1.msra.mxu0 0.0
      %1293 = vmatprep.subr.mxu0 0.0
      %1294 = vmatpush1.msra.mxu0 0.0
      %1295 = vmatprep.subr.mxu0 0.0
      %1296 = vmatpush1.msra.mxu0 0.0
      %1297 = vmatprep.subr.mxu0 0.0
      %1298 = vmatpush1.msra.mxu0 0.0
      %1299 = vmatprep.subr.mxu0 0.0
      %1300 = vmatpush1.msra.mxu0 0.0
      %1301 = vmatprep.subr.mxu0 0.0
      %1302 = vmatpush1.msra.mxu0 0.0
      %1303 = vmatprep.subr.mxu0 0.0
      %1304 = vmatpush1.msra.mxu0 0.0
      %1305 = vmatprep.subr.mxu0 0.0
      %1306 = vmatpush1.msra.mxu0 0.0
      %1307 = vmatprep.subr.mxu0 0.0
      %1308 = vmatpush1.msra.mxu0 0.0
      %1309 = vmatprep.subr.mxu0 0.0
      %1310 = vmatpush1.msra.mxu0 0.0
      %1311 = vmatprep.subr.mxu0 0.0
      %1312 = vmatpush1.msra.mxu0 0.0
      %1313 = vmatprep.subr.mxu0 0.0
      %1314 = vmatpush1.msra.mxu0 0.0
      %1315 = vmatprep.subr.mxu0 0.0
      %1316 = vmatpush1.msra.mxu0 0.0
      %1317 = vmatprep.subr.mxu0 0.0
      %1318 = vmatpush1.msra.mxu0 0.0
      %1319 = vmatprep.subr.mxu0 0.0
      %1320 = vmatpush1.msra.mxu0 0.0
      %1321 = vmatprep.mubr.f32.mxu0 0.0
      %1322 = vmatmul.mubr.f32.gmra.mrb[0].mxu0 %v1248
      %v1323 = vpop.f32.mrb[0].mxu0
      %v1324 = vadd.f32 0.0, %v1323
      %v1325 = vpop.f32.mrb[0].mxu0
      %v1326 = vadd.f32 0.0, %v1325
      %1327 = vdwg.mxu0
      %v1328 = vld [vmem:[%s5] sm:$0xff]
      %v1329 = vld [vmem:[%s5 + $0x8] sm:$0xff]
      %v1330 = vld [vmem:[%s5 + $0x10] sm:$0xff]
      %v1331 = vld [vmem:[%s5 + $0x18] sm:$0xff]
      %v1332 = vld [vmem:[%s5 + $0x20] sm:$0xff]
      %v1333 = vld [vmem:[%s5 + $0x28] sm:$0xff]
      %v1334 = vld [vmem:[%s5 + $0x30] sm:$0xff]
      %v1335 = vld [vmem:[%s5 + $0x38] sm:$0xff]
      %v1336 = vld [vmem:[%s5 + $0x40] sm:$0xff]
      %v1337 = vld [vmem:[%s5 + $0x48] sm:$0xff]
      %v1338 = vld [vmem:[%s5 + $0x50] sm:$0xff]
      %v1339 = vld [vmem:[%s5 + $0x58] sm:$0xff]
      %v1340 = vld [vmem:[%s5 + $0x60] sm:$0xff]
      %v1341 = vld [vmem:[%s5 + $0x68] sm:$0xff]
      %v1342 = vld [vmem:[%s5 + $0x70] sm:$0xff]
      %v1343 = vld [vmem:[%s5 + $0x78] sm:$0xff]
      %v1344 = vld [vmem:[%s5 + $0x80] sm:$0xff]
      %v1345 = vld [vmem:[%s5 + $0x88] sm:$0xff]
      %v1346 = vld [vmem:[%s5 + $0x90] sm:$0xff]
      %v1347 = vld [vmem:[%s5 + $0x98] sm:$0xff]
      %vm1348 = vcmask 261120
      %v1350 = vsel %vm1348, %v1326, 0
      %1352 = vmatprep.subr.mxu0 0.0
      %1353 = vmatpush1.msra.mxu0 %v1328
      %1354 = vmatprep.subr.mxu0 0.0
      %1355 = vmatpush1.msra.mxu0 %v1329
      %1356 = vmatprep.subr.mxu0 0.0
      %1357 = vmatpush1.msra.mxu0 %v1330
      %1358 = vmatprep.subr.mxu0 0.0
      %1359 = vmatpush1.msra.mxu0 %v1331
      %1360 = vmatprep.subr.mxu0 0.0
      %1361 = vmatpush1.msra.mxu0 %v1332
      %1362 = vmatprep.subr.mxu0 0.0
      %1363 = vmatpush1.msra.mxu0 %v1333
      %1364 = vmatprep.subr.mxu0 0.0
      %1365 = vmatpush1.msra.mxu0 %v1334
      %1366 = vmatprep.subr.mxu0 0.0
      %1367 = vmatpush1.msra.mxu0 %v1335
      %1368 = vmatprep.subr.mxu0 0.0
      %1369 = vmatpush1.msra.mxu0 %v1336
      %1370 = vmatprep.subr.mxu0 0.0
      %1371 = vmatpush1.msra.mxu0 %v1337
      %1372 = vmatprep.subr.mxu0 0.0
      %1373 = vmatpush1.msra.mxu0 %v1338
      %1374 = vmatprep.subr.mxu0 0.0
      %1375 = vmatpush1.msra.mxu0 %v1339
      %1376 = vmatprep.subr.mxu0 0.0
      %1377 = vmatpush1.msra.mxu0 %v1340
      %1378 = vmatprep.subr.mxu0 0.0
      %1379 = vmatpush1.msra.mxu0 %v1341
      %1380 = vmatprep.subr.mxu0 0.0
      %1381 = vmatpush1.msra.mxu0 %v1342
      %1382 = vmatprep.subr.mxu0 0.0
      %1383 = vmatpush1.msra.mxu0 %v1343
      %1384 = vmatprep.subr.mxu0 0.0
      %1385 = vmatpush1.msra.mxu0 %v1344
      %1386 = vmatprep.subr.mxu0 0.0
      %1387 = vmatpush1.msra.mxu0 %v1345
      %1388 = vmatprep.subr.mxu0 0.0
      %1389 = vmatpush1.msra.mxu0 %v1346
      %1390 = vmatprep.subr.mxu0 0.0
      %1391 = vmatpush1.msra.mxu0 %v1347
      %1392 = vmatprep.subr.mxu0 0.0
      %1393 = vmatpush1.msra.mxu0 0.0
      %1394 = vmatprep.subr.mxu0 0.0
      %1395 = vmatpush1.msra.mxu0 0.0
      %1396 = vmatprep.subr.mxu0 0.0
      %1397 = vmatpush1.msra.mxu0 0.0
      %1398 = vmatprep.subr.mxu0 0.0
      %1399 = vmatpush1.msra.mxu0 0.0
      %1400 = vmatprep.subr.mxu0 0.0
      %1401 = vmatpush1.msra.mxu0 0.0
      %1402 = vmatprep.subr.mxu0 0.0
      %1403 = vmatpush1.msra.mxu0 0.0
      %1404 = vmatprep.subr.mxu0 0.0
      %1405 = vmatpush1.msra.mxu0 0.0
      %1406 = vmatprep.subr.mxu0 0.0
      %1407 = vmatpush1.msra.mxu0 0.0
      %1408 = vmatprep.subr.mxu0 0.0
      %1409 = vmatpush1.msra.mxu0 0.0
      %1410 = vmatprep.subr.mxu0 0.0
      %1411 = vmatpush1.msra.mxu0 0.0
      %1412 = vmatprep.subr.mxu0 0.0
      %1413 = vmatpush1.msra.mxu0 0.0
      %1414 = vmatprep.subr.mxu0 0.0
      %1415 = vmatpush1.msra.mxu0 0.0
      %1416 = vmatprep.mubr.f32.mxu0 %v1350
      %1417 = vmatmul.mubr.f32.gmra.mrb[0].mxu0 %v1324
      %v1418 = vpop.f32.mrb[0].mxu0
      %v1419 = vadd.f32 0.0, %v1418
      %v1420 = vpop.f32.mrb[0].mxu0
      %1421 = vdwg.mxu0
      %s1422 = scalar_lea.vmem %s5, 160
      %v1423 = vld [vmem:[%s1422] sm:$0xff]
      %v1424 = vld [vmem:[%s1422 + $0x8] sm:$0xff]
      %v1425 = vld [vmem:[%s1422 + $0x10] sm:$0xff]
      %v1426 = vld [vmem:[%s1422 + $0x18] sm:$0xff]
      %v1427 = vld [vmem:[%s1422 + $0x20] sm:$0xff]
      %v1428 = vld [vmem:[%s1422 + $0x28] sm:$0xff]
      %v1429 = vld [vmem:[%s1422 + $0x30] sm:$0xff]
      %v1430 = vld [vmem:[%s1422 + $0x38] sm:$0xff]
      %v1431 = vld [vmem:[%s1422 + $0x40] sm:$0xff]
      %v1432 = vld [vmem:[%s1422 + $0x48] sm:$0xff]
      %v1433 = vld [vmem:[%s1422 + $0x50] sm:$0xff]
      %v1434 = vld [vmem:[%s1422 + $0x58] sm:$0xff]
      %v1435 = vld [vmem:[%s1422 + $0x60] sm:$0xff]
      %v1436 = vld [vmem:[%s1422 + $0x68] sm:$0xff]
      %v1437 = vld [vmem:[%s1422 + $0x70] sm:$0xff]
      %v1438 = vld [vmem:[%s1422 + $0x78] sm:$0xff]
      %v1439 = vld [vmem:[%s1422 + $0x80] sm:$0xff]
      %v1440 = vld [vmem:[%s1422 + $0x88] sm:$0xff]
      %v1441 = vld [vmem:[%s1422 + $0x90] sm:$0xff]
      %v1442 = vld [vmem:[%s1422 + $0x98] sm:$0xff]
      %1443 = vmatprep.subr.mxu0 0.0
      %1444 = vmatpush1.msra.mxu0 %v1423
      %1445 = vmatprep.subr.mxu0 0.0
      %1446 = vmatpush1.msra.mxu0 %v1424
      %1447 = vmatprep.subr.mxu0 0.0
      %1448 = vmatpush1.msra.mxu0 %v1425
      %1449 = vmatprep.subr.mxu0 0.0
      %1450 = vmatpush1.msra.mxu0 %v1426
      %1451 = vmatprep.subr.mxu0 0.0
      %1452 = vmatpush1.msra.mxu0 %v1427
      %1453 = vmatprep.subr.mxu0 0.0
      %1454 = vmatpush1.msra.mxu0 %v1428
      %1455 = vmatprep.subr.mxu0 0.0
      %1456 = vmatpush1.msra.mxu0 %v1429
      %1457 = vmatprep.subr.mxu0 0.0
      %1458 = vmatpush1.msra.mxu0 %v1430
      %1459 = vmatprep.subr.mxu0 0.0
      %1460 = vmatpush1.msra.mxu0 %v1431
      %1461 = vmatprep.subr.mxu0 0.0
      %1462 = vmatpush1.msra.mxu0 %v1432
      %1463 = vmatprep.subr.mxu0 0.0
      %1464 = vmatpush1.msra.mxu0 %v1433
      %1465 = vmatprep.subr.mxu0 0.0
      %1466 = vmatpush1.msra.mxu0 %v1434
      %1467 = vmatprep.subr.mxu0 0.0
      %1468 = vmatpush1.msra.mxu0 %v1435
      %1469 = vmatprep.subr.mxu0 0.0
      %1470 = vmatpush1.msra.mxu0 %v1436
      %1471 = vmatprep.subr.mxu0 0.0
      %1472 = vmatpush1.msra.mxu0 %v1437
      %1473 = vmatprep.subr.mxu0 0.0
      %1474 = vmatpush1.msra.mxu0 %v1438
      %1475 = vmatprep.subr.mxu0 0.0
      %1476 = vmatpush1.msra.mxu0 %v1439
      %1477 = vmatprep.subr.mxu0 0.0
      %1478 = vmatpush1.msra.mxu0 %v1440
      %1479 = vmatprep.subr.mxu0 0.0
      %1480 = vmatpush1.msra.mxu0 %v1441
      %1481 = vmatprep.subr.mxu0 0.0
      %1482 = vmatpush1.msra.mxu0 %v1442
      %1483 = vmatprep.subr.mxu0 0.0
      %1484 = vmatpush1.msra.mxu0 0.0
      %1485 = vmatprep.subr.mxu0 0.0
      %1486 = vmatpush1.msra.mxu0 0.0
      %1487 = vmatprep.subr.mxu0 0.0
      %1488 = vmatpush1.msra.mxu0 0.0
      %1489 = vmatprep.subr.mxu0 0.0
      %1490 = vmatpush1.msra.mxu0 0.0
      %1491 = vmatprep.subr.mxu0 0.0
      %1492 = vmatpush1.msra.mxu0 0.0
      %1493 = vmatprep.subr.mxu0 0.0
      %1494 = vmatpush1.msra.mxu0 0.0
      %1495 = vmatprep.subr.mxu0 0.0
      %1496 = vmatpush1.msra.mxu0 0.0
      %1497 = vmatprep.subr.mxu0 0.0
      %1498 = vmatpush1.msra.mxu0 0.0
      %1499 = vmatprep.subr.mxu0 0.0
      %1500 = vmatpush1.msra.mxu0 0.0
      %1501 = vmatprep.subr.mxu0 0.0
      %1502 = vmatpush1.msra.mxu0 0.0
      %1503 = vmatprep.subr.mxu0 0.0
      %1504 = vmatpush1.msra.mxu0 0.0
      %1505 = vmatprep.subr.mxu0 0.0
      %1506 = vmatpush1.msra.mxu0 0.0
      %1507 = vmatprep.mubr.f32.mxu0 %v1350
      %1508 = vmatmul.mubr.f32.gmra.mrb[0].mxu0 %v1324
      %v1509 = vpop.f32.mrb[0].mxu0
      %v1510 = vadd.f32 0.0, %v1509
      %v1511 = vpop.f32.mrb[0].mxu0
      %1512 = vdwg.mxu0
      %v1513 = vmax.f32 %v1419, %v1510
      %s1514 = scalar_lea.vmem %s4, 8
      %v1515 = vld [vmem:[%s1514] sm:$0x1f]
      %v1517 = vsel %vm1246, %v1515, 0
      %1519 = vmatprep.subr.mxu0 %v1242
      %1520 = vmatpush1.msra.mxu0 %v1241
      %1521 = vmatprep.subr.mxu0 %v1255
      %1522 = vmatpush1.msra.mxu0 %v1252
      %1523 = vmatprep.subr.mxu0 0.0
      %1524 = vmatpush1.msra.mxu0 0.0
      %1525 = vmatprep.subr.mxu0 0.0
      %1526 = vmatpush1.msra.mxu0 0.0
      %1527 = vmatprep.subr.mxu0 0.0
      %1528 = vmatpush1.msra.mxu0 0.0
      %1529 = vmatprep.subr.mxu0 0.0
      %1530 = vmatpush1.msra.mxu0 0.0
      %1531 = vmatprep.subr.mxu0 0.0
      %1532 = vmatpush1.msra.mxu0 0.0
      %1533 = vmatprep.subr.mxu0 0.0
      %1534 = vmatpush1.msra.mxu0 0.0
      %1535 = vmatprep.subr.mxu0 0.0
      %1536 = vmatpush1.msra.mxu0 0.0
      %1537 = vmatprep.subr.mxu0 0.0
      %1538 = vmatpush1.msra.mxu0 0.0
      %1539 = vmatprep.subr.mxu0 0.0
      %1540 = vmatpush1.msra.mxu0 0.0
      %1541 = vmatprep.subr.mxu0 0.0
      %1542 = vmatpush1.msra.mxu0 0.0
      %1543 = vmatprep.subr.mxu0 0.0
      %1544 = vmatpush1.msra.mxu0 0.0
      %1545 = vmatprep.subr.mxu0 0.0
      %1546 = vmatpush1.msra.mxu0 0.0
      %1547 = vmatprep.subr.mxu0 0.0
      %1548 = vmatpush1.msra.mxu0 0.0
      %1549 = vmatprep.subr.mxu0 0.0
      %1550 = vmatpush1.msra.mxu0 0.0
      %1551 = vmatprep.subr.mxu0 0.0
      %1552 = vmatpush1.msra.mxu0 0.0
      %1553 = vmatprep.subr.mxu0 0.0
      %1554 = vmatpush1.msra.mxu0 0.0
      %1555 = vmatprep.subr.mxu0 0.0
      %1556 = vmatpush1.msra.mxu0 0.0
      %1557 = vmatprep.subr.mxu0 0.0
      %1558 = vmatpush1.msra.mxu0 0.0
      %1559 = vmatprep.subr.mxu0 0.0
      %1560 = vmatpush1.msra.mxu0 0.0
      %1561 = vmatprep.subr.mxu0 0.0
      %1562 = vmatpush1.msra.mxu0 0.0
      %1563 = vmatprep.subr.mxu0 0.0
      %1564 = vmatpush1.msra.mxu0 0.0
      %1565 = vmatprep.subr.mxu0 0.0
      %1566 = vmatpush1.msra.mxu0 0.0
      %1567 = vmatprep.subr.mxu0 0.0
      %1568 = vmatpush1.msra.mxu0 0.0
      %1569 = vmatprep.subr.mxu0 0.0
      %1570 = vmatpush1.msra.mxu0 0.0
      %1571 = vmatprep.subr.mxu0 0.0
      %1572 = vmatpush1.msra.mxu0 0.0
      %1573 = vmatprep.subr.mxu0 0.0
      %1574 = vmatpush1.msra.mxu0 0.0
      %1575 = vmatprep.subr.mxu0 0.0
      %1576 = vmatpush1.msra.mxu0 0.0
      %1577 = vmatprep.subr.mxu0 0.0
      %1578 = vmatpush1.msra.mxu0 0.0
      %1579 = vmatprep.subr.mxu0 0.0
      %1580 = vmatpush1.msra.mxu0 0.0
      %1581 = vmatprep.subr.mxu0 0.0
      %1582 = vmatpush1.msra.mxu0 0.0
      %1583 = vmatprep.mubr.f32.mxu0 0.0
      %1584 = vmatmul.mubr.f32.gmra.mrb[0].mxu0 %v1517
      %v1585 = vpop.f32.mrb[0].mxu0
      %v1586 = vadd.f32 0.0, %v1585
      %v1587 = vpop.f32.mrb[0].mxu0
      %v1588 = vadd.f32 0.0, %v1587
      %1589 = vdwg.mxu0
      %v1591 = vsel %vm1348, %v1588, 0
      %1593 = vmatprep.subr.mxu0 0.0
      %1594 = vmatpush1.msra.mxu0 %v1328
      %1595 = vmatprep.subr.mxu0 0.0
      %1596 = vmatpush1.msra.mxu0 %v1329
      %1597 = vmatprep.subr.mxu0 0.0
      %1598 = vmatpush1.msra.mxu0 %v1330
      %1599 = vmatprep.subr.mxu0 0.0
      %1600 = vmatpush1.msra.mxu0 %v1331
      %1601 = vmatprep.subr.mxu0 0.0
      %1602 = vmatpush1.msra.mxu0 %v1332
      %1603 = vmatprep.subr.mxu0 0.0
      %1604 = vmatpush1.msra.mxu0 %v1333
      %1605 = vmatprep.subr.mxu0 0.0
      %1606 = vmatpush1.msra.mxu0 %v1334
      %1607 = vmatprep.subr.mxu0 0.0
      %1608 = vmatpush1.msra.mxu0 %v1335
      %1609 = vmatprep.subr.mxu0 0.0
      %1610 = vmatpush1.msra.mxu0 %v1336
      %1611 = vmatprep.subr.mxu0 0.0
      %1612 = vmatpush1.msra.mxu0 %v1337
      %1613 = vmatprep.subr.mxu0 0.0
      %1614 = vmatpush1.msra.mxu0 %v1338
      %1615 = vmatprep.subr.mxu0 0.0
      %1616 = vmatpush1.msra.mxu0 %v1339
      %1617 = vmatprep.subr.mxu0 0.0
      %1618 = vmatpush1.msra.mxu0 %v1340
      %1619 = vmatprep.subr.mxu0 0.0
      %1620 = vmatpush1.msra.mxu0 %v1341
      %1621 = vmatprep.subr.mxu0 0.0
      %1622 = vmatpush1.msra.mxu0 %v1342
      %1623 = vmatprep.subr.mxu0 0.0
      %1624 = vmatpush1.msra.mxu0 %v1343
      %1625 = vmatprep.subr.mxu0 0.0
      %1626 = vmatpush1.msra.mxu0 %v1344
      %1627 = vmatprep.subr.mxu0 0.0
      %1628 = vmatpush1.msra.mxu0 %v1345
      %1629 = vmatprep.subr.mxu0 0.0
      %1630 = vmatpush1.msra.mxu0 %v1346
      %1631 = vmatprep.subr.mxu0 0.0
      %1632 = vmatpush1.msra.mxu0 %v1347
      %1633 = vmatprep.subr.mxu0 0.0
      %1634 = vmatpush1.msra.mxu0 0.0
      %1635 = vmatprep.subr.mxu0 0.0
      %1636 = vmatpush1.msra.mxu0 0.0
      %1637 = vmatprep.subr.mxu0 0.0
      %1638 = vmatpush1.msra.mxu0 0.0
      %1639 = vmatprep.subr.mxu0 0.0
      %1640 = vmatpush1.msra.mxu0 0.0
      %1641 = vmatprep.subr.mxu0 0.0
      %1642 = vmatpush1.msra.mxu0 0.0
      %1643 = vmatprep.subr.mxu0 0.0
      %1644 = vmatpush1.msra.mxu0 0.0
      %1645 = vmatprep.subr.mxu0 0.0
      %1646 = vmatpush1.msra.mxu0 0.0
      %1647 = vmatprep.subr.mxu0 0.0
      %1648 = vmatpush1.msra.mxu0 0.0
      %1649 = vmatprep.subr.mxu0 0.0
      %1650 = vmatpush1.msra.mxu0 0.0
      %1651 = vmatprep.subr.mxu0 0.0
      %1652 = vmatpush1.msra.mxu0 0.0
      %1653 = vmatprep.subr.mxu0 0.0
      %1654 = vmatpush1.msra.mxu0 0.0
      %1655 = vmatprep.subr.mxu0 0.0
      %1656 = vmatpush1.msra.mxu0 0.0
      %1657 = vmatprep.mubr.f32.mxu0 %v1591
      %1658 = vmatmul.mubr.f32.gmra.mrb[0].mxu0 %v1586
      %v1659 = vpop.f32.mrb[0].mxu0
      %v1660 = vadd.f32 0.0, %v1659
      %v1661 = vpop.f32.mrb[0].mxu0
      %1662 = vdwg.mxu0
      %v1663 = vmax.f32 %v1513, %v1660
      %1664 = vmatprep.subr.mxu0 0.0
      %1665 = vmatpush1.msra.mxu0 %v1423
      %1666 = vmatprep.subr.mxu0 0.0
      %1667 = vmatpush1.msra.mxu0 %v1424
      %1668 = vmatprep.subr.mxu0 0.0
      %1669 = vmatpush1.msra.mxu0 %v1425
      %1670 = vmatprep.subr.mxu0 0.0
      %1671 = vmatpush1.msra.mxu0 %v1426
      %1672 = vmatprep.subr.mxu0 0.0
      %1673 = vmatpush1.msra.mxu0 %v1427
      %1674 = vmatprep.subr.mxu0 0.0
      %1675 = vmatpush1.msra.mxu0 %v1428
      %1676 = vmatprep.subr.mxu0 0.0
      %1677 = vmatpush1.msra.mxu0 %v1429
      %1678 = vmatprep.subr.mxu0 0.0
      %1679 = vmatpush1.msra.mxu0 %v1430
      %1680 = vmatprep.subr.mxu0 0.0
      %1681 = vmatpush1.msra.mxu0 %v1431
      %1682 = vmatprep.subr.mxu0 0.0
      %1683 = vmatpush1.msra.mxu0 %v1432
      %1684 = vmatprep.subr.mxu0 0.0
      %1685 = vmatpush1.msra.mxu0 %v1433
      %1686 = vmatprep.subr.mxu0 0.0
      %1687 = vmatpush1.msra.mxu0 %v1434
      %1688 = vmatprep.subr.mxu0 0.0
      %1689 = vmatpush1.msra.mxu0 %v1435
      %1690 = vmatprep.subr.mxu0 0.0
      %1691 = vmatpush1.msra.mxu0 %v1436
      %1692 = vmatprep.subr.mxu0 0.0
      %1693 = vmatpush1.msra.mxu0 %v1437
      %1694 = vmatprep.subr.mxu0 0.0
      %1695 = vmatpush1.msra.mxu0 %v1438
      %1696 = vmatprep.subr.mxu0 0.0
      %1697 = vmatpush1.msra.mxu0 %v1439
      %1698 = vmatprep.subr.mxu0 0.0
      %1699 = vmatpush1.msra.mxu0 %v1440
      %1700 = vmatprep.subr.mxu0 0.0
      %1701 = vmatpush1.msra.mxu0 %v1441
      %1702 = vmatprep.subr.mxu0 0.0
      %1703 = vmatpush1.msra.mxu0 %v1442
      %1704 = vmatprep.subr.mxu0 0.0
      %1705 = vmatpush1.msra.mxu0 0.0
      %1706 = vmatprep.subr.mxu0 0.0
      %1707 = vmatpush1.msra.mxu0 0.0
      %1708 = vmatprep.subr.mxu0 0.0
      %1709 = vmatpush1.msra.mxu0 0.0
      %1710 = vmatprep.subr.mxu0 0.0
      %1711 = vmatpush1.msra.mxu0 0.0
      %1712 = vmatprep.subr.mxu0 0.0
      %1713 = vmatpush1.msra.mxu0 0.0
      %1714 = vmatprep.subr.mxu0 0.0
      %1715 = vmatpush1.msra.mxu0 0.0
      %1716 = vmatprep.subr.mxu0 0.0
      %1717 = vmatpush1.msra.mxu0 0.0
      %1718 = vmatprep.subr.mxu0 0.0
      %1719 = vmatpush1.msra.mxu0 0.0
      %1720 = vmatprep.subr.mxu0 0.0
      %1721 = vmatpush1.msra.mxu0 0.0
      %1722 = vmatprep.subr.mxu0 0.0
      %1723 = vmatpush1.msra.mxu0 0.0
      %1724 = vmatprep.subr.mxu0 0.0
      %1725 = vmatpush1.msra.mxu0 0.0
      %1726 = vmatprep.subr.mxu0 0.0
      %1727 = vmatpush1.msra.mxu0 0.0
      %1728 = vmatprep.mubr.f32.mxu0 %v1591
      %1729 = vmatmul.mubr.f32.gmra.mrb[0].mxu0 %v1586
      %v1730 = vpop.f32.mrb[0].mxu0
      %v1731 = vadd.f32 0.0, %v1730
      %v1732 = vpop.f32.mrb[0].mxu0
      %1733 = vdwg.mxu0
      %v1734 = vmax.f32 %v1663, %v1731
      %v1735 = vld [vmem:[%s6] sm:$0x7]
      %vm1736 = vcmask 39936
      %v1738 = vsel %vm1736, %v1735, 0
      %vm1740 = vcmask 1044480
      %v1742 = vsel %vm1740, %v1734, 0
      %1744 = vmatprep.subr.mxu0 0.0
      %1745 = vmatpush1.msra.mxu0 %v1742
      %1746 = vmatprep.subr.mxu0 0.0
      %1747 = vmatpush1.msra.mxu0 0.0
      %1748 = vmatprep.subr.mxu0 0.0
      %1749 = vmatpush1.msra.mxu0 0.0
      %1750 = vmatprep.subr.mxu0 0.0
      %1751 = vmatpush1.msra.mxu0 0.0
      %1752 = vmatprep.subr.mxu0 0.0
      %1753 = vmatpush1.msra.mxu0 0.0
      %1754 = vmatprep.subr.mxu0 0.0
      %1755 = vmatpush1.msra.mxu0 0.0
      %1756 = vmatprep.subr.mxu0 0.0
      %1757 = vmatpush1.msra.mxu0 0.0
      %1758 = vmatprep.subr.mxu0 0.0
      %1759 = vmatpush1.msra.mxu0 0.0
      %1760 = vmatprep.subr.mxu0 0.0
      %1761 = vmatpush1.msra.mxu0 0.0
      %1762 = vmatprep.subr.mxu0 0.0
      %1763 = vmatpush1.msra.mxu0 0.0
      %1764 = vmatprep.subr.mxu0 0.0
      %1765 = vmatpush1.msra.mxu0 0.0
      %1766 = vmatprep.subr.mxu0 0.0
      %1767 = vmatpush1.msra.mxu0 0.0
      %1768 = vmatprep.subr.mxu0 0.0
      %1769 = vmatpush1.msra.mxu0 0.0
      %1770 = vmatprep.subr.mxu0 0.0
      %1771 = vmatpush1.msra.mxu0 0.0
      %1772 = vmatprep.subr.mxu0 0.0
      %1773 = vmatpush1.msra.mxu0 0.0
      %1774 = vmatprep.subr.mxu0 0.0
      %1775 = vmatpush1.msra.mxu0 0.0
      %1776 = vmatprep.subr.mxu0 0.0
      %1777 = vmatpush1.msra.mxu0 0.0
      %1778 = vmatprep.subr.mxu0 0.0
      %1779 = vmatpush1.msra.mxu0 0.0
      %1780 = vmatprep.subr.mxu0 0.0
      %1781 = vmatpush1.msra.mxu0 0.0
      %1782 = vmatprep.subr.mxu0 0.0
      %1783 = vmatpush1.msra.mxu0 0.0
      %1784 = vmatprep.subr.mxu0 0.0
      %1785 = vmatpush1.msra.mxu0 0.0
      %1786 = vmatprep.subr.mxu0 0.0
      %1787 = vmatpush1.msra.mxu0 0.0
      %1788 = vmatprep.subr.mxu0 0.0
      %1789 = vmatpush1.msra.mxu0 0.0
      %1790 = vmatprep.subr.mxu0 0.0
      %1791 = vmatpush1.msra.mxu0 0.0
      %1792 = vmatprep.subr.mxu0 0.0
      %1793 = vmatpush1.msra.mxu0 0.0
      %1794 = vmatprep.subr.mxu0 0.0
      %1795 = vmatpush1.msra.mxu0 0.0
      %1796 = vmatprep.subr.mxu0 0.0
      %1797 = vmatpush1.msra.mxu0 0.0
      %1798 = vmatprep.subr.mxu0 0.0
      %1799 = vmatpush1.msra.mxu0 0.0
      %1800 = vmatprep.subr.mxu0 0.0
      %1801 = vmatpush1.msra.mxu0 0.0
      %1802 = vmatprep.subr.mxu0 0.0
      %1803 = vmatpush1.msra.mxu0 0.0
      %1804 = vmatprep.subr.mxu0 0.0
      %1805 = vmatpush1.msra.mxu0 0.0
      %1806 = vmatprep.subr.mxu0 0.0
      %1807 = vmatpush1.msra.mxu0 0.0
      %1808 = vmatprep.mubr.f32.mxu0 0.0
      %1809 = vmatmul.mubr.f32.gmra.mrb[0].mxu0 %v1738
      %v1810 = vpop.f32.mrb[0].mxu0
      %v1811 = vadd.f32 0.0, %v1810
      %v1812 = vpop.f32.mrb[0].mxu0
      %1813 = vdwg.mxu0
      %v1814 = vld [vmem:[%s7] sm:$0xff]
      %v1815 = vld [vmem:[%s7 + $0x8] sm:$0xff]
      %v1816 = vld [vmem:[%s7 + $0x10] sm:$0xff]
      %v1817 = vld [vmem:[%s7 + $0x18] sm:$0xff]
      %v1818 = vld [vmem:[%s7 + $0x20] sm:$0xff]
      %v1819 = vld [vmem:[%s7 + $0x28] sm:$0xff]
      %v1820 = vld [vmem:[%s7 + $0x30] sm:$0xff]
      %v1821 = vld [vmem:[%s7 + $0x38] sm:$0xff]
      %v1822 = vld [vmem:[%s7 + $0x40] sm:$0xff]
      %v1823 = vld [vmem:[%s7 + $0x48] sm:$0xff]
      %s1824 = scalar_lea.vmem %s6, 4
      %v1825 = vld [vmem:[%s1824] sm:$0x7]
      %v1827 = vsel %vm1736, %v1825, 0
      %1829 = vmatprep.subr.mxu0 0.0
      %1830 = vmatpush1.msra.mxu0 %v1742
      %1831 = vmatprep.subr.mxu0 0.0
      %1832 = vmatpush1.msra.mxu0 0.0
      %1833 = vmatprep.subr.mxu0 0.0
      %1834 = vmatpush1.msra.mxu0 0.0
      %1835 = vmatprep.subr.mxu0 0.0
      %1836 = vmatpush1.msra.mxu0 0.0
      %1837 = vmatprep.subr.mxu0 0.0
      %1838 = vmatpush1.msra.mxu0 0.0
      %1839 = vmatprep.subr.mxu0 0.0
      %1840 = vmatpush1.msra.mxu0 0.0
      %1841 = vmatprep.subr.mxu0 0.0
      %1842 = vmatpush1.msra.mxu0 0.0
      %1843 = vmatprep.subr.mxu0 0.0
      %1844 = vmatpush1.msra.mxu0 0.0
      %1845 = vmatprep.subr.mxu0 0.0
      %1846 = vmatpush1.msra.mxu0 0.0
      %1847 = vmatprep.subr.mxu0 0.0
      %1848 = vmatpush1.msra.mxu0 0.0
      %1849 = vmatprep.subr.mxu0 0.0
      %1850 = vmatpush1.msra.mxu0 0.0
      %1851 = vmatprep.subr.mxu0 0.0
      %1852 = vmatpush1.msra.mxu0 0.0
      %1853 = vmatprep.subr.mxu0 0.0
      %1854 = vmatpush1.msra.mxu0 0.0
      %1855 = vmatprep.subr.mxu0 0.0
      %1856 = vmatpush1.msra.mxu0 0.0
      %1857 = vmatprep.subr.mxu0 0.0
      %1858 = vmatpush1.msra.mxu0 0.0
      %1859 = vmatprep.subr.mxu0 0.0
      %1860 = vmatpush1.msra.mxu0 0.0
      %1861 = vmatprep.subr.mxu0 0.0
      %1862 = vmatpush1.msra.mxu0 0.0
      %1863 = vmatprep.subr.mxu0 0.0
      %1864 = vmatpush1.msra.mxu0 0.0
      %1865 = vmatprep.subr.mxu0 0.0
      %1866 = vmatpush1.msra.mxu0 0.0
      %1867 = vmatprep.subr.mxu0 0.0
      %1868 = vmatpush1.msra.mxu0 0.0
      %1869 = vmatprep.subr.mxu0 0.0
      %1870 = vmatpush1.msra.mxu0 0.0
      %1871 = vmatprep.subr.mxu0 0.0
      %1872 = vmatpush1.msra.mxu0 0.0
      %1873 = vmatprep.subr.mxu0 0.0
      %1874 = vmatpush1.msra.mxu0 0.0
      %1875 = vmatprep.subr.mxu0 0.0
      %1876 = vmatpush1.msra.mxu0 0.0
      %1877 = vmatprep.subr.mxu0 0.0
      %1878 = vmatpush1.msra.mxu0 0.0
      %1879 = vmatprep.subr.mxu0 0.0
      %1880 = vmatpush1.msra.mxu0 0.0
      %1881 = vmatprep.subr.mxu0 0.0
      %1882 = vmatpush1.msra.mxu0 0.0
      %1883 = vmatprep.subr.mxu0 0.0
      %1884 = vmatpush1.msra.mxu0 0.0
      %1885 = vmatprep.subr.mxu0 0.0
      %1886 = vmatpush1.msra.mxu0 0.0
      %1887 = vmatprep.subr.mxu0 0.0
      %1888 = vmatpush1.msra.mxu0 0.0
      %1889 = vmatprep.subr.mxu0 0.0
      %1890 = vmatpush1.msra.mxu0 0.0
      %1891 = vmatprep.subr.mxu0 0.0
      %1892 = vmatpush1.msra.mxu0 0.0
      %1893 = vmatprep.mubr.f32.mxu0 0.0
      %1894 = vmatmul.mubr.f32.gmra.mrb[0].mxu0 %v1827
      %v1895 = vpop.f32.mrb[0].mxu0
      %v1896 = vadd.f32 0.0, %v1895
      %v1897 = vpop.f32.mrb[0].mxu0
      %1898 = vdwg.mxu0
      %s1899 = scalar_lea.vmem %s7, 80
      %v1900 = vld [vmem:[%s1899] sm:$0xff]
      %v1901 = vld [vmem:[%s1899 + $0x8] sm:$0xff]
      %v1902 = vld [vmem:[%s1899 + $0x10] sm:$0xff]
      %v1903 = vld [vmem:[%s1899 + $0x18] sm:$0xff]
      %v1904 = vld [vmem:[%s1899 + $0x20] sm:$0xff]
      %v1905 = vld [vmem:[%s1899 + $0x28] sm:$0xff]
      %v1906 = vld [vmem:[%s1899 + $0x30] sm:$0xff]
      %v1907 = vld [vmem:[%s1899 + $0x38] sm:$0xff]
      %v1908 = vld [vmem:[%s1899 + $0x40] sm:$0xff]
      %v1909 = vld [vmem:[%s1899 + $0x48] sm:$0xff]
      %vm1910 = vcmask 654336
      %v1912 = vsel %vm1910, %v1896, 0
      %1914 = vmatprep.subr.mxu0 0.0
      %1915 = vmatpush1.msra.mxu0 %v1900
      %1916 = vmatprep.subr.mxu0 0.0
      %1917 = vmatpush1.msra.mxu0 %v1901
      %1918 = vmatprep.subr.mxu0 0.0
      %1919 = vmatpush1.msra.mxu0 %v1902
      %1920 = vmatprep.subr.mxu0 0.0
      %1921 = vmatpush1.msra.mxu0 %v1903
      %1922 = vmatprep.subr.mxu0 0.0
      %1923 = vmatpush1.msra.mxu0 %v1904
      %1924 = vmatprep.subr.mxu0 0.0
      %1925 = vmatpush1.msra.mxu0 %v1905
      %1926 = vmatprep.subr.mxu0 0.0
      %1927 = vmatpush1.msra.mxu0 %v1906
      %1928 = vmatprep.subr.mxu0 0.0
      %1929 = vmatpush1.msra.mxu0 %v1907
      %1930 = vmatprep.subr.mxu0 0.0
      %1931 = vmatpush1.msra.mxu0 %v1908
      %1932 = vmatprep.subr.mxu0 0.0
      %1933 = vmatpush1.msra.mxu0 %v1909
      %1934 = vmatprep.subr.mxu0 0.0
      %1935 = vmatpush1.msra.mxu0 0.0
      %1936 = vmatprep.subr.mxu0 0.0
      %1937 = vmatpush1.msra.mxu0 0.0
      %1938 = vmatprep.subr.mxu0 0.0
      %1939 = vmatpush1.msra.mxu0 0.0
      %1940 = vmatprep.subr.mxu0 0.0
      %1941 = vmatpush1.msra.mxu0 0.0
      %1942 = vmatprep.subr.mxu0 0.0
      %1943 = vmatpush1.msra.mxu0 0.0
      %1944 = vmatprep.subr.mxu0 0.0
      %1945 = vmatpush1.msra.mxu0 0.0
      %1946 = vmatprep.subr.mxu0 0.0
      %1947 = vmatpush1.msra.mxu0 0.0
      %1948 = vmatprep.subr.mxu0 0.0
      %1949 = vmatpush1.msra.mxu0 0.0
      %1950 = vmatprep.subr.mxu0 0.0
      %1951 = vmatpush1.msra.mxu0 0.0
      %1952 = vmatprep.subr.mxu0 0.0
      %1953 = vmatpush1.msra.mxu0 0.0
      %1954 = vmatprep.subr.mxu0 0.0
      %1955 = vmatpush1.msra.mxu0 0.0
      %1956 = vmatprep.subr.mxu0 0.0
      %1957 = vmatpush1.msra.mxu0 0.0
      %1958 = vmatprep.subr.mxu0 0.0
      %1959 = vmatpush1.msra.mxu0 0.0
      %1960 = vmatprep.subr.mxu0 0.0
      %1961 = vmatpush1.msra.mxu0 0.0
      %1962 = vmatprep.subr.mxu0 0.0
      %1963 = vmatpush1.msra.mxu0 0.0
      %1964 = vmatprep.subr.mxu0 0.0
      %1965 = vmatpush1.msra.mxu0 0.0
      %1966 = vmatprep.subr.mxu0 0.0
      %1967 = vmatpush1.msra.mxu0 0.0
      %1968 = vmatprep.subr.mxu0 0.0
      %1969 = vmatpush1.msra.mxu0 0.0
      %1970 = vmatprep.subr.mxu0 0.0
      %1971 = vmatpush1.msra.mxu0 0.0
      %1972 = vmatprep.subr.mxu0 0.0
      %1973 = vmatpush1.msra.mxu0 0.0
      %1974 = vmatprep.subr.mxu0 0.0
      %1975 = vmatpush1.msra.mxu0 0.0
      %1976 = vmatprep.subr.mxu0 0.0
      %1977 = vmatpush1.msra.mxu0 0.0
      %1978 = vmatprep.mubr.f32.mxu0 0.0
      %1979 = vmatmul.mubr.f32.gmra.mrb[0].mxu0 %v1912
      %v1980 = vpop.f32.mrb[0].mxu0
      %v1981 = vadd.f32 0.0, %v1980
      %v1982 = vpop.f32.mrb[0].mxu0
      %1983 = vdwg.mxu0
      %v1985 = vsel %vm1910, %v1811, 0
      %1987 = vmatprep.subr.mxu0 0.0
      %1988 = vmatpush1.msra.mxu0 %v1814
      %1989 = vmatprep.subr.mxu0 0.0
      %1990 = vmatpush1.msra.mxu0 %v1815
      %1991 = vmatprep.subr.mxu0 0.0
      %1992 = vmatpush1.msra.mxu0 %v1816
      %1993 = vmatprep.subr.mxu0 0.0
      %1994 = vmatpush1.msra.mxu0 %v1817
      %1995 = vmatprep.subr.mxu0 0.0
      %1996 = vmatpush1.msra.mxu0 %v1818
      %1997 = vmatprep.subr.mxu0 0.0
      %1998 = vmatpush1.msra.mxu0 %v1819
      %1999 = vmatprep.subr.mxu0 0.0
      %2000 = vmatpush1.msra.mxu0 %v1820
      %2001 = vmatprep.subr.mxu0 0.0
      %2002 = vmatpush1.msra.mxu0 %v1821
      %2003 = vmatprep.subr.mxu0 0.0
      %2004 = vmatpush1.msra.mxu0 %v1822
      %2005 = vmatprep.subr.mxu0 0.0
      %2006 = vmatpush1.msra.mxu0 %v1823
      %2007 = vmatprep.subr.mxu0 0.0
      %2008 = vmatpush1.msra.mxu0 0.0
      %2009 = vmatprep.subr.mxu0 0.0
      %2010 = vmatpush1.msra.mxu0 0.0
      %2011 = vmatprep.subr.mxu0 0.0
      %2012 = vmatpush1.msra.mxu0 0.0
      %2013 = vmatprep.subr.mxu0 0.0
      %2014 = vmatpush1.msra.mxu0 0.0
      %2015 = vmatprep.subr.mxu0 0.0
      %2016 = vmatpush1.msra.mxu0 0.0
      %2017 = vmatprep.subr.mxu0 0.0
      %2018 = vmatpush1.msra.mxu0 0.0
      %2019 = vmatprep.subr.mxu0 0.0
      %2020 = vmatpush1.msra.mxu0 0.0
      %2021 = vmatprep.subr.mxu0 0.0
      %2022 = vmatpush1.msra.mxu0 0.0
      %2023 = vmatprep.subr.mxu0 0.0
      %2024 = vmatpush1.msra.mxu0 0.0
      %2025 = vmatprep.subr.mxu0 0.0
      %2026 = vmatpush1.msra.mxu0 0.0
      %2027 = vmatprep.subr.mxu0 0.0
      %2028 = vmatpush1.msra.mxu0 0.0
      %2029 = vmatprep.subr.mxu0 0.0
      %2030 = vmatpush1.msra.mxu0 0.0
      %2031 = vmatprep.subr.mxu0 0.0
      %2032 = vmatpush1.msra.mxu0 0.0
      %2033 = vmatprep.subr.mxu0 0.0
      %2034 = vmatpush1.msra.mxu0 0.0
      %2035 = vmatprep.subr.mxu0 0.0
      %2036 = vmatpush1.msra.mxu0 0.0
      %2037 = vmatprep.subr.mxu0 0.0
      %2038 = vmatpush1.msra.mxu0 0.0
      %2039 = vmatprep.subr.mxu0 0.0
      %2040 = vmatpush1.msra.mxu0 0.0
      %2041 = vmatprep.subr.mxu0 0.0
      %2042 = vmatpush1.msra.mxu0 0.0
      %2043 = vmatprep.subr.mxu0 0.0
      %2044 = vmatpush1.msra.mxu0 0.0
      %2045 = vmatprep.subr.mxu0 0.0
      %2046 = vmatpush1.msra.mxu0 0.0
      %2047 = vmatprep.subr.mxu0 0.0
      %2048 = vmatpush1.msra.mxu0 0.0
      %2049 = vmatprep.subr.mxu0 0.0
      %2050 = vmatpush1.msra.mxu0 0.0
      %2051 = vmatprep.mubr.f32.mxu0 0.0
      %2052 = vmatmul.mubr.f32.gmra.mrb[0].mxu0 %v1985
      %v2053 = vpop.f32.mrb[0].mxu0
      %v2054 = vadd.f32 %v1981, %v2053
      %v2055 = vpop.f32.mrb[0].mxu0
      %2056 = vdwg.mxu0
      %s2057 = scalar_lea.vmem %s6, 8
      %v2058 = vld [vmem:[%s2057] sm:$0x7]
      %v2060 = vsel %vm1736, %v2058, 0
      %2062 = vmatprep.subr.mxu0 0.0
      %2063 = vmatpush1.msra.mxu0 %v1742
      %2064 = vmatprep.subr.mxu0 0.0
      %2065 = vmatpush1.msra.mxu0 0.0
      %2066 = vmatprep.subr.mxu0 0.0
      %2067 = vmatpush1.msra.mxu0 0.0
      %2068 = vmatprep.subr.mxu0 0.0
      %2069 = vmatpush1.msra.mxu0 0.0
      %2070 = vmatprep.subr.mxu0 0.0
      %2071 = vmatpush1.msra.mxu0 0.0
      %2072 = vmatprep.subr.mxu0 0.0
      %2073 = vmatpush1.msra.mxu0 0.0
      %2074 = vmatprep.subr.mxu0 0.0
      %2075 = vmatpush1.msra.mxu0 0.0
      %2076 = vmatprep.subr.mxu0 0.0
      %2077 = vmatpush1.msra.mxu0 0.0
      %2078 = vmatprep.subr.mxu0 0.0
      %2079 = vmatpush1.msra.mxu0 0.0
      %2080 = vmatprep.subr.mxu0 0.0
      %2081 = vmatpush1.msra.mxu0 0.0
      %2082 = vmatprep.subr.mxu0 0.0
      %2083 = vmatpush1.msra.mxu0 0.0
      %2084 = vmatprep.subr.mxu0 0.0
      %2085 = vmatpush1.msra.mxu0 0.0
      %2086 = vmatprep.subr.mxu0 0.0
      %2087 = vmatpush1.msra.mxu0 0.0
      %2088 = vmatprep.subr.mxu0 0.0
      %2089 = vmatpush1.msra.mxu0 0.0
      %2090 = vmatprep.subr.mxu0 0.0
      %2091 = vmatpush1.msra.mxu0 0.0
      %2092 = vmatprep.subr.mxu0 0.0
      %2093 = vmatpush1.msra.mxu0 0.0
      %2094 = vmatprep.subr.mxu0 0.0
      %2095 = vmatpush1.msra.mxu0 0.0
      %2096 = vmatprep.subr.mxu0 0.0
      %2097 = vmatpush1.msra.mxu0 0.0
      %2098 = vmatprep.subr.mxu0 0.0
      %2099 = vmatpush1.msra.mxu0 0.0
      %2100 = vmatprep.subr.mxu0 0.0
      %2101 = vmatpush1.msra.mxu0 0.0
      %2102 = vmatprep.subr.mxu0 0.0
      %2103 = vmatpush1.msra.mxu0 0.0
      %2104 = vmatprep.subr.mxu0 0.0
      %2105 = vmatpush1.msra.mxu0 0.0
      %2106 = vmatprep.subr.mxu0 0.0
      %2107 = vmatpush1.msra.mxu0 0.0
      %2108 = vmatprep.subr.mxu0 0.0
      %2109 = vmatpush1.msra.mxu0 0.0
      %2110 = vmatprep.subr.mxu0 0.0
      %2111 = vmatpush1.msra.mxu0 0.0
      %2112 = vmatprep.subr.mxu0 0.0
      %2113 = vmatpush1.msra.mxu0 0.0
      %2114 = vmatprep.subr.mxu0 0.0
      %2115 = vmatpush1.msra.mxu0 0.0
      %2116 = vmatprep.subr.mxu0 0.0
      %2117 = vmatpush1.msra.mxu0 0.0
      %2118 = vmatprep.subr.mxu0 0.0
      %2119 = vmatpush1.msra.mxu0 0.0
      %2120 = vmatprep.subr.mxu0 0.0
      %2121 = vmatpush1.msra.mxu0 0.0
      %2122 = vmatprep.subr.mxu0 0.0
      %2123 = vmatpush1.msra.mxu0 0.0
      %2124 = vmatprep.subr.mxu0 0.0
      %2125 = vmatpush1.msra.mxu0 0.0
      %2126 = vmatprep.mubr.f32.mxu0 0.0
      %2127 = vmatmul.mubr.f32.gmra.mrb[0].mxu0 %v2060
      %v2128 = vpop.f32.mrb[0].mxu0
      %v2129 = vadd.f32 0.0, %v2128
      %v2130 = vpop.f32.mrb[0].mxu0
      %2131 = vdwg.mxu0
      %s2132 = scalar_lea.vmem %s7, 160
      %v2133 = vld [vmem:[%s2132] sm:$0xff]
      %v2134 = vld [vmem:[%s2132 + $0x8] sm:$0xff]
      %v2135 = vld [vmem:[%s2132 + $0x10] sm:$0xff]
      %v2136 = vld [vmem:[%s2132 + $0x18] sm:$0xff]
      %v2137 = vld [vmem:[%s2132 + $0x20] sm:$0xff]
      %v2138 = vld [vmem:[%s2132 + $0x28] sm:$0xff]
      %v2139 = vld [vmem:[%s2132 + $0x30] sm:$0xff]
      %v2140 = vld [vmem:[%s2132 + $0x38] sm:$0xff]
      %v2141 = vld [vmem:[%s2132 + $0x40] sm:$0xff]
      %v2142 = vld [vmem:[%s2132 + $0x48] sm:$0xff]
      %v2144 = vsel %vm1910, %v2129, 0
      %2146 = vmatprep.subr.mxu0 0.0
      %2147 = vmatpush1.msra.mxu0 %v2133
      %2148 = vmatprep.subr.mxu0 0.0
      %2149 = vmatpush1.msra.mxu0 %v2134
      %2150 = vmatprep.subr.mxu0 0.0
      %2151 = vmatpush1.msra.mxu0 %v2135
      %2152 = vmatprep.subr.mxu0 0.0
      %2153 = vmatpush1.msra.mxu0 %v2136
      %2154 = vmatprep.subr.mxu0 0.0
      %2155 = vmatpush1.msra.mxu0 %v2137
      %2156 = vmatprep.subr.mxu0 0.0
      %2157 = vmatpush1.msra.mxu0 %v2138
      %2158 = vmatprep.subr.mxu0 0.0
      %2159 = vmatpush1.msra.mxu0 %v2139
      %2160 = vmatprep.subr.mxu0 0.0
      %2161 = vmatpush1.msra.mxu0 %v2140
      %2162 = vmatprep.subr.mxu0 0.0
      %2163 = vmatpush1.msra.mxu0 %v2141
      %2164 = vmatprep.subr.mxu0 0.0
      %2165 = vmatpush1.msra.mxu0 %v2142
      %2166 = vmatprep.subr.mxu0 0.0
      %2167 = vmatpush1.msra.mxu0 0.0
      %2168 = vmatprep.subr.mxu0 0.0
      %2169 = vmatpush1.msra.mxu0 0.0
      %2170 = vmatprep.subr.mxu0 0.0
      %2171 = vmatpush1.msra.mxu0 0.0
      %2172 = vmatprep.subr.mxu0 0.0
      %2173 = vmatpush1.msra.mxu0 0.0
      %2174 = vmatprep.subr.mxu0 0.0
      %2175 = vmatpush1.msra.mxu0 0.0
      %2176 = vmatprep.subr.mxu0 0.0
      %2177 = vmatpush1.msra.mxu0 0.0
      %2178 = vmatprep.subr.mxu0 0.0
      %2179 = vmatpush1.msra.mxu0 0.0
      %2180 = vmatprep.subr.mxu0 0.0
      %2181 = vmatpush1.msra.mxu0 0.0
      %2182 = vmatprep.subr.mxu0 0.0
      %2183 = vmatpush1.msra.mxu0 0.0
      %2184 = vmatprep.subr.mxu0 0.0
      %2185 = vmatpush1.msra.mxu0 0.0
      %2186 = vmatprep.subr.mxu0 0.0
      %2187 = vmatpush1.msra.mxu0 0.0
      %2188 = vmatprep.subr.mxu0 0.0
      %2189 = vmatpush1.msra.mxu0 0.0
      %2190 = vmatprep.subr.mxu0 0.0
      %2191 = vmatpush1.msra.mxu0 0.0
      %2192 = vmatprep.subr.mxu0 0.0
      %2193 = vmatpush1.msra.mxu0 0.0
      %2194 = vmatprep.subr.mxu0 0.0
      %2195 = vmatpush1.msra.mxu0 0.0
      %2196 = vmatprep.subr.mxu0 0.0
      %2197 = vmatpush1.msra.mxu0 0.0
      %2198 = vmatprep.subr.mxu0 0.0
      %2199 = vmatpush1.msra.mxu0 0.0
      %2200 = vmatprep.subr.mxu0 0.0
      %2201 = vmatpush1.msra.mxu0 0.0
      %2202 = vmatprep.subr.mxu0 0.0
      %2203 = vmatpush1.msra.mxu0 0.0
      %2204 = vmatprep.subr.mxu0 0.0
      %2205 = vmatpush1.msra.mxu0 0.0
      %2206 = vmatprep.subr.mxu0 0.0
      %2207 = vmatpush1.msra.mxu0 0.0
      %2208 = vmatprep.subr.mxu0 0.0
      %2209 = vmatpush1.msra.mxu0 0.0
      %2210 = vmatprep.mubr.f32.mxu0 0.0
      %2211 = vmatmul.mubr.f32.gmra.mrb[0].mxu0 %v2144
      %v2212 = vpop.f32.mrb[0].mxu0
      %v2213 = vadd.f32 0.0, %v2212
      %v2214 = vpop.f32.mrb[0].mxu0
      %2215 = vdwg.mxu0
      %v2216 = vadd.f32 %v2054, %v2213
      %v2217 = vld [vmem:[%s8] sm:$0x1]
      %v2219 = vlaneseq
      %v2220 = vshrl.u32 %v2219, 7
      %v2221 = vsub.s32 0, %v2220
      %v2222 = vrot.slane %v2217, %v2221
      %v2224 = vadd.f32 %v2216, %v2222
      %v2225 = vmax.f32 %v2224, 0.0
      %v2226 = vld [vmem:[%s9] sm:$0x3]
      %vm2227 = vcmask 23552
      %v2229 = vsel %vm2227, %v2226, 0
      %vm2231 = vcmask 1042432
      %v2233 = vsel %vm2231, %v2225, 0
      %2235 = vmatprep.subr.mxu0 0.0
      %2236 = vmatpush1.msra.mxu0 %v2233
      %2237 = vmatprep.subr.mxu0 0.0
      %2238 = vmatpush1.msra.mxu0 0.0
      %2239 = vmatprep.subr.mxu0 0.0
      %2240 = vmatpush1.msra.mxu0 0.0
      %2241 = vmatprep.subr.mxu0 0.0
      %2242 = vmatpush1.msra.mxu0 0.0
      %2243 = vmatprep.subr.mxu0 0.0
      %2244 = vmatpush1.msra.mxu0 0.0
      %2245 = vmatprep.subr.mxu0 0.0
      %2246 = vmatpush1.msra.mxu0 0.0
      %2247 = vmatprep.subr.mxu0 0.0
      %2248 = vmatpush1.msra.mxu0 0.0
      %2249 = vmatprep.subr.mxu0 0.0
      %2250 = vmatpush1.msra.mxu0 0.0
      %2251 = vmatprep.subr.mxu0 0.0
      %2252 = vmatpush1.msra.mxu0 0.0
      %2253 = vmatprep.subr.mxu0 0.0
      %2254 = vmatpush1.msra.mxu0 0.0
      %2255 = vmatprep.subr.mxu0 0.0
      %2256 = vmatpush1.msra.mxu0 0.0
      %2257 = vmatprep.subr.mxu0 0.0
      %2258 = vmatpush1.msra.mxu0 0.0
      %2259 = vmatprep.subr.mxu0 0.0
      %2260 = vmatpush1.msra.mxu0 0.0
      %2261 = vmatprep.subr.mxu0 0.0
      %2262 = vmatpush1.msra.mxu0 0.0
      %2263 = vmatprep.subr.mxu0 0.0
      %2264 = vmatpush1.msra.mxu0 0.0
      %2265 = vmatprep.subr.mxu0 0.0
      %2266 = vmatpush1.msra.mxu0 0.0
      %2267 = vmatprep.subr.mxu0 0.0
      %2268 = vmatpush1.msra.mxu0 0.0
      %2269 = vmatprep.subr.mxu0 0.0
      %2270 = vmatpush1.msra.mxu0 0.0
      %2271 = vmatprep.subr.mxu0 0.0
      %2272 = vmatpush1.msra.mxu0 0.0
      %2273 = vmatprep.subr.mxu0 0.0
      %2274 = vmatpush1.msra.mxu0 0.0
      %2275 = vmatprep.subr.mxu0 0.0
      %2276 = vmatpush1.msra.mxu0 0.0
      %2277 = vmatprep.subr.mxu0 0.0
      %2278 = vmatpush1.msra.mxu0 0.0
      %2279 = vmatprep.subr.mxu0 0.0
      %2280 = vmatpush1.msra.mxu0 0.0
      %2281 = vmatprep.subr.mxu0 0.0
      %2282 = vmatpush1.msra.mxu0 0.0
      %2283 = vmatprep.subr.mxu0 0.0
      %2284 = vmatpush1.msra.mxu0 0.0
      %2285 = vmatprep.subr.mxu0 0.0
      %2286 = vmatpush1.msra.mxu0 0.0
      %2287 = vmatprep.subr.mxu0 0.0
      %2288 = vmatpush1.msra.mxu0 0.0
      %2289 = vmatprep.subr.mxu0 0.0
      %2290 = vmatpush1.msra.mxu0 0.0
      %2291 = vmatprep.subr.mxu0 0.0
      %2292 = vmatpush1.msra.mxu0 0.0
      %2293 = vmatprep.subr.mxu0 0.0
      %2294 = vmatpush1.msra.mxu0 0.0
      %2295 = vmatprep.subr.mxu0 0.0
      %2296 = vmatpush1.msra.mxu0 0.0
      %2297 = vmatprep.subr.mxu0 0.0
      %2298 = vmatpush1.msra.mxu0 0.0
      %2299 = vmatprep.mubr.f32.mxu0 0.0
      %2300 = vmatmul.mubr.f32.gmra.mrb[0].mxu0 %v2229
      %v2301 = vpop.f32.mrb[0].mxu0
      %v2302 = vadd.f32 0.0, %v2301
      %v2303 = vpop.f32.mrb[0].mxu0
      %2304 = vdwg.mxu0
      %v2305 = vld [vmem:[%s10] sm:$0xff]
      %v2306 = vld [vmem:[%s10 + $0x8] sm:$0xff]
      %v2307 = vld [vmem:[%s10 + $0x10] sm:$0xff]
      %vm2308 = vcmask 195584
      %v2310 = vsel %vm2308, %v2302, 0
      %2312 = vmatprep.subr.mxu0 0.0
      %2313 = vmatpush1.msra.mxu0 %v2305
      %2314 = vmatprep.subr.mxu0 0.0
      %2315 = vmatpush1.msra.mxu0 %v2306
      %2316 = vmatprep.subr.mxu0 0.0
      %2317 = vmatpush1.msra.mxu0 %v2307
      %2318 = vmatprep.subr.mxu0 0.0
      %2319 = vmatpush1.msra.mxu0 0.0
      %2320 = vmatprep.subr.mxu0 0.0
      %2321 = vmatpush1.msra.mxu0 0.0
      %2322 = vmatprep.subr.mxu0 0.0
      %2323 = vmatpush1.msra.mxu0 0.0
      %2324 = vmatprep.subr.mxu0 0.0
      %2325 = vmatpush1.msra.mxu0 0.0
      %2326 = vmatprep.subr.mxu0 0.0
      %2327 = vmatpush1.msra.mxu0 0.0
      %2328 = vmatprep.subr.mxu0 0.0
      %2329 = vmatpush1.msra.mxu0 0.0
      %2330 = vmatprep.subr.mxu0 0.0
      %2331 = vmatpush1.msra.mxu0 0.0
      %2332 = vmatprep.subr.mxu0 0.0
      %2333 = vmatpush1.msra.mxu0 0.0
      %2334 = vmatprep.subr.mxu0 0.0
      %2335 = vmatpush1.msra.mxu0 0.0
      %2336 = vmatprep.subr.mxu0 0.0
      %2337 = vmatpush1.msra.mxu0 0.0
      %2338 = vmatprep.subr.mxu0 0.0
      %2339 = vmatpush1.msra.mxu0 0.0
      %2340 = vmatprep.subr.mxu0 0.0
      %2341 = vmatpush1.msra.mxu0 0.0
      %2342 = vmatprep.subr.mxu0 0.0
      %2343 = vmatpush1.msra.mxu0 0.0
      %2344 = vmatprep.subr.mxu0 0.0
      %2345 = vmatpush1.msra.mxu0 0.0
      %2346 = vmatprep.subr.mxu0 0.0
      %2347 = vmatpush1.msra.mxu0 0.0
      %2348 = vmatprep.subr.mxu0 0.0
      %2349 = vmatpush1.msra.mxu0 0.0
      %2350 = vmatprep.subr.mxu0 0.0
      %2351 = vmatpush1.msra.mxu0 0.0
      %2352 = vmatprep.subr.mxu0 0.0
      %2353 = vmatpush1.msra.mxu0 0.0
      %2354 = vmatprep.subr.mxu0 0.0
      %2355 = vmatpush1.msra.mxu0 0.0
      %2356 = vmatprep.subr.mxu0 0.0
      %2357 = vmatpush1.msra.mxu0 0.0
      %2358 = vmatprep.subr.mxu0 0.0
      %2359 = vmatpush1.msra.mxu0 0.0
      %2360 = vmatprep.subr.mxu0 0.0
      %2361 = vmatpush1.msra.mxu0 0.0
      %2362 = vmatprep.subr.mxu0 0.0
      %2363 = vmatpush1.msra.mxu0 0.0
      %2364 = vmatprep.subr.mxu0 0.0
      %2365 = vmatpush1.msra.mxu0 0.0
      %2366 = vmatprep.subr.mxu0 0.0
      %2367 = vmatpush1.msra.mxu0 0.0
      %2368 = vmatprep.subr.mxu0 0.0
      %2369 = vmatpush1.msra.mxu0 0.0
      %2370 = vmatprep.subr.mxu0 0.0
      %2371 = vmatpush1.msra.mxu0 0.0
      %2372 = vmatprep.subr.mxu0 0.0
      %2373 = vmatpush1.msra.mxu0 0.0
      %2374 = vmatprep.subr.mxu0 0.0
      %2375 = vmatpush1.msra.mxu0 0.0
      %2376 = vmatprep.mubr.f32.mxu0 0.0
      %2377 = vmatmul.mubr.f32.gmra.mrb[0].mxu0 %v2310
      %v2378 = vpop.f32.mrb[0].mxu0
      %v2379 = vadd.f32 0.0, %v2378
      %v2380 = vpop.f32.mrb[0].mxu0
      %2381 = vdwg.mxu0
      %s2382 = scalar_lea.vmem %s10, 24
      %v2383 = vld [vmem:[%s2382] sm:$0xff]
      %v2384 = vld [vmem:[%s2382 + $0x8] sm:$0xff]
      %v2385 = vld [vmem:[%s2382 + $0x10] sm:$0xff]
      %2386 = vmatprep.subr.mxu0 0.0
      %2387 = vmatpush1.msra.mxu0 %v2383
      %2388 = vmatprep.subr.mxu0 0.0
      %2389 = vmatpush1.msra.mxu0 %v2384
      %2390 = vmatprep.subr.mxu0 0.0
      %2391 = vmatpush1.msra.mxu0 %v2385
      %2392 = vmatprep.subr.mxu0 0.0
      %2393 = vmatpush1.msra.mxu0 0.0
      %2394 = vmatprep.subr.mxu0 0.0
      %2395 = vmatpush1.msra.mxu0 0.0
      %2396 = vmatprep.subr.mxu0 0.0
      %2397 = vmatpush1.msra.mxu0 0.0
      %2398 = vmatprep.subr.mxu0 0.0
      %2399 = vmatpush1.msra.mxu0 0.0
      %2400 = vmatprep.subr.mxu0 0.0
      %2401 = vmatpush1.msra.mxu0 0.0
      %2402 = vmatprep.subr.mxu0 0.0
      %2403 = vmatpush1.msra.mxu0 0.0
      %2404 = vmatprep.subr.mxu0 0.0
      %2405 = vmatpush1.msra.mxu0 0.0
      %2406 = vmatprep.subr.mxu0 0.0
      %2407 = vmatpush1.msra.mxu0 0.0
      %2408 = vmatprep.subr.mxu0 0.0
      %2409 = vmatpush1.msra.mxu0 0.0
      %2410 = vmatprep.subr.mxu0 0.0
      %2411 = vmatpush1.msra.mxu0 0.0
      %2412 = vmatprep.subr.mxu0 0.0
      %2413 = vmatpush1.msra.mxu0 0.0
      %2414 = vmatprep.subr.mxu0 0.0
      %2415 = vmatpush1.msra.mxu0 0.0
      %2416 = vmatprep.subr.mxu0 0.0
      %2417 = vmatpush1.msra.mxu0 0.0
      %2418 = vmatprep.subr.mxu0 0.0
      %2419 = vmatpush1.msra.mxu0 0.0
      %2420 = vmatprep.subr.mxu0 0.0
      %2421 = vmatpush1.msra.mxu0 0.0
      %2422 = vmatprep.subr.mxu0 0.0
      %2423 = vmatpush1.msra.mxu0 0.0
      %2424 = vmatprep.subr.mxu0 0.0
      %2425 = vmatpush1.msra.mxu0 0.0
      %2426 = vmatprep.subr.mxu0 0.0
      %2427 = vmatpush1.msra.mxu0 0.0
      %2428 = vmatprep.subr.mxu0 0.0
      %2429 = vmatpush1.msra.mxu0 0.0
      %2430 = vmatprep.subr.mxu0 0.0
      %2431 = vmatpush1.msra.mxu0 0.0
      %2432 = vmatprep.subr.mxu0 0.0
      %2433 = vmatpush1.msra.mxu0 0.0
      %2434 = vmatprep.subr.mxu0 0.0
      %2435 = vmatpush1.msra.mxu0 0.0
      %2436 = vmatprep.subr.mxu0 0.0
      %2437 = vmatpush1.msra.mxu0 0.0
      %2438 = vmatprep.subr.mxu0 0.0
      %2439 = vmatpush1.msra.mxu0 0.0
      %2440 = vmatprep.subr.mxu0 0.0
      %2441 = vmatpush1.msra.mxu0 0.0
      %2442 = vmatprep.subr.mxu0 0.0
      %2443 = vmatpush1.msra.mxu0 0.0
      %2444 = vmatprep.subr.mxu0 0.0
      %2445 = vmatpush1.msra.mxu0 0.0
      %2446 = vmatprep.subr.mxu0 0.0
      %2447 = vmatpush1.msra.mxu0 0.0
      %2448 = vmatprep.subr.mxu0 0.0
      %2449 = vmatpush1.msra.mxu0 0.0
      %2450 = vmatprep.mubr.f32.mxu0 0.0
      %2451 = vmatmul.mubr.f32.gmra.mrb[0].mxu0 %v2310
      %v2452 = vpop.f32.mrb[0].mxu0
      %v2453 = vadd.f32 0.0, %v2452
      %v2454 = vpop.f32.mrb[0].mxu0
      %2455 = vdwg.mxu0
      %v2456 = vmax.f32 %v2379, %v2453
      %s2457 = scalar_lea.vmem %s9, 2
      %v2458 = vld [vmem:[%s2457] sm:$0x3]
      %v2460 = vsel %vm2227, %v2458, 0
      %2462 = vmatprep.subr.mxu0 0.0
      %2463 = vmatpush1.msra.mxu0 %v2233
      %2464 = vmatprep.subr.mxu0 0.0
      %2465 = vmatpush1.msra.mxu0 0.0
      %2466 = vmatprep.subr.mxu0 0.0
      %2467 = vmatpush1.msra.mxu0 0.0
      %2468 = vmatprep.subr.mxu0 0.0
      %2469 = vmatpush1.msra.mxu0 0.0
      %2470 = vmatprep.subr.mxu0 0.0
      %2471 = vmatpush1.msra.mxu0 0.0
      %2472 = vmatprep.subr.mxu0 0.0
      %2473 = vmatpush1.msra.mxu0 0.0
      %2474 = vmatprep.subr.mxu0 0.0
      %2475 = vmatpush1.msra.mxu0 0.0
      %2476 = vmatprep.subr.mxu0 0.0
      %2477 = vmatpush1.msra.mxu0 0.0
      %2478 = vmatprep.subr.mxu0 0.0
      %2479 = vmatpush1.msra.mxu0 0.0
      %2480 = vmatprep.subr.mxu0 0.0
      %2481 = vmatpush1.msra.mxu0 0.0
      %2482 = vmatprep.subr.mxu0 0.0
      %2483 = vmatpush1.msra.mxu0 0.0
      %2484 = vmatprep.subr.mxu0 0.0
      %2485 = vmatpush1.msra.mxu0 0.0
      %2486 = vmatprep.subr.mxu0 0.0
      %2487 = vmatpush1.msra.mxu0 0.0
      %2488 = vmatprep.subr.mxu0 0.0
      %2489 = vmatpush1.msra.mxu0 0.0
      %2490 = vmatprep.subr.mxu0 0.0
      %2491 = vmatpush1.msra.mxu0 0.0
      %2492 = vmatprep.subr.mxu0 0.0
      %2493 = vmatpush1.msra.mxu0 0.0
      %2494 = vmatprep.subr.mxu0 0.0
      %2495 = vmatpush1.msra.mxu0 0.0
      %2496 = vmatprep.subr.mxu0 0.0
      %2497 = vmatpush1.msra.mxu0 0.0
      %2498 = vmatprep.subr.mxu0 0.0
      %2499 = vmatpush1.msra.mxu0 0.0
      %2500 = vmatprep.subr.mxu0 0.0
      %2501 = vmatpush1.msra.mxu0 0.0
      %2502 = vmatprep.subr.mxu0 0.0
      %2503 = vmatpush1.msra.mxu0 0.0
      %2504 = vmatprep.subr.mxu0 0.0
      %2505 = vmatpush1.msra.mxu0 0.0
      %2506 = vmatprep.subr.mxu0 0.0
      %2507 = vmatpush1.msra.mxu0 0.0
      %2508 = vmatprep.subr.mxu0 0.0
      %2509 = vmatpush1.msra.mxu0 0.0
      %2510 = vmatprep.subr.mxu0 0.0
      %2511 = vmatpush1.msra.mxu0 0.0
      %2512 = vmatprep.subr.mxu0 0.0
      %2513 = vmatpush1.msra.mxu0 0.0
      %2514 = vmatprep.subr.mxu0 0.0
      %2515 = vmatpush1.msra.mxu0 0.0
      %2516 = vmatprep.subr.mxu0 0.0
      %2517 = vmatpush1.msra.mxu0 0.0
      %2518 = vmatprep.subr.mxu0 0.0
      %2519 = vmatpush1.msra.mxu0 0.0
      %2520 = vmatprep.subr.mxu0 0.0
      %2521 = vmatpush1.msra.mxu0 0.0
      %2522 = vmatprep.subr.mxu0 0.0
      %2523 = vmatpush1.msra.mxu0 0.0
      %2524 = vmatprep.subr.mxu0 0.0
      %2525 = vmatpush1.msra.mxu0 0.0
      %2526 = vmatprep.mubr.f32.mxu0 0.0
      %2527 = vmatmul.mubr.f32.gmra.mrb[0].mxu0 %v2460
      %v2528 = vpop.f32.mrb[0].mxu0
      %v2529 = vadd.f32 0.0, %v2528
      %v2530 = vpop.f32.mrb[0].mxu0
      %2531 = vdwg.mxu0
      %v2533 = vsel %vm2308, %v2529, 0
      %2535 = vmatprep.subr.mxu0 0.0
      %2536 = vmatpush1.msra.mxu0 %v2305
      %2537 = vmatprep.subr.mxu0 0.0
      %2538 = vmatpush1.msra.mxu0 %v2306
      %2539 = vmatprep.subr.mxu0 0.0
      %2540 = vmatpush1.msra.mxu0 %v2307
      %2541 = vmatprep.subr.mxu0 0.0
      %2542 = vmatpush1.msra.mxu0 0.0
      %2543 = vmatprep.subr.mxu0 0.0
      %2544 = vmatpush1.msra.mxu0 0.0
      %2545 = vmatprep.subr.mxu0 0.0
      %2546 = vmatpush1.msra.mxu0 0.0
      %2547 = vmatprep.subr.mxu0 0.0
      %2548 = vmatpush1.msra.mxu0 0.0
      %2549 = vmatprep.subr.mxu0 0.0
      %2550 = vmatpush1.msra.mxu0 0.0
      %2551 = vmatprep.subr.mxu0 0.0
      %2552 = vmatpush1.msra.mxu0 0.0
      %2553 = vmatprep.subr.mxu0 0.0
      %2554 = vmatpush1.msra.mxu0 0.0
      %2555 = vmatprep.subr.mxu0 0.0
      %2556 = vmatpush1.msra.mxu0 0.0
      %2557 = vmatprep.subr.mxu0 0.0
      %2558 = vmatpush1.msra.mxu0 0.0
      %2559 = vmatprep.subr.mxu0 0.0
      %2560 = vmatpush1.msra.mxu0 0.0
      %2561 = vmatprep.subr.mxu0 0.0
      %2562 = vmatpush1.msra.mxu0 0.0
      %2563 = vmatprep.subr.mxu0 0.0
      %2564 = vmatpush1.msra.mxu0 0.0
      %2565 = vmatprep.subr.mxu0 0.0
      %2566 = vmatpush1.msra.mxu0 0.0
      %2567 = vmatprep.subr.mxu0 0.0
      %2568 = vmatpush1.msra.mxu0 0.0
      %2569 = vmatprep.subr.mxu0 0.0
      %2570 = vmatpush1.msra.mxu0 0.0
      %2571 = vmatprep.subr.mxu0 0.0
      %2572 = vmatpush1.msra.mxu0 0.0
      %2573 = vmatprep.subr.mxu0 0.0
      %2574 = vmatpush1.msra.mxu0 0.0
      %2575 = vmatprep.subr.mxu0 0.0
      %2576 = vmatpush1.msra.mxu0 0.0
      %2577 = vmatprep.subr.mxu0 0.0
      %2578 = vmatpush1.msra.mxu0 0.0
      %2579 = vmatprep.subr.mxu0 0.0
      %2580 = vmatpush1.msra.mxu0 0.0
      %2581 = vmatprep.subr.mxu0 0.0
      %2582 = vmatpush1.msra.mxu0 0.0
      %2583 = vmatprep.subr.mxu0 0.0
      %2584 = vmatpush1.msra.mxu0 0.0
      %2585 = vmatprep.subr.mxu0 0.0
      %2586 = vmatpush1.msra.mxu0 0.0
      %2587 = vmatprep.subr.mxu0 0.0
      %2588 = vmatpush1.msra.mxu0 0.0
      %2589 = vmatprep.subr.mxu0 0.0
      %2590 = vmatpush1.msra.mxu0 0.0
      %2591 = vmatprep.subr.mxu0 0.0
      %2592 = vmatpush1.msra.mxu0 0.0
      %2593 = vmatprep.subr.mxu0 0.0
      %2594 = vmatpush1.msra.mxu0 0.0
      %2595 = vmatprep.subr.mxu0 0.0
      %2596 = vmatpush1.msra.mxu0 0.0
      %2597 = vmatprep.subr.mxu0 0.0
      %2598 = vmatpush1.msra.mxu0 0.0
      %2599 = vmatprep.mubr.f32.mxu0 0.0
      %2600 = vmatmul.mubr.f32.gmra.mrb[0].mxu0 %v2533
      %v2601 = vpop.f32.mrb[0].mxu0
      %v2602 = vadd.f32 0.0, %v2601
      %v2603 = vpop.f32.mrb[0].mxu0
      %2604 = vdwg.mxu0
      %v2605 = vmax.f32 %v2456, %v2602
      %2606 = vmatprep.subr.mxu0 0.0
      %2607 = vmatpush1.msra.mxu0 %v2383
      %2608 = vmatprep.subr.mxu0 0.0
      %2609 = vmatpush1.msra.mxu0 %v2384
      %2610 = vmatprep.subr.mxu0 0.0
      %2611 = vmatpush1.msra.mxu0 %v2385
      %2612 = vmatprep.subr.mxu0 0.0
      %2613 = vmatpush1.msra.mxu0 0.0
      %2614 = vmatprep.subr.mxu0 0.0
      %2615 = vmatpush1.msra.mxu0 0.0
      %2616 = vmatprep.subr.mxu0 0.0
      %2617 = vmatpush1.msra.mxu0 0.0
      %2618 = vmatprep.subr.mxu0 0.0
      %2619 = vmatpush1.msra.mxu0 0.0
      %2620 = vmatprep.subr.mxu0 0.0
      %2621 = vmatpush1.msra.mxu0 0.0
      %2622 = vmatprep.subr.mxu0 0.0
      %2623 = vmatpush1.msra.mxu0 0.0
      %2624 = vmatprep.subr.mxu0 0.0
      %2625 = vmatpush1.msra.mxu0 0.0
      %2626 = vmatprep.subr.mxu0 0.0
      %2627 = vmatpush1.msra.mxu0 0.0
      %2628 = vmatprep.subr.mxu0 0.0
      %2629 = vmatpush1.msra.mxu0 0.0
      %2630 = vmatprep.subr.mxu0 0.0
      %2631 = vmatpush1.msra.mxu0 0.0
      %2632 = vmatprep.subr.mxu0 0.0
      %2633 = vmatpush1.msra.mxu0 0.0
      %2634 = vmatprep.subr.mxu0 0.0
      %2635 = vmatpush1.msra.mxu0 0.0
      %2636 = vmatprep.subr.mxu0 0.0
      %2637 = vmatpush1.msra.mxu0 0.0
      %2638 = vmatprep.subr.mxu0 0.0
      %2639 = vmatpush1.msra.mxu0 0.0
      %2640 = vmatprep.subr.mxu0 0.0
      %2641 = vmatpush1.msra.mxu0 0.0
      %2642 = vmatprep.subr.mxu0 0.0
      %2643 = vmatpush1.msra.mxu0 0.0
      %2644 = vmatprep.subr.mxu0 0.0
      %2645 = vmatpush1.msra.mxu0 0.0
      %2646 = vmatprep.subr.mxu0 0.0
      %2647 = vmatpush1.msra.mxu0 0.0
      %2648 = vmatprep.subr.mxu0 0.0
      %2649 = vmatpush1.msra.mxu0 0.0
      %2650 = vmatprep.subr.mxu0 0.0
      %2651 = vmatpush1.msra.mxu0 0.0
      %2652 = vmatprep.subr.mxu0 0.0
      %2653 = vmatpush1.msra.mxu0 0.0
      %2654 = vmatprep.subr.mxu0 0.0
      %2655 = vmatpush1.msra.mxu0 0.0
      %2656 = vmatprep.subr.mxu0 0.0
      %2657 = vmatpush1.msra.mxu0 0.0
      %2658 = vmatprep.subr.mxu0 0.0
      %2659 = vmatpush1.msra.mxu0 0.0
      %2660 = vmatprep.subr.mxu0 0.0
      %2661 = vmatpush1.msra.mxu0 0.0
      %2662 = vmatprep.subr.mxu0 0.0
      %2663 = vmatpush1.msra.mxu0 0.0
      %2664 = vmatprep.subr.mxu0 0.0
      %2665 = vmatpush1.msra.mxu0 0.0
      %2666 = vmatprep.subr.mxu0 0.0
      %2667 = vmatpush1.msra.mxu0 0.0
      %2668 = vmatprep.subr.mxu0 0.0
      %2669 = vmatpush1.msra.mxu0 0.0
      %2670 = vmatprep.mubr.f32.mxu0 0.0
      %2671 = vmatmul.mubr.f32.gmra.mrb[0].mxu0 %v2533
      %v2672 = vpop.f32.mrb[0].mxu0
      %v2673 = vadd.f32 0.0, %v2672
      %v2674 = vpop.f32.mrb[0].mxu0
      %2675 = vdwg.mxu0
      %v2676 = vmax.f32 %v2605, %v2673
      %vm2677 = vcmask 123904
      %2678 = vst.msk [vmem:[%s662] sm:$0x3] %vm2677, %v2676
      %v2679 = vld [vmem:[%s11] sm:$0x1f]
      %vm2680 = vcmask 15360
      %v2682 = vsel %vm2680, %v2679, 0
      %v2685 = vsel %vm1250, %v2676, 0
      %2687 = vmatprep.subr.mxu0 0.0
      %2688 = vmatpush1.msra.mxu0 %v2685
      %2689 = vmatprep.subr.mxu0 0.0
      %2690 = vmatpush1.msra.mxu0 0.0
      %2691 = vmatprep.subr.mxu0 0.0
      %2692 = vmatpush1.msra.mxu0 0.0
      %2693 = vmatprep.subr.mxu0 0.0
      %2694 = vmatpush1.msra.mxu0 0.0
      %2695 = vmatprep.subr.mxu0 0.0
      %2696 = vmatpush1.msra.mxu0 0.0
      %2697 = vmatprep.subr.mxu0 0.0
      %2698 = vmatpush1.msra.mxu0 0.0
      %2699 = vmatprep.subr.mxu0 0.0
      %2700 = vmatpush1.msra.mxu0 0.0
      %2701 = vmatprep.subr.mxu0 0.0
      %2702 = vmatpush1.msra.mxu0 0.0
      %2703 = vmatprep.subr.mxu0 0.0
      %2704 = vmatpush1.msra.mxu0 0.0
      %2705 = vmatprep.subr.mxu0 0.0
      %2706 = vmatpush1.msra.mxu0 0.0
      %2707 = vmatprep.subr.mxu0 0.0
      %2708 = vmatpush1.msra.mxu0 0.0
      %2709 = vmatprep.subr.mxu0 0.0
      %2710 = vmatpush1.msra.mxu0 0.0
      %2711 = vmatprep.subr.mxu0 0.0
      %2712 = vmatpush1.msra.mxu0 0.0
      %2713 = vmatprep.subr.mxu0 0.0
      %2714 = vmatpush1.msra.mxu0 0.0
      %2715 = vmatprep.subr.mxu0 0.0
      %2716 = vmatpush1.msra.mxu0 0.0
      %2717 = vmatprep.subr.mxu0 0.0
      %2718 = vmatpush1.msra.mxu0 0.0
      %2719 = vmatprep.subr.mxu0 0.0
      %2720 = vmatpush1.msra.mxu0 0.0
      %2721 = vmatprep.subr.mxu0 0.0
      %2722 = vmatpush1.msra.mxu0 0.0
      %2723 = vmatprep.subr.mxu0 0.0
      %2724 = vmatpush1.msra.mxu0 0.0
      %2725 = vmatprep.subr.mxu0 0.0
      %2726 = vmatpush1.msra.mxu0 0.0
      %2727 = vmatprep.subr.mxu0 0.0
      %2728 = vmatpush1.msra.mxu0 0.0
      %2729 = vmatprep.subr.mxu0 0.0
      %2730 = vmatpush1.msra.mxu0 0.0
      %2731 = vmatprep.subr.mxu0 0.0
      %2732 = vmatpush1.msra.mxu0 0.0
      %2733 = vmatprep.subr.mxu0 0.0
      %2734 = vmatpush1.msra.mxu0 0.0
      %2735 = vmatprep.subr.mxu0 0.0
      %2736 = vmatpush1.msra.mxu0 0.0
      %2737 = vmatprep.subr.mxu0 0.0
      %2738 = vmatpush1.msra.mxu0 0.0
      %2739 = vmatprep.subr.mxu0 0.0
      %2740 = vmatpush1.msra.mxu0 0.0
      %2741 = vmatprep.subr.mxu0 0.0
      %2742 = vmatpush1.msra.mxu0 0.0
      %2743 = vmatprep.subr.mxu0 0.0
      %2744 = vmatpush1.msra.mxu0 0.0
      %2745 = vmatprep.subr.mxu0 0.0
      %2746 = vmatpush1.msra.mxu0 0.0
      %2747 = vmatprep.subr.mxu0 0.0
      %2748 = vmatpush1.msra.mxu0 0.0
      %2749 = vmatprep.subr.mxu0 0.0
      %2750 = vmatpush1.msra.mxu0 0.0
      %2751 = vmatprep.mubr.f32.mxu0 0.0
      %2752 = vmatmul.mubr.f32.gmra.mrb[0].mxu0 %v2682
      %v2753 = vpop.f32.mrb[0].mxu0
      %v2754 = vadd.f32 0.0, %v2753
      %v2755 = vpop.f32.mrb[0].mxu0
      %2756 = vdwg.mxu0
      %v2757 = vld [vmem:[%s12] sm:$0xff]
      %v2758 = vld [vmem:[%s12 + $0x8] sm:$0xff]
      %s2759 = scalar_lea.vmem %s11, 8
      %v2760 = vld [vmem:[%s2759] sm:$0x1f]
      %v2762 = vsel %vm2680, %v2760, 0
      %2764 = vmatprep.subr.mxu0 0.0
      %2765 = vmatpush1.msra.mxu0 %v2685
      %2766 = vmatprep.subr.mxu0 0.0
      %2767 = vmatpush1.msra.mxu0 0.0
      %2768 = vmatprep.subr.mxu0 0.0
      %2769 = vmatpush1.msra.mxu0 0.0
      %2770 = vmatprep.subr.mxu0 0.0
      %2771 = vmatpush1.msra.mxu0 0.0
      %2772 = vmatprep.subr.mxu0 0.0
      %2773 = vmatpush1.msra.mxu0 0.0
      %2774 = vmatprep.subr.mxu0 0.0
      %2775 = vmatpush1.msra.mxu0 0.0
      %2776 = vmatprep.subr.mxu0 0.0
      %2777 = vmatpush1.msra.mxu0 0.0
      %2778 = vmatprep.subr.mxu0 0.0
      %2779 = vmatpush1.msra.mxu0 0.0
      %2780 = vmatprep.subr.mxu0 0.0
      %2781 = vmatpush1.msra.mxu0 0.0
      %2782 = vmatprep.subr.mxu0 0.0
      %2783 = vmatpush1.msra.mxu0 0.0
      %2784 = vmatprep.subr.mxu0 0.0
      %2785 = vmatpush1.msra.mxu0 0.0
      %2786 = vmatprep.subr.mxu0 0.0
      %2787 = vmatpush1.msra.mxu0 0.0
      %2788 = vmatprep.subr.mxu0 0.0
      %2789 = vmatpush1.msra.mxu0 0.0
      %2790 = vmatprep.subr.mxu0 0.0
      %2791 = vmatpush1.msra.mxu0 0.0
      %2792 = vmatprep.subr.mxu0 0.0
      %2793 = vmatpush1.msra.mxu0 0.0
      %2794 = vmatprep.subr.mxu0 0.0
      %2795 = vmatpush1.msra.mxu0 0.0
      %2796 = vmatprep.subr.mxu0 0.0
      %2797 = vmatpush1.msra.mxu0 0.0
      %2798 = vmatprep.subr.mxu0 0.0
      %2799 = vmatpush1.msra.mxu0 0.0
      %2800 = vmatprep.subr.mxu0 0.0
      %2801 = vmatpush1.msra.mxu0 0.0
      %2802 = vmatprep.subr.mxu0 0.0
      %2803 = vmatpush1.msra.mxu0 0.0
      %2804 = vmatprep.subr.mxu0 0.0
      %2805 = vmatpush1.msra.mxu0 0.0
      %2806 = vmatprep.subr.mxu0 0.0
      %2807 = vmatpush1.msra.mxu0 0.0
      %2808 = vmatprep.subr.mxu0 0.0
      %2809 = vmatpush1.msra.mxu0 0.0
      %2810 = vmatprep.subr.mxu0 0.0
      %2811 = vmatpush1.msra.mxu0 0.0
      %2812 = vmatprep.subr.mxu0 0.0
      %2813 = vmatpush1.msra.mxu0 0.0
      %2814 = vmatprep.subr.mxu0 0.0
      %2815 = vmatpush1.msra.mxu0 0.0
      %2816 = vmatprep.subr.mxu0 0.0
      %2817 = vmatpush1.msra.mxu0 0.0
      %2818 = vmatprep.subr.mxu0 0.0
      %2819 = vmatpush1.msra.mxu0 0.0
      %2820 = vmatprep.subr.mxu0 0.0
      %2821 = vmatpush1.msra.mxu0 0.0
      %2822 = vmatprep.subr.mxu0 0.0
      %2823 = vmatpush1.msra.mxu0 0.0
      %2824 = vmatprep.subr.mxu0 0.0
      %2825 = vmatpush1.msra.mxu0 0.0
      %2826 = vmatprep.subr.mxu0 0.0
      %2827 = vmatpush1.msra.mxu0 0.0
      %2828 = vmatprep.mubr.f32.mxu0 0.0
      %2829 = vmatmul.mubr.f32.gmra.mrb[0].mxu0 %v2762
      %v2830 = vpop.f32.mrb[0].mxu0
      %v2831 = vadd.f32 0.0, %v2830
      %v2832 = vpop.f32.mrb[0].mxu0
      %2833 = vdwg.mxu0
      %s2834 = scalar_lea.vmem %s12, 16
      %v2835 = vld [vmem:[%s2834] sm:$0xff]
      %v2836 = vld [vmem:[%s2834 + $0x8] sm:$0xff]
      %vm2837 = vcmask 130048
      %v2839 = vsel %vm2837, %v2831, 0
      %2841 = vmatprep.subr.mxu0 0.0
      %2842 = vmatpush1.msra.mxu0 %v2835
      %2843 = vmatprep.subr.mxu0 0.0
      %2844 = vmatpush1.msra.mxu0 %v2836
      %2845 = vmatprep.subr.mxu0 0.0
      %2846 = vmatpush1.msra.mxu0 0.0
      %2847 = vmatprep.subr.mxu0 0.0
      %2848 = vmatpush1.msra.mxu0 0.0
      %2849 = vmatprep.subr.mxu0 0.0
      %2850 = vmatpush1.msra.mxu0 0.0
      %2851 = vmatprep.subr.mxu0 0.0
      %2852 = vmatpush1.msra.mxu0 0.0
      %2853 = vmatprep.subr.mxu0 0.0
      %2854 = vmatpush1.msra.mxu0 0.0
      %2855 = vmatprep.subr.mxu0 0.0
      %2856 = vmatpush1.msra.mxu0 0.0
      %2857 = vmatprep.subr.mxu0 0.0
      %2858 = vmatpush1.msra.mxu0 0.0
      %2859 = vmatprep.subr.mxu0 0.0
      %2860 = vmatpush1.msra.mxu0 0.0
      %2861 = vmatprep.subr.mxu0 0.0
      %2862 = vmatpush1.msra.mxu0 0.0
      %2863 = vmatprep.subr.mxu0 0.0
      %2864 = vmatpush1.msra.mxu0 0.0
      %2865 = vmatprep.subr.mxu0 0.0
      %2866 = vmatpush1.msra.mxu0 0.0
      %2867 = vmatprep.subr.mxu0 0.0
      %2868 = vmatpush1.msra.mxu0 0.0
      %2869 = vmatprep.subr.mxu0 0.0
      %2870 = vmatpush1.msra.mxu0 0.0
      %2871 = vmatprep.subr.mxu0 0.0
      %2872 = vmatpush1.msra.mxu0 0.0
      %2873 = vmatprep.subr.mxu0 0.0
      %2874 = vmatpush1.msra.mxu0 0.0
      %2875 = vmatprep.subr.mxu0 0.0
      %2876 = vmatpush1.msra.mxu0 0.0
      %2877 = vmatprep.subr.mxu0 0.0
      %2878 = vmatpush1.msra.mxu0 0.0
      %2879 = vmatprep.subr.mxu0 0.0
      %2880 = vmatpush1.msra.mxu0 0.0
      %2881 = vmatprep.subr.mxu0 0.0
      %2882 = vmatpush1.msra.mxu0 0.0
      %2883 = vmatprep.subr.mxu0 0.0
      %2884 = vmatpush1.msra.mxu0 0.0
      %2885 = vmatprep.subr.mxu0 0.0
      %2886 = vmatpush1.msra.mxu0 0.0
      %2887 = vmatprep.subr.mxu0 0.0
      %2888 = vmatpush1.msra.mxu0 0.0
      %2889 = vmatprep.subr.mxu0 0.0
      %2890 = vmatpush1.msra.mxu0 0.0
      %2891 = vmatprep.subr.mxu0 0.0
      %2892 = vmatpush1.msra.mxu0 0.0
      %2893 = vmatprep.subr.mxu0 0.0
      %2894 = vmatpush1.msra.mxu0 0.0
      %2895 = vmatprep.subr.mxu0 0.0
      %2896 = vmatpush1.msra.mxu0 0.0
      %2897 = vmatprep.subr.mxu0 0.0
      %2898 = vmatpush1.msra.mxu0 0.0
      %2899 = vmatprep.subr.mxu0 0.0
      %2900 = vmatpush1.msra.mxu0 0.0
      %2901 = vmatprep.subr.mxu0 0.0
      %2902 = vmatpush1.msra.mxu0 0.0
      %2903 = vmatprep.subr.mxu0 0.0
      %2904 = vmatpush1.msra.mxu0 0.0
      %2905 = vmatprep.mubr.f32.mxu0 0.0
      %2906 = vmatmul.mubr.f32.gmra.mrb[0].mxu0 %v2839
      %v2907 = vpop.f32.mrb[0].mxu0
      %v2908 = vadd.f32 0.0, %v2907
      %v2909 = vpop.f32.mrb[0].mxu0
      %2910 = vdwg.mxu0
      %v2912 = vsel %vm2837, %v2754, 0
      %2914 = vmatprep.subr.mxu0 0.0
      %2915 = vmatpush1.msra.mxu0 %v2757
      %2916 = vmatprep.subr.mxu0 0.0
      %2917 = vmatpush1.msra.mxu0 %v2758
      %2918 = vmatprep.subr.mxu0 0.0
      %2919 = vmatpush1.msra.mxu0 0.0
      %2920 = vmatprep.subr.mxu0 0.0
      %2921 = vmatpush1.msra.mxu0 0.0
      %2922 = vmatprep.subr.mxu0 0.0
      %2923 = vmatpush1.msra.mxu0 0.0
      %2924 = vmatprep.subr.mxu0 0.0
      %2925 = vmatpush1.msra.mxu0 0.0
      %2926 = vmatprep.subr.mxu0 0.0
      %2927 = vmatpush1.msra.mxu0 0.0
      %2928 = vmatprep.subr.mxu0 0.0
      %2929 = vmatpush1.msra.mxu0 0.0
      %2930 = vmatprep.subr.mxu0 0.0
      %2931 = vmatpush1.msra.mxu0 0.0
      %2932 = vmatprep.subr.mxu0 0.0
      %2933 = vmatpush1.msra.mxu0 0.0
      %2934 = vmatprep.subr.mxu0 0.0
      %2935 = vmatpush1.msra.mxu0 0.0
      %2936 = vmatprep.subr.mxu0 0.0
      %2937 = vmatpush1.msra.mxu0 0.0
      %2938 = vmatprep.subr.mxu0 0.0
      %2939 = vmatpush1.msra.mxu0 0.0
      %2940 = vmatprep.subr.mxu0 0.0
      %2941 = vmatpush1.msra.mxu0 0.0
      %2942 = vmatprep.subr.mxu0 0.0
      %2943 = vmatpush1.msra.mxu0 0.0
      %2944 = vmatprep.subr.mxu0 0.0
      %2945 = vmatpush1.msra.mxu0 0.0
      %2946 = vmatprep.subr.mxu0 0.0
      %2947 = vmatpush1.msra.mxu0 0.0
      %2948 = vmatprep.subr.mxu0 0.0
      %2949 = vmatpush1.msra.mxu0 0.0
      %2950 = vmatprep.subr.mxu0 0.0
      %2951 = vmatpush1.msra.mxu0 0.0
      %2952 = vmatprep.subr.mxu0 0.0
      %2953 = vmatpush1.msra.mxu0 0.0
      %2954 = vmatprep.subr.mxu0 0.0
      %2955 = vmatpush1.msra.mxu0 0.0
      %2956 = vmatprep.subr.mxu0 0.0
      %2957 = vmatpush1.msra.mxu0 0.0
      %2958 = vmatprep.subr.mxu0 0.0
      %2959 = vmatpush1.msra.mxu0 0.0
      %2960 = vmatprep.subr.mxu0 0.0
      %2961 = vmatpush1.msra.mxu0 0.0
      %2962 = vmatprep.subr.mxu0 0.0
      %2963 = vmatpush1.msra.mxu0 0.0
      %2964 = vmatprep.subr.mxu0 0.0
      %2965 = vmatpush1.msra.mxu0 0.0
      %2966 = vmatprep.subr.mxu0 0.0
      %2967 = vmatpush1.msra.mxu0 0.0
      %2968 = vmatprep.subr.mxu0 0.0
      %2969 = vmatpush1.msra.mxu0 0.0
      %2970 = vmatprep.subr.mxu0 0.0
      %2971 = vmatpush1.msra.mxu0 0.0
      %2972 = vmatprep.subr.mxu0 0.0
      %2973 = vmatpush1.msra.mxu0 0.0
      %2974 = vmatprep.subr.mxu0 0.0
      %2975 = vmatpush1.msra.mxu0 0.0
      %2976 = vmatprep.subr.mxu0 0.0
      %2977 = vmatpush1.msra.mxu0 0.0
      %2978 = vmatprep.mubr.f32.mxu0 0.0
      %2979 = vmatmul.mubr.f32.gmra.mrb[0].mxu0 %v2912
      %v2980 = vpop.f32.mrb[0].mxu0
      %v2981 = vadd.f32 %v2908, %v2980
      %v2982 = vpop.f32.mrb[0].mxu0
      %2983 = vdwg.mxu0
      %s2984 = scalar_lea.vmem %s11, 16
      %v2985 = vld [vmem:[%s2984] sm:$0x1f]
      %v2987 = vsel %vm2680, %v2985, 0
      %2989 = vmatprep.subr.mxu0 0.0
      %2990 = vmatpush1.msra.mxu0 %v2685
      %2991 = vmatprep.subr.mxu0 0.0
      %2992 = vmatpush1.msra.mxu0 0.0
      %2993 = vmatprep.subr.mxu0 0.0
      %2994 = vmatpush1.msra.mxu0 0.0
      %2995 = vmatprep.subr.mxu0 0.0
      %2996 = vmatpush1.msra.mxu0 0.0
      %2997 = vmatprep.subr.mxu0 0.0
      %2998 = vmatpush1.msra.mxu0 0.0
      %2999 = vmatprep.subr.mxu0 0.0
      %3000 = vmatpush1.msra.mxu0 0.0
      %3001 = vmatprep.subr.mxu0 0.0
      %3002 = vmatpush1.msra.mxu0 0.0
      %3003 = vmatprep.subr.mxu0 0.0
      %3004 = vmatpush1.msra.mxu0 0.0
      %3005 = vmatprep.subr.mxu0 0.0
      %3006 = vmatpush1.msra.mxu0 0.0
      %3007 = vmatprep.subr.mxu0 0.0
      %3008 = vmatpush1.msra.mxu0 0.0
      %3009 = vmatprep.subr.mxu0 0.0
      %3010 = vmatpush1.msra.mxu0 0.0
      %3011 = vmatprep.subr.mxu0 0.0
      %3012 = vmatpush1.msra.mxu0 0.0
      %3013 = vmatprep.subr.mxu0 0.0
      %3014 = vmatpush1.msra.mxu0 0.0
      %3015 = vmatprep.subr.mxu0 0.0
      %3016 = vmatpush1.msra.mxu0 0.0
      %3017 = vmatprep.subr.mxu0 0.0
      %3018 = vmatpush1.msra.mxu0 0.0
      %3019 = vmatprep.subr.mxu0 0.0
      %3020 = vmatpush1.msra.mxu0 0.0
      %3021 = vmatprep.subr.mxu0 0.0
      %3022 = vmatpush1.msra.mxu0 0.0
      %3023 = vmatprep.subr.mxu0 0.0
      %3024 = vmatpush1.msra.mxu0 0.0
      %3025 = vmatprep.subr.mxu0 0.0
      %3026 = vmatpush1.msra.mxu0 0.0
      %3027 = vmatprep.subr.mxu0 0.0
      %3028 = vmatpush1.msra.mxu0 0.0
      %3029 = vmatprep.subr.mxu0 0.0
      %3030 = vmatpush1.msra.mxu0 0.0
      %3031 = vmatprep.subr.mxu0 0.0
      %3032 = vmatpush1.msra.mxu0 0.0
      %3033 = vmatprep.subr.mxu0 0.0
      %3034 = vmatpush1.msra.mxu0 0.0
      %3035 = vmatprep.subr.mxu0 0.0
      %3036 = vmatpush1.msra.mxu0 0.0
      %3037 = vmatprep.subr.mxu0 0.0
      %3038 = vmatpush1.msra.mxu0 0.0
      %3039 = vmatprep.subr.mxu0 0.0
      %3040 = vmatpush1.msra.mxu0 0.0
      %3041 = vmatprep.subr.mxu0 0.0
      %3042 = vmatpush1.msra.mxu0 0.0
      %3043 = vmatprep.subr.mxu0 0.0
      %3044 = vmatpush1.msra.mxu0 0.0
      %3045 = vmatprep.subr.mxu0 0.0
      %3046 = vmatpush1.msra.mxu0 0.0
      %3047 = vmatprep.subr.mxu0 0.0
      %3048 = vmatpush1.msra.mxu0 0.0
      %3049 = vmatprep.subr.mxu0 0.0
      %3050 = vmatpush1.msra.mxu0 0.0
      %3051 = vmatprep.subr.mxu0 0.0
      %3052 = vmatpush1.msra.mxu0 0.0
      %3053 = vmatprep.mubr.f32.mxu0 0.0
      %3054 = vmatmul.mubr.f32.gmra.mrb[0].mxu0 %v2987
      %v3055 = vpop.f32.mrb[0].mxu0
      %v3056 = vadd.f32 0.0, %v3055
      %v3057 = vpop.f32.mrb[0].mxu0
      %3058 = vdwg.mxu0
      %s3059 = scalar_lea.vmem %s12, 32
      %v3060 = vld [vmem:[%s3059] sm:$0xff]
      %v3061 = vld [vmem:[%s3059 + $0x8] sm:$0xff]
      %v3063 = vsel %vm2837, %v3056, 0
      %3065 = vmatprep.subr.mxu0 0.0
      %3066 = vmatpush1.msra.mxu0 %v3060
      %3067 = vmatprep.subr.mxu0 0.0
      %3068 = vmatpush1.msra.mxu0 %v3061
      %3069 = vmatprep.subr.mxu0 0.0
      %3070 = vmatpush1.msra.mxu0 0.0
      %3071 = vmatprep.subr.mxu0 0.0
      %3072 = vmatpush1.msra.mxu0 0.0
      %3073 = vmatprep.subr.mxu0 0.0
      %3074 = vmatpush1.msra.mxu0 0.0
      %3075 = vmatprep.subr.mxu0 0.0
      %3076 = vmatpush1.msra.mxu0 0.0
      %3077 = vmatprep.subr.mxu0 0.0
      %3078 = vmatpush1.msra.mxu0 0.0
      %3079 = vmatprep.subr.mxu0 0.0
      %3080 = vmatpush1.msra.mxu0 0.0
      %3081 = vmatprep.subr.mxu0 0.0
      %3082 = vmatpush1.msra.mxu0 0.0
      %3083 = vmatprep.subr.mxu0 0.0
      %3084 = vmatpush1.msra.mxu0 0.0
      %3085 = vmatprep.subr.mxu0 0.0
      %3086 = vmatpush1.msra.mxu0 0.0
      %3087 = vmatprep.subr.mxu0 0.0
      %3088 = vmatpush1.msra.mxu0 0.0
      %3089 = vmatprep.subr.mxu0 0.0
      %3090 = vmatpush1.msra.mxu0 0.0
      %3091 = vmatprep.subr.mxu0 0.0
      %3092 = vmatpush1.msra.mxu0 0.0
      %3093 = vmatprep.subr.mxu0 0.0
      %3094 = vmatpush1.msra.mxu0 0.0
      %3095 = vmatprep.subr.mxu0 0.0
      %3096 = vmatpush1.msra.mxu0 0.0
      %3097 = vmatprep.subr.mxu0 0.0
      %3098 = vmatpush1.msra.mxu0 0.0
      %3099 = vmatprep.subr.mxu0 0.0
      %3100 = vmatpush1.msra.mxu0 0.0
      %3101 = vmatprep.subr.mxu0 0.0
      %3102 = vmatpush1.msra.mxu0 0.0
      %3103 = vmatprep.subr.mxu0 0.0
      %3104 = vmatpush1.msra.mxu0 0.0
      %3105 = vmatprep.subr.mxu0 0.0
      %3106 = vmatpush1.msra.mxu0 0.0
      %3107 = vmatprep.subr.mxu0 0.0
      %3108 = vmatpush1.msra.mxu0 0.0
      %3109 = vmatprep.subr.mxu0 0.0
      %3110 = vmatpush1.msra.mxu0 0.0
      %3111 = vmatprep.subr.mxu0 0.0
      %3112 = vmatpush1.msra.mxu0 0.0
      %3113 = vmatprep.subr.mxu0 0.0
      %3114 = vmatpush1.msra.mxu0 0.0
      %3115 = vmatprep.subr.mxu0 0.0
      %3116 = vmatpush1.msra.mxu0 0.0
      %3117 = vmatprep.subr.mxu0 0.0
      %3118 = vmatpush1.msra.mxu0 0.0
      %3119 = vmatprep.subr.mxu0 0.0
      %3120 = vmatpush1.msra.mxu0 0.0
      %3121 = vmatprep.subr.mxu0 0.0
      %3122 = vmatpush1.msra.mxu0 0.0
      %3123 = vmatprep.subr.mxu0 0.0
      %3124 = vmatpush1.msra.mxu0 0.0
      %3125 = vmatprep.subr.mxu0 0.0
      %3126 = vmatpush1.msra.mxu0 0.0
      %3127 = vmatprep.subr.mxu0 0.0
      %3128 = vmatpush1.msra.mxu0 0.0
      %3129 = vmatprep.mubr.f32.mxu0 0.0
      %3130 = vmatmul.mubr.f32.gmra.mrb[0].mxu0 %v3063
      %v3131 = vpop.f32.mrb[0].mxu0
      %v3132 = vadd.f32 0.0, %v3131
      %v3133 = vpop.f32.mrb[0].mxu0
      %3134 = vdwg.mxu0
      %v3135 = vadd.f32 %v2981, %v3132
      %v3136 = vld [vmem:[%s13] sm:$0x1]
      %v3138 = vlaneseq
      %v3139 = vshrl.u32 %v3138, 7
      %v3140 = vsub.s32 0, %v3139
      %v3141 = vrot.slane %v3136, %v3140
      %v3143 = vadd.f32 %v3135, %v3141
      %v3144 = vmax.f32 %v3143, 0.0
      %v3145 = vld [vmem:[%s14] sm:$0xff]
      %v3146 = vld [vmem:[%s14 + $0x8] sm:$0x7f]
      %v3148 = vsel %vm1736, %v3145, 0
      %v3151 = vsel %vm1736, %v3146, 0
      %v3154 = vsel %vm1740, %v3144, 0
      %3156 = vmatprep.subr.mxu0 0.0
      %3157 = vmatpush1.msra.mxu0 %v3154
      %3158 = vmatprep.subr.mxu0 0.0
      %3159 = vmatpush1.msra.mxu0 0.0
      %3160 = vmatprep.subr.mxu0 0.0
      %3161 = vmatpush1.msra.mxu0 0.0
      %3162 = vmatprep.subr.mxu0 0.0
      %3163 = vmatpush1.msra.mxu0 0.0
      %3164 = vmatprep.subr.mxu0 0.0
      %3165 = vmatpush1.msra.mxu0 0.0
      %3166 = vmatprep.subr.mxu0 0.0
      %3167 = vmatpush1.msra.mxu0 0.0
      %3168 = vmatprep.subr.mxu0 0.0
      %3169 = vmatpush1.msra.mxu0 0.0
      %3170 = vmatprep.subr.mxu0 0.0
      %3171 = vmatpush1.msra.mxu0 0.0
      %3172 = vmatprep.subr.mxu0 0.0
      %3173 = vmatpush1.msra.mxu0 0.0
      %3174 = vmatprep.subr.mxu0 0.0
      %3175 = vmatpush1.msra.mxu0 0.0
      %3176 = vmatprep.subr.mxu0 0.0
      %3177 = vmatpush1.msra.mxu0 0.0
      %3178 = vmatprep.subr.mxu0 0.0
      %3179 = vmatpush1.msra.mxu0 0.0
      %3180 = vmatprep.subr.mxu0 0.0
      %3181 = vmatpush1.msra.mxu0 0.0
      %3182 = vmatprep.subr.mxu0 0.0
      %3183 = vmatpush1.msra.mxu0 0.0
      %3184 = vmatprep.subr.mxu0 0.0
      %3185 = vmatpush1.msra.mxu0 0.0
      %3186 = vmatprep.subr.mxu0 0.0
      %3187 = vmatpush1.msra.mxu0 0.0
      %3188 = vmatprep.subr.mxu0 0.0
      %3189 = vmatpush1.msra.mxu0 0.0
      %3190 = vmatprep.subr.mxu0 0.0
      %3191 = vmatpush1.msra.mxu0 0.0
      %3192 = vmatprep.subr.mxu0 0.0
      %3193 = vmatpush1.msra.mxu0 0.0
      %3194 = vmatprep.subr.mxu0 0.0
      %3195 = vmatpush1.msra.mxu0 0.0
      %3196 = vmatprep.subr.mxu0 0.0
      %3197 = vmatpush1.msra.mxu0 0.0
      %3198 = vmatprep.subr.mxu0 0.0
      %3199 = vmatpush1.msra.mxu0 0.0
      %3200 = vmatprep.subr.mxu0 0.0
      %3201 = vmatpush1.msra.mxu0 0.0
      %3202 = vmatprep.subr.mxu0 0.0
      %3203 = vmatpush1.msra.mxu0 0.0
      %3204 = vmatprep.subr.mxu0 0.0
      %3205 = vmatpush1.msra.mxu0 0.0
      %3206 = vmatprep.subr.mxu0 0.0
      %3207 = vmatpush1.msra.mxu0 0.0
      %3208 = vmatprep.subr.mxu0 0.0
      %3209 = vmatpush1.msra.mxu0 0.0
      %3210 = vmatprep.subr.mxu0 0.0
      %3211 = vmatpush1.msra.mxu0 0.0
      %3212 = vmatprep.subr.mxu0 0.0
      %3213 = vmatpush1.msra.mxu0 0.0
      %3214 = vmatprep.subr.mxu0 0.0
      %3215 = vmatpush1.msra.mxu0 0.0
      %3216 = vmatprep.subr.mxu0 0.0
      %3217 = vmatpush1.msra.mxu0 0.0
      %3218 = vmatprep.subr.mxu0 0.0
      %3219 = vmatpush1.msra.mxu0 0.0
      %3220 = vmatprep.mubr.f32.mxu0 0.0
      %3221 = vmatmul.mubr.f32.gmra.mrb[0].mxu0 %v3148
      %v3222 = vpop.f32.mrb[0].mxu0
      %v3223 = vadd.f32 0.0, %v3222
      %v3224 = vpop.f32.mrb[0].mxu0
      %3225 = vmatprep.mubr.f32.mxu0 0.0
      %3226 = vmatmul.mubr.f32.gmra.mrb[0].mxu0 %v3151
      %v3227 = vpop.f32.mrb[0].mxu0
      %v3228 = vadd.f32 0.0, %v3227
      %v3229 = vpop.f32.mrb[0].mxu0
      %3230 = vdwg.mxu0
      %v3231 = vld [vmem:[%s15] sm:$0xff]
      %v3232 = vld [vmem:[%s15 + $0x8] sm:$0xff]
      %v3233 = vld [vmem:[%s15 + $0x10] sm:$0xff]
      %v3234 = vld [vmem:[%s15 + $0x18] sm:$0xff]
      %v3235 = vld [vmem:[%s15 + $0x20] sm:$0xff]
      %v3236 = vld [vmem:[%s15 + $0x28] sm:$0xff]
      %v3237 = vld [vmem:[%s15 + $0x30] sm:$0xff]
      %v3238 = vld [vmem:[%s15 + $0x38] sm:$0xff]
      %v3239 = vld [vmem:[%s15 + $0x40] sm:$0xff]
      %v3240 = vld [vmem:[%s15 + $0x48] sm:$0xff]
      %s3241 = scalar_lea.vmem %s14, 16
      %v3242 = vld [vmem:[%s3241] sm:$0xff]
      %v3243 = vld [vmem:[%s3241 + $0x8] sm:$0x7f]
      %v3245 = vsel %vm1736, %v3242, 0
      %v3248 = vsel %vm1736, %v3243, 0
      %3250 = vmatprep.subr.mxu0 0.0
      %3251 = vmatpush1.msra.mxu0 %v3154
      %3252 = vmatprep.subr.mxu0 0.0
      %3253 = vmatpush1.msra.mxu0 0.0
      %3254 = vmatprep.subr.mxu0 0.0
      %3255 = vmatpush1.msra.mxu0 0.0
      %3256 = vmatprep.subr.mxu0 0.0
      %3257 = vmatpush1.msra.mxu0 0.0
      %3258 = vmatprep.subr.mxu0 0.0
      %3259 = vmatpush1.msra.mxu0 0.0
      %3260 = vmatprep.subr.mxu0 0.0
      %3261 = vmatpush1.msra.mxu0 0.0
      %3262 = vmatprep.subr.mxu0 0.0
      %3263 = vmatpush1.msra.mxu0 0.0
      %3264 = vmatprep.subr.mxu0 0.0
      %3265 = vmatpush1.msra.mxu0 0.0
      %3266 = vmatprep.subr.mxu0 0.0
      %3267 = vmatpush1.msra.mxu0 0.0
      %3268 = vmatprep.subr.mxu0 0.0
      %3269 = vmatpush1.msra.mxu0 0.0
      %3270 = vmatprep.subr.mxu0 0.0
      %3271 = vmatpush1.msra.mxu0 0.0
      %3272 = vmatprep.subr.mxu0 0.0
      %3273 = vmatpush1.msra.mxu0 0.0
      %3274 = vmatprep.subr.mxu0 0.0
      %3275 = vmatpush1.msra.mxu0 0.0
      %3276 = vmatprep.subr.mxu0 0.0
      %3277 = vmatpush1.msra.mxu0 0.0
      %3278 = vmatprep.subr.mxu0 0.0
      %3279 = vmatpush1.msra.mxu0 0.0
      %3280 = vmatprep.subr.mxu0 0.0
      %3281 = vmatpush1.msra.mxu0 0.0
      %3282 = vmatprep.subr.mxu0 0.0
      %3283 = vmatpush1.msra.mxu0 0.0
      %3284 = vmatprep.subr.mxu0 0.0
      %3285 = vmatpush1.msra.mxu0 0.0
      %3286 = vmatprep.subr.mxu0 0.0
      %3287 = vmatpush1.msra.mxu0 0.0
      %3288 = vmatprep.subr.mxu0 0.0
      %3289 = vmatpush1.msra.mxu0 0.0
      %3290 = vmatprep.subr.mxu0 0.0
      %3291 = vmatpush1.msra.mxu0 0.0
      %3292 = vmatprep.subr.mxu0 0.0
      %3293 = vmatpush1.msra.mxu0 0.0
      %3294 = vmatprep.subr.mxu0 0.0
      %3295 = vmatpush1.msra.mxu0 0.0
      %3296 = vmatprep.subr.mxu0 0.0
      %3297 = vmatpush1.msra.mxu0 0.0
      %3298 = vmatprep.subr.mxu0 0.0
      %3299 = vmatpush1.msra.mxu0 0.0
      %3300 = vmatprep.subr.mxu0 0.0
      %3301 = vmatpush1.msra.mxu0 0.0
      %3302 = vmatprep.subr.mxu0 0.0
      %3303 = vmatpush1.msra.mxu0 0.0
      %3304 = vmatprep.subr.mxu0 0.0
      %3305 = vmatpush1.msra.mxu0 0.0
      %3306 = vmatprep.subr.mxu0 0.0
      %3307 = vmatpush1.msra.mxu0 0.0
      %3308 = vmatprep.subr.mxu0 0.0
      %3309 = vmatpush1.msra.mxu0 0.0
      %3310 = vmatprep.subr.mxu0 0.0
      %3311 = vmatpush1.msra.mxu0 0.0
      %3312 = vmatprep.subr.mxu0 0.0
      %3313 = vmatpush1.msra.mxu0 0.0
      %3314 = vmatprep.mubr.f32.mxu0 0.0
      %3315 = vmatmul.mubr.f32.gmra.mrb[0].mxu0 %v3245
      %v3316 = vpop.f32.mrb[0].mxu0
      %v3317 = vadd.f32 0.0, %v3316
      %v3318 = vpop.f32.mrb[0].mxu0
      %3319 = vmatprep.mubr.f32.mxu0 0.0
      %3320 = vmatmul.mubr.f32.gmra.mrb[0].mxu0 %v3248
      %v3321 = vpop.f32.mrb[0].mxu0
      %v3322 = vadd.f32 0.0, %v3321
      %v3323 = vpop.f32.mrb[0].mxu0
      %3324 = vdwg.mxu0
      %s3325 = scalar_lea.vmem %s15, 80
      %v3326 = vld [vmem:[%s3325] sm:$0xff]
      %v3327 = vld [vmem:[%s3325 + $0x8] sm:$0xff]
      %v3328 = vld [vmem:[%s3325 + $0x10] sm:$0xff]
      %v3329 = vld [vmem:[%s3325 + $0x18] sm:$0xff]
      %v3330 = vld [vmem:[%s3325 + $0x20] sm:$0xff]
      %v3331 = vld [vmem:[%s3325 + $0x28] sm:$0xff]
      %v3332 = vld [vmem:[%s3325 + $0x30] sm:$0xff]
      %v3333 = vld [vmem:[%s3325 + $0x38] sm:$0xff]
      %v3334 = vld [vmem:[%s3325 + $0x40] sm:$0xff]
      %v3335 = vld [vmem:[%s3325 + $0x48] sm:$0xff]
      %v3337 = vsel %vm1910, %v3317, 0
      %v3340 = vsel %vm1910, %v3322, 0
      %3342 = vmatprep.subr.mxu0 0.0
      %3343 = vmatpush1.msra.mxu0 %v3326
      %3344 = vmatprep.subr.mxu0 0.0
      %3345 = vmatpush1.msra.mxu0 %v3327
      %3346 = vmatprep.subr.mxu0 0.0
      %3347 = vmatpush1.msra.mxu0 %v3328
      %3348 = vmatprep.subr.mxu0 0.0
      %3349 = vmatpush1.msra.mxu0 %v3329
      %3350 = vmatprep.subr.mxu0 0.0
      %3351 = vmatpush1.msra.mxu0 %v3330
      %3352 = vmatprep.subr.mxu0 0.0
      %3353 = vmatpush1.msra.mxu0 %v3331
      %3354 = vmatprep.subr.mxu0 0.0
      %3355 = vmatpush1.msra.mxu0 %v3332
      %3356 = vmatprep.subr.mxu0 0.0
      %3357 = vmatpush1.msra.mxu0 %v3333
      %3358 = vmatprep.subr.mxu0 0.0
      %3359 = vmatpush1.msra.mxu0 %v3334
      %3360 = vmatprep.subr.mxu0 0.0
      %3361 = vmatpush1.msra.mxu0 %v3335
      %3362 = vmatprep.subr.mxu0 0.0
      %3363 = vmatpush1.msra.mxu0 0.0
      %3364 = vmatprep.subr.mxu0 0.0
      %3365 = vmatpush1.msra.mxu0 0.0
      %3366 = vmatprep.subr.mxu0 0.0
      %3367 = vmatpush1.msra.mxu0 0.0
      %3368 = vmatprep.subr.mxu0 0.0
      %3369 = vmatpush1.msra.mxu0 0.0
      %3370 = vmatprep.subr.mxu0 0.0
      %3371 = vmatpush1.msra.mxu0 0.0
      %3372 = vmatprep.subr.mxu0 0.0
      %3373 = vmatpush1.msra.mxu0 0.0
      %3374 = vmatprep.subr.mxu0 0.0
      %3375 = vmatpush1.msra.mxu0 0.0
      %3376 = vmatprep.subr.mxu0 0.0
      %3377 = vmatpush1.msra.mxu0 0.0
      %3378 = vmatprep.subr.mxu0 0.0
      %3379 = vmatpush1.msra.mxu0 0.0
      %3380 = vmatprep.subr.mxu0 0.0
      %3381 = vmatpush1.msra.mxu0 0.0
      %3382 = vmatprep.subr.mxu0 0.0
      %3383 = vmatpush1.msra.mxu0 0.0
      %3384 = vmatprep.subr.mxu0 0.0
      %3385 = vmatpush1.msra.mxu0 0.0
      %3386 = vmatprep.subr.mxu0 0.0
      %3387 = vmatpush1.msra.mxu0 0.0
      %3388 = vmatprep.subr.mxu0 0.0
      %3389 = vmatpush1.msra.mxu0 0.0
      %3390 = vmatprep.subr.mxu0 0.0
      %3391 = vmatpush1.msra.mxu0 0.0
      %3392 = vmatprep.subr.mxu0 0.0
      %3393 = vmatpush1.msra.mxu0 0.0
      %3394 = vmatprep.subr.mxu0 0.0
      %3395 = vmatpush1.msra.mxu0 0.0
      %3396 = vmatprep.subr.mxu0 0.0
      %3397 = vmatpush1.msra.mxu0 0.0
      %3398 = vmatprep.subr.mxu0 0.0
      %3399 = vmatpush1.msra.mxu0 0.0
      %3400 = vmatprep.subr.mxu0 0.0
      %3401 = vmatpush1.msra.mxu0 0.0
      %3402 = vmatprep.subr.mxu0 0.0
      %3403 = vmatpush1.msra.mxu0 0.0
      %3404 = vmatprep.subr.mxu0 0.0
      %3405 = vmatpush1.msra.mxu0 0.0
      %3406 = vmatprep.mubr.f32.mxu0 0.0
      %3407 = vmatmul.mubr.f32.gmra.mrb[0].mxu0 %v3337
      %v3408 = vpop.f32.mrb[0].mxu0
      %v3409 = vadd.f32 0.0, %v3408
      %v3410 = vpop.f32.mrb[0].mxu0
      %3411 = vmatprep.mubr.f32.mxu0 0.0
      %3412 = vmatmul.mubr.f32.gmra.mrb[0].mxu0 %v3340
      %v3413 = vpop.f32.mrb[0].mxu0
      %v3414 = vadd.f32 0.0, %v3413
      %v3415 = vpop.f32.mrb[0].mxu0
      %3416 = vdwg.mxu0
      %v3418 = vsel %vm1910, %v3223, 0
      %v3421 = vsel %vm1910, %v3228, 0
      %3423 = vmatprep.subr.mxu0 0.0
      %3424 = vmatpush1.msra.mxu0 %v3231
      %3425 = vmatprep.subr.mxu0 0.0
      %3426 = vmatpush1.msra.mxu0 %v3232
      %3427 = vmatprep.subr.mxu0 0.0
      %3428 = vmatpush1.msra.mxu0 %v3233
      %3429 = vmatprep.subr.mxu0 0.0
      %3430 = vmatpush1.msra.mxu0 %v3234
      %3431 = vmatprep.subr.mxu0 0.0
      %3432 = vmatpush1.msra.mxu0 %v3235
      %3433 = vmatprep.subr.mxu0 0.0
      %3434 = vmatpush1.msra.mxu0 %v3236
      %3435 = vmatprep.subr.mxu0 0.0
      %3436 = vmatpush1.msra.mxu0 %v3237
      %3437 = vmatprep.subr.mxu0 0.0
      %3438 = vmatpush1.msra.mxu0 %v3238
      %3439 = vmatprep.subr.mxu0 0.0
      %3440 = vmatpush1.msra.mxu0 %v3239
      %3441 = vmatprep.subr.mxu0 0.0
      %3442 = vmatpush1.msra.mxu0 %v3240
      %3443 = vmatprep.subr.mxu0 0.0
      %3444 = vmatpush1.msra.mxu0 0.0
      %3445 = vmatprep.subr.mxu0 0.0
      %3446 = vmatpush1.msra.mxu0 0.0
      %3447 = vmatprep.subr.mxu0 0.0
      %3448 = vmatpush1.msra.mxu0 0.0
      %3449 = vmatprep.subr.mxu0 0.0
      %3450 = vmatpush1.msra.mxu0 0.0
      %3451 = vmatprep.subr.mxu0 0.0
      %3452 = vmatpush1.msra.mxu0 0.0
      %3453 = vmatprep.subr.mxu0 0.0
      %3454 = vmatpush1.msra.mxu0 0.0
      %3455 = vmatprep.subr.mxu0 0.0
      %3456 = vmatpush1.msra.mxu0 0.0
      %3457 = vmatprep.subr.mxu0 0.0
      %3458 = vmatpush1.msra.mxu0 0.0
      %3459 = vmatprep.subr.mxu0 0.0
      %3460 = vmatpush1.msra.mxu0 0.0
      %3461 = vmatprep.subr.mxu0 0.0
      %3462 = vmatpush1.msra.mxu0 0.0
      %3463 = vmatprep.subr.mxu0 0.0
      %3464 = vmatpush1.msra.mxu0 0.0
      %3465 = vmatprep.subr.mxu0 0.0
      %3466 = vmatpush1.msra.mxu0 0.0
      %3467 = vmatprep.subr.mxu0 0.0
      %3468 = vmatpush1.msra.mxu0 0.0
      %3469 = vmatprep.subr.mxu0 0.0
      %3470 = vmatpush1.msra.mxu0 0.0
      %3471 = vmatprep.subr.mxu0 0.0
      %3472 = vmatpush1.msra.mxu0 0.0
      %3473 = vmatprep.subr.mxu0 0.0
      %3474 = vmatpush1.msra.mxu0 0.0
      %3475 = vmatprep.subr.mxu0 0.0
      %3476 = vmatpush1.msra.mxu0 0.0
      %3477 = vmatprep.subr.mxu0 0.0
      %3478 = vmatpush1.msra.mxu0 0.0
      %3479 = vmatprep.subr.mxu0 0.0
      %3480 = vmatpush1.msra.mxu0 0.0
      %3481 = vmatprep.subr.mxu0 0.0
      %3482 = vmatpush1.msra.mxu0 0.0
      %3483 = vmatprep.subr.mxu0 0.0
      %3484 = vmatpush1.msra.mxu0 0.0
      %3485 = vmatprep.subr.mxu0 0.0
      %3486 = vmatpush1.msra.mxu0 0.0
      %3487 = vmatprep.mubr.f32.mxu0 0.0
      %3488 = vmatmul.mubr.f32.gmra.mrb[0].mxu0 %v3418
      %v3489 = vpop.f32.mrb[0].mxu0
      %v3490 = vadd.f32 %v3409, %v3489
      %v3491 = vpop.f32.mrb[0].mxu0
      %3492 = vmatprep.mubr.f32.mxu0 0.0
      %3493 = vmatmul.mubr.f32.gmra.mrb[0].mxu0 %v3421
      %v3494 = vpop.f32.mrb[0].mxu0
      %v3495 = vadd.f32 %v3414, %v3494
      %v3496 = vpop.f32.mrb[0].mxu0
      %3497 = vdwg.mxu0
      %s3498 = scalar_lea.vmem %s14, 32
      %v3499 = vld [vmem:[%s3498] sm:$0xff]
      %v3500 = vld [vmem:[%s3498 + $0x8] sm:$0x7f]
      %v3502 = vsel %vm1736, %v3499, 0
      %v3505 = vsel %vm1736, %v3500, 0
      %3507 = vmatprep.subr.mxu0 0.0
      %3508 = vmatpush1.msra.mxu0 %v3154
      %3509 = vmatprep.subr.mxu0 0.0
      %3510 = vmatpush1.msra.mxu0 0.0
      %3511 = vmatprep.subr.mxu0 0.0
      %3512 = vmatpush1.msra.mxu0 0.0
      %3513 = vmatprep.subr.mxu0 0.0
      %3514 = vmatpush1.msra.mxu0 0.0
      %3515 = vmatprep.subr.mxu0 0.0
      %3516 = vmatpush1.msra.mxu0 0.0
      %3517 = vmatprep.subr.mxu0 0.0
      %3518 = vmatpush1.msra.mxu0 0.0
      %3519 = vmatprep.subr.mxu0 0.0
      %3520 = vmatpush1.msra.mxu0 0.0
      %3521 = vmatprep.subr.mxu0 0.0
      %3522 = vmatpush1.msra.mxu0 0.0
      %3523 = vmatprep.subr.mxu0 0.0
      %3524 = vmatpush1.msra.mxu0 0.0
      %3525 = vmatprep.subr.mxu0 0.0
      %3526 = vmatpush1.msra.mxu0 0.0
      %3527 = vmatprep.subr.mxu0 0.0
      %3528 = vmatpush1.msra.mxu0 0.0
      %3529 = vmatprep.subr.mxu0 0.0
      %3530 = vmatpush1.msra.mxu0 0.0
      %3531 = vmatprep.subr.mxu0 0.0
      %3532 = vmatpush1.msra.mxu0 0.0
      %3533 = vmatprep.subr.mxu0 0.0
      %3534 = vmatpush1.msra.mxu0 0.0
      %3535 = vmatprep.subr.mxu0 0.0
      %3536 = vmatpush1.msra.mxu0 0.0
      %3537 = vmatprep.subr.mxu0 0.0
      %3538 = vmatpush1.msra.mxu0 0.0
      %3539 = vmatprep.subr.mxu0 0.0
      %3540 = vmatpush1.msra.mxu0 0.0
      %3541 = vmatprep.subr.mxu0 0.0
      %3542 = vmatpush1.msra.mxu0 0.0
      %3543 = vmatprep.subr.mxu0 0.0
      %3544 = vmatpush1.msra.mxu0 0.0
      %3545 = vmatprep.subr.mxu0 0.0
      %3546 = vmatpush1.msra.mxu0 0.0
      %3547 = vmatprep.subr.mxu0 0.0
      %3548 = vmatpush1.msra.mxu0 0.0
      %3549 = vmatprep.subr.mxu0 0.0
      %3550 = vmatpush1.msra.mxu0 0.0
      %3551 = vmatprep.subr.mxu0 0.0
      %3552 = vmatpush1.msra.mxu0 0.0
      %3553 = vmatprep.subr.mxu0 0.0
      %3554 = vmatpush1.msra.mxu0 0.0
      %3555 = vmatprep.subr.mxu0 0.0
      %3556 = vmatpush1.msra.mxu0 0.0
      %3557 = vmatprep.subr.mxu0 0.0
      %3558 = vmatpush1.msra.mxu0 0.0
      %3559 = vmatprep.subr.mxu0 0.0
      %3560 = vmatpush1.msra.mxu0 0.0
      %3561 = vmatprep.subr.mxu0 0.0
      %3562 = vmatpush1.msra.mxu0 0.0
      %3563 = vmatprep.subr.mxu0 0.0
      %3564 = vmatpush1.msra.mxu0 0.0
      %3565 = vmatprep.subr.mxu0 0.0
      %3566 = vmatpush1.msra.mxu0 0.0
      %3567 = vmatprep.subr.mxu0 0.0
      %3568 = vmatpush1.msra.mxu0 0.0
      %3569 = vmatprep.subr.mxu0 0.0
      %3570 = vmatpush1.msra.mxu0 0.0
      %3571 = vmatprep.mubr.f32.mxu0 0.0
      %3572 = vmatmul.mubr.f32.gmra.mrb[0].mxu0 %v3502
      %v3573 = vpop.f32.mrb[0].mxu0
      %v3574 = vadd.f32 0.0, %v3573
      %v3575 = vpop.f32.mrb[0].mxu0
      %3576 = vmatprep.mubr.f32.mxu0 0.0
      %3577 = vmatmul.mubr.f32.gmra.mrb[0].mxu0 %v3505
      %v3578 = vpop.f32.mrb[0].mxu0
      %v3579 = vadd.f32 0.0, %v3578
      %v3580 = vpop.f32.mrb[0].mxu0
      %3581 = vdwg.mxu0
      %s3582 = scalar_lea.vmem %s15, 160
      %v3583 = vld [vmem:[%s3582] sm:$0xff]
      %v3584 = vld [vmem:[%s3582 + $0x8] sm:$0xff]
      %v3585 = vld [vmem:[%s3582 + $0x10] sm:$0xff]
      %v3586 = vld [vmem:[%s3582 + $0x18] sm:$0xff]
      %v3587 = vld [vmem:[%s3582 + $0x20] sm:$0xff]
      %v3588 = vld [vmem:[%s3582 + $0x28] sm:$0xff]
      %v3589 = vld [vmem:[%s3582 + $0x30] sm:$0xff]
      %v3590 = vld [vmem:[%s3582 + $0x38] sm:$0xff]
      %v3591 = vld [vmem:[%s3582 + $0x40] sm:$0xff]
      %v3592 = vld [vmem:[%s3582 + $0x48] sm:$0xff]
      %v3594 = vsel %vm1910, %v3574, 0
      %v3597 = vsel %vm1910, %v3579, 0
      %3599 = vmatprep.subr.mxu0 0.0
      %3600 = vmatpush1.msra.mxu0 %v3583
      %3601 = vmatprep.subr.mxu0 0.0
      %3602 = vmatpush1.msra.mxu0 %v3584
      %3603 = vmatprep.subr.mxu0 0.0
      %3604 = vmatpush1.msra.mxu0 %v3585
      %3605 = vmatprep.subr.mxu0 0.0
      %3606 = vmatpush1.msra.mxu0 %v3586
      %3607 = vmatprep.subr.mxu0 0.0
      %3608 = vmatpush1.msra.mxu0 %v3587
      %3609 = vmatprep.subr.mxu0 0.0
      %3610 = vmatpush1.msra.mxu0 %v3588
      %3611 = vmatprep.subr.mxu0 0.0
      %3612 = vmatpush1.msra.mxu0 %v3589
      %3613 = vmatprep.subr.mxu0 0.0
      %3614 = vmatpush1.msra.mxu0 %v3590
      %3615 = vmatprep.subr.mxu0 0.0
      %3616 = vmatpush1.msra.mxu0 %v3591
      %3617 = vmatprep.subr.mxu0 0.0
      %3618 = vmatpush1.msra.mxu0 %v3592
      %3619 = vmatprep.subr.mxu0 0.0
      %3620 = vmatpush1.msra.mxu0 0.0
      %3621 = vmatprep.subr.mxu0 0.0
      %3622 = vmatpush1.msra.mxu0 0.0
      %3623 = vmatprep.subr.mxu0 0.0
      %3624 = vmatpush1.msra.mxu0 0.0
      %3625 = vmatprep.subr.mxu0 0.0
      %3626 = vmatpush1.msra.mxu0 0.0
      %3627 = vmatprep.subr.mxu0 0.0
      %3628 = vmatpush1.msra.mxu0 0.0
      %3629 = vmatprep.subr.mxu0 0.0
      %3630 = vmatpush1.msra.mxu0 0.0
      %3631 = vmatprep.subr.mxu0 0.0
      %3632 = vmatpush1.msra.mxu0 0.0
      %3633 = vmatprep.subr.mxu0 0.0
      %3634 = vmatpush1.msra.mxu0 0.0
      %3635 = vmatprep.subr.mxu0 0.0
      %3636 = vmatpush1.msra.mxu0 0.0
      %3637 = vmatprep.subr.mxu0 0.0
      %3638 = vmatpush1.msra.mxu0 0.0
      %3639 = vmatprep.subr.mxu0 0.0
      %3640 = vmatpush1.msra.mxu0 0.0
      %3641 = vmatprep.subr.mxu0 0.0
      %3642 = vmatpush1.msra.mxu0 0.0
      %3643 = vmatprep.subr.mxu0 0.0
      %3644 = vmatpush1.msra.mxu0 0.0
      %3645 = vmatprep.subr.mxu0 0.0
      %3646 = vmatpush1.msra.mxu0 0.0
      %3647 = vmatprep.subr.mxu0 0.0
      %3648 = vmatpush1.msra.mxu0 0.0
      %3649 = vmatprep.subr.mxu0 0.0
      %3650 = vmatpush1.msra.mxu0 0.0
      %3651 = vmatprep.subr.mxu0 0.0
      %3652 = vmatpush1.msra.mxu0 0.0
      %3653 = vmatprep.subr.mxu0 0.0
      %3654 = vmatpush1.msra.mxu0 0.0
      %3655 = vmatprep.subr.mxu0 0.0
      %3656 = vmatpush1.msra.mxu0 0.0
      %3657 = vmatprep.subr.mxu0 0.0
      %3658 = vmatpush1.msra.mxu0 0.0
      %3659 = vmatprep.subr.mxu0 0.0
      %3660 = vmatpush1.msra.mxu0 0.0
      %3661 = vmatprep.subr.mxu0 0.0
      %3662 = vmatpush1.msra.mxu0 0.0
      %3663 = vmatprep.mubr.f32.mxu0 0.0
      %3664 = vmatmul.mubr.f32.gmra.mrb[0].mxu0 %v3594
      %v3665 = vpop.f32.mrb[0].mxu0
      %v3666 = vadd.f32 0.0, %v3665
      %v3667 = vpop.f32.mrb[0].mxu0
      %3668 = vmatprep.mubr.f32.mxu0 0.0
      %3669 = vmatmul.mubr.f32.gmra.mrb[0].mxu0 %v3597
      %v3670 = vpop.f32.mrb[0].mxu0
      %v3671 = vadd.f32 0.0, %v3670
      %v3672 = vpop.f32.mrb[0].mxu0
      %3673 = vdwg.mxu0
      %v3674 = vadd.f32 %v3490, %v3666
      %v3675 = vadd.f32 %v3495, %v3671
      %s3676 = scalar_lea.vmem %s14, 48
      %v3677 = vld [vmem:[%s3676] sm:$0xff]
      %v3678 = vld [vmem:[%s3676 + $0x8] sm:$0x7f]
      %v3680 = vsel %vm1736, %v3677, 0
      %v3683 = vsel %vm1736, %v3678, 0
      %3685 = vmatprep.subr.mxu0 0.0
      %3686 = vmatpush1.msra.mxu0 %v3154
      %3687 = vmatprep.subr.mxu0 0.0
      %3688 = vmatpush1.msra.mxu0 0.0
      %3689 = vmatprep.subr.mxu0 0.0
      %3690 = vmatpush1.msra.mxu0 0.0
      %3691 = vmatprep.subr.mxu0 0.0
      %3692 = vmatpush1.msra.mxu0 0.0
      %3693 = vmatprep.subr.mxu0 0.0
      %3694 = vmatpush1.msra.mxu0 0.0
      %3695 = vmatprep.subr.mxu0 0.0
      %3696 = vmatpush1.msra.mxu0 0.0
      %3697 = vmatprep.subr.mxu0 0.0
      %3698 = vmatpush1.msra.mxu0 0.0
      %3699 = vmatprep.subr.mxu0 0.0
      %3700 = vmatpush1.msra.mxu0 0.0
      %3701 = vmatprep.subr.mxu0 0.0
      %3702 = vmatpush1.msra.mxu0 0.0
      %3703 = vmatprep.subr.mxu0 0.0
      %3704 = vmatpush1.msra.mxu0 0.0
      %3705 = vmatprep.subr.mxu0 0.0
      %3706 = vmatpush1.msra.mxu0 0.0
      %3707 = vmatprep.subr.mxu0 0.0
      %3708 = vmatpush1.msra.mxu0 0.0
      %3709 = vmatprep.subr.mxu0 0.0
      %3710 = vmatpush1.msra.mxu0 0.0
      %3711 = vmatprep.subr.mxu0 0.0
      %3712 = vmatpush1.msra.mxu0 0.0
      %3713 = vmatprep.subr.mxu0 0.0
      %3714 = vmatpush1.msra.mxu0 0.0
      %3715 = vmatprep.subr.mxu0 0.0
      %3716 = vmatpush1.msra.mxu0 0.0
      %3717 = vmatprep.subr.mxu0 0.0
      %3718 = vmatpush1.msra.mxu0 0.0
      %3719 = vmatprep.subr.mxu0 0.0
      %3720 = vmatpush1.msra.mxu0 0.0
      %3721 = vmatprep.subr.mxu0 0.0
      %3722 = vmatpush1.msra.mxu0 0.0
      %3723 = vmatprep.subr.mxu0 0.0
      %3724 = vmatpush1.msra.mxu0 0.0
      %3725 = vmatprep.subr.mxu0 0.0
      %3726 = vmatpush1.msra.mxu0 0.0
      %3727 = vmatprep.subr.mxu0 0.0
      %3728 = vmatpush1.msra.mxu0 0.0
      %3729 = vmatprep.subr.mxu0 0.0
      %3730 = vmatpush1.msra.mxu0 0.0
      %3731 = vmatprep.subr.mxu0 0.0
      %3732 = vmatpush1.msra.mxu0 0.0
      %3733 = vmatprep.subr.mxu0 0.0
      %3734 = vmatpush1.msra.mxu0 0.0
      %3735 = vmatprep.subr.mxu0 0.0
      %3736 = vmatpush1.msra.mxu0 0.0
      %3737 = vmatprep.subr.mxu0 0.0
      %3738 = vmatpush1.msra.mxu0 0.0
      %3739 = vmatprep.subr.mxu0 0.0
      %3740 = vmatpush1.msra.mxu0 0.0
      %3741 = vmatprep.subr.mxu0 0.0
      %3742 = vmatpush1.msra.mxu0 0.0
      %3743 = vmatprep.subr.mxu0 0.0
      %3744 = vmatpush1.msra.mxu0 0.0
      %3745 = vmatprep.subr.mxu0 0.0
      %3746 = vmatpush1.msra.mxu0 0.0
      %3747 = vmatprep.subr.mxu0 0.0
      %3748 = vmatpush1.msra.mxu0 0.0
      %3749 = vmatprep.mubr.f32.mxu0 0.0
      %3750 = vmatmul.mubr.f32.gmra.mrb[0].mxu0 %v3680
      %v3751 = vpop.f32.mrb[0].mxu0
      %v3752 = vadd.f32 0.0, %v3751
      %v3753 = vpop.f32.mrb[0].mxu0
      %3754 = vmatprep.mubr.f32.mxu0 0.0
      %3755 = vmatmul.mubr.f32.gmra.mrb[0].mxu0 %v3683
      %v3756 = vpop.f32.mrb[0].mxu0
      %v3757 = vadd.f32 0.0, %v3756
      %v3758 = vpop.f32.mrb[0].mxu0
      %3759 = vdwg.mxu0
      %s3760 = scalar_lea.vmem %s15, 240
      %v3761 = vld [vmem:[%s3760] sm:$0xff]
      %v3762 = vld [vmem:[%s3760 + $0x8] sm:$0xff]
      %v3763 = vld [vmem:[%s3760 + $0x10] sm:$0xff]
      %v3764 = vld [vmem:[%s3760 + $0x18] sm:$0xff]
      %v3765 = vld [vmem:[%s3760 + $0x20] sm:$0xff]
      %v3766 = vld [vmem:[%s3760 + $0x28] sm:$0xff]
      %v3767 = vld [vmem:[%s3760 + $0x30] sm:$0xff]
      %v3768 = vld [vmem:[%s3760 + $0x38] sm:$0xff]
      %v3769 = vld [vmem:[%s3760 + $0x40] sm:$0xff]
      %v3770 = vld [vmem:[%s3760 + $0x48] sm:$0xff]
      %v3772 = vsel %vm1910, %v3752, 0
      %v3775 = vsel %vm1910, %v3757, 0
      %3777 = vmatprep.subr.mxu0 0.0
      %3778 = vmatpush1.msra.mxu0 %v3761
      %3779 = vmatprep.subr.mxu0 0.0
      %3780 = vmatpush1.msra.mxu0 %v3762
      %3781 = vmatprep.subr.mxu0 0.0
      %3782 = vmatpush1.msra.mxu0 %v3763
      %3783 = vmatprep.subr.mxu0 0.0
      %3784 = vmatpush1.msra.mxu0 %v3764
      %3785 = vmatprep.subr.mxu0 0.0
      %3786 = vmatpush1.msra.mxu0 %v3765
      %3787 = vmatprep.subr.mxu0 0.0
      %3788 = vmatpush1.msra.mxu0 %v3766
      %3789 = vmatprep.subr.mxu0 0.0
      %3790 = vmatpush1.msra.mxu0 %v3767
      %3791 = vmatprep.subr.mxu0 0.0
      %3792 = vmatpush1.msra.mxu0 %v3768
      %3793 = vmatprep.subr.mxu0 0.0
      %3794 = vmatpush1.msra.mxu0 %v3769
      %3795 = vmatprep.subr.mxu0 0.0
      %3796 = vmatpush1.msra.mxu0 %v3770
      %3797 = vmatprep.subr.mxu0 0.0
      %3798 = vmatpush1.msra.mxu0 0.0
      %3799 = vmatprep.subr.mxu0 0.0
      %3800 = vmatpush1.msra.mxu0 0.0
      %3801 = vmatprep.subr.mxu0 0.0
      %3802 = vmatpush1.msra.mxu0 0.0
      %3803 = vmatprep.subr.mxu0 0.0
      %3804 = vmatpush1.msra.mxu0 0.0
      %3805 = vmatprep.subr.mxu0 0.0
      %3806 = vmatpush1.msra.mxu0 0.0
      %3807 = vmatprep.subr.mxu0 0.0
      %3808 = vmatpush1.msra.mxu0 0.0
      %3809 = vmatprep.subr.mxu0 0.0
      %3810 = vmatpush1.msra.mxu0 0.0
      %3811 = vmatprep.subr.mxu0 0.0
      %3812 = vmatpush1.msra.mxu0 0.0
      %3813 = vmatprep.subr.mxu0 0.0
      %3814 = vmatpush1.msra.mxu0 0.0
      %3815 = vmatprep.subr.mxu0 0.0
      %3816 = vmatpush1.msra.mxu0 0.0
      %3817 = vmatprep.subr.mxu0 0.0
      %3818 = vmatpush1.msra.mxu0 0.0
      %3819 = vmatprep.subr.mxu0 0.0
      %3820 = vmatpush1.msra.mxu0 0.0
      %3821 = vmatprep.subr.mxu0 0.0
      %3822 = vmatpush1.msra.mxu0 0.0
      %3823 = vmatprep.subr.mxu0 0.0
      %3824 = vmatpush1.msra.mxu0 0.0
      %3825 = vmatprep.subr.mxu0 0.0
      %3826 = vmatpush1.msra.mxu0 0.0
      %3827 = vmatprep.subr.mxu0 0.0
      %3828 = vmatpush1.msra.mxu0 0.0
      %3829 = vmatprep.subr.mxu0 0.0
      %3830 = vmatpush1.msra.mxu0 0.0
      %3831 = vmatprep.subr.mxu0 0.0
      %3832 = vmatpush1.msra.mxu0 0.0
      %3833 = vmatprep.subr.mxu0 0.0
      %3834 = vmatpush1.msra.mxu0 0.0
      %3835 = vmatprep.subr.mxu0 0.0
      %3836 = vmatpush1.msra.mxu0 0.0
      %3837 = vmatprep.subr.mxu0 0.0
      %3838 = vmatpush1.msra.mxu0 0.0
      %3839 = vmatprep.subr.mxu0 0.0
      %3840 = vmatpush1.msra.mxu0 0.0
      %3841 = vmatprep.mubr.f32.mxu0 0.0
      %3842 = vmatmul.mubr.f32.gmra.mrb[0].mxu0 %v3772
      %v3843 = vpop.f32.mrb[0].mxu0
      %v3844 = vadd.f32 0.0, %v3843
      %v3845 = vpop.f32.mrb[0].mxu0
      %3846 = vmatprep.mubr.f32.mxu0 0.0
      %3847 = vmatmul.mubr.f32.gmra.mrb[0].mxu0 %v3775
      %v3848 = vpop.f32.mrb[0].mxu0
      %v3849 = vadd.f32 0.0, %v3848
      %v3850 = vpop.f32.mrb[0].mxu0
      %3851 = vdwg.mxu0
      %v3852 = vadd.f32 %v3674, %v3844
      %v3853 = vadd.f32 %v3675, %v3849
      %s3854 = scalar_lea.vmem %s14, 64
      %v3855 = vld [vmem:[%s3854] sm:$0xff]
      %v3856 = vld [vmem:[%s3854 + $0x8] sm:$0x7f]
      %v3858 = vsel %vm1736, %v3855, 0
      %v3861 = vsel %vm1736, %v3856, 0
      %3863 = vmatprep.subr.mxu0 0.0
      %3864 = vmatpush1.msra.mxu0 %v3154
      %3865 = vmatprep.subr.mxu0 0.0
      %3866 = vmatpush1.msra.mxu0 0.0
      %3867 = vmatprep.subr.mxu0 0.0
      %3868 = vmatpush1.msra.mxu0 0.0
      %3869 = vmatprep.subr.mxu0 0.0
      %3870 = vmatpush1.msra.mxu0 0.0
      %3871 = vmatprep.subr.mxu0 0.0
      %3872 = vmatpush1.msra.mxu0 0.0
      %3873 = vmatprep.subr.mxu0 0.0
      %3874 = vmatpush1.msra.mxu0 0.0
      %3875 = vmatprep.subr.mxu0 0.0
      %3876 = vmatpush1.msra.mxu0 0.0
      %3877 = vmatprep.subr.mxu0 0.0
      %3878 = vmatpush1.msra.mxu0 0.0
      %3879 = vmatprep.subr.mxu0 0.0
      %3880 = vmatpush1.msra.mxu0 0.0
      %3881 = vmatprep.subr.mxu0 0.0
      %3882 = vmatpush1.msra.mxu0 0.0
      %3883 = vmatprep.subr.mxu0 0.0
      %3884 = vmatpush1.msra.mxu0 0.0
      %3885 = vmatprep.subr.mxu0 0.0
      %3886 = vmatpush1.msra.mxu0 0.0
      %3887 = vmatprep.subr.mxu0 0.0
      %3888 = vmatpush1.msra.mxu0 0.0
      %3889 = vmatprep.subr.mxu0 0.0
      %3890 = vmatpush1.msra.mxu0 0.0
      %3891 = vmatprep.subr.mxu0 0.0
      %3892 = vmatpush1.msra.mxu0 0.0
      %3893 = vmatprep.subr.mxu0 0.0
      %3894 = vmatpush1.msra.mxu0 0.0
      %3895 = vmatprep.subr.mxu0 0.0
      %3896 = vmatpush1.msra.mxu0 0.0
      %3897 = vmatprep.subr.mxu0 0.0
      %3898 = vmatpush1.msra.mxu0 0.0
      %3899 = vmatprep.subr.mxu0 0.0
      %3900 = vmatpush1.msra.mxu0 0.0
      %3901 = vmatprep.subr.mxu0 0.0
      %3902 = vmatpush1.msra.mxu0 0.0
      %3903 = vmatprep.subr.mxu0 0.0
      %3904 = vmatpush1.msra.mxu0 0.0
      %3905 = vmatprep.subr.mxu0 0.0
      %3906 = vmatpush1.msra.mxu0 0.0
      %3907 = vmatprep.subr.mxu0 0.0
      %3908 = vmatpush1.msra.mxu0 0.0
      %3909 = vmatprep.subr.mxu0 0.0
      %3910 = vmatpush1.msra.mxu0 0.0
      %3911 = vmatprep.subr.mxu0 0.0
      %3912 = vmatpush1.msra.mxu0 0.0
      %3913 = vmatprep.subr.mxu0 0.0
      %3914 = vmatpush1.msra.mxu0 0.0
      %3915 = vmatprep.subr.mxu0 0.0
      %3916 = vmatpush1.msra.mxu0 0.0
      %3917 = vmatprep.subr.mxu0 0.0
      %3918 = vmatpush1.msra.mxu0 0.0
      %3919 = vmatprep.subr.mxu0 0.0
      %3920 = vmatpush1.msra.mxu0 0.0
      %3921 = vmatprep.subr.mxu0 0.0
      %3922 = vmatpush1.msra.mxu0 0.0
      %3923 = vmatprep.subr.mxu0 0.0
      %3924 = vmatpush1.msra.mxu0 0.0
      %3925 = vmatprep.subr.mxu0 0.0
      %3926 = vmatpush1.msra.mxu0 0.0
      %3927 = vmatprep.mubr.f32.mxu0 0.0
      %3928 = vmatmul.mubr.f32.gmra.mrb[0].mxu0 %v3858
      %v3929 = vpop.f32.mrb[0].mxu0
      %v3930 = vadd.f32 0.0, %v3929
      %v3931 = vpop.f32.mrb[0].mxu0
      %3932 = vmatprep.mubr.f32.mxu0 0.0
      %3933 = vmatmul.mubr.f32.gmra.mrb[0].mxu0 %v3861
      %v3934 = vpop.f32.mrb[0].mxu0
      %v3935 = vadd.f32 0.0, %v3934
      %v3936 = vpop.f32.mrb[0].mxu0
      %3937 = vdwg.mxu0
      %s3938 = scalar_lea.vmem %s15, 320
      %v3939 = vld [vmem:[%s3938] sm:$0xff]
      %v3940 = vld [vmem:[%s3938 + $0x8] sm:$0xff]
      %v3941 = vld [vmem:[%s3938 + $0x10] sm:$0xff]
      %v3942 = vld [vmem:[%s3938 + $0x18] sm:$0xff]
      %v3943 = vld [vmem:[%s3938 + $0x20] sm:$0xff]
      %v3944 = vld [vmem:[%s3938 + $0x28] sm:$0xff]
      %v3945 = vld [vmem:[%s3938 + $0x30] sm:$0xff]
      %v3946 = vld [vmem:[%s3938 + $0x38] sm:$0xff]
      %v3947 = vld [vmem:[%s3938 + $0x40] sm:$0xff]
      %v3948 = vld [vmem:[%s3938 + $0x48] sm:$0xff]
      %v3950 = vsel %vm1910, %v3930, 0
      %v3953 = vsel %vm1910, %v3935, 0
      %3955 = vmatprep.subr.mxu0 0.0
      %3956 = vmatpush1.msra.mxu0 %v3939
      %3957 = vmatprep.subr.mxu0 0.0
      %3958 = vmatpush1.msra.mxu0 %v3940
      %3959 = vmatprep.subr.mxu0 0.0
      %3960 = vmatpush1.msra.mxu0 %v3941
      %3961 = vmatprep.subr.mxu0 0.0
      %3962 = vmatpush1.msra.mxu0 %v3942
      %3963 = vmatprep.subr.mxu0 0.0
      %3964 = vmatpush1.msra.mxu0 %v3943
      %3965 = vmatprep.subr.mxu0 0.0
      %3966 = vmatpush1.msra.mxu0 %v3944
      %3967 = vmatprep.subr.mxu0 0.0
      %3968 = vmatpush1.msra.mxu0 %v3945
      %3969 = vmatprep.subr.mxu0 0.0
      %3970 = vmatpush1.msra.mxu0 %v3946
      %3971 = vmatprep.subr.mxu0 0.0
      %3972 = vmatpush1.msra.mxu0 %v3947
      %3973 = vmatprep.subr.mxu0 0.0
      %3974 = vmatpush1.msra.mxu0 %v3948
      %3975 = vmatprep.subr.mxu0 0.0
      %3976 = vmatpush1.msra.mxu0 0.0
      %3977 = vmatprep.subr.mxu0 0.0
      %3978 = vmatpush1.msra.mxu0 0.0
      %3979 = vmatprep.subr.mxu0 0.0
      %3980 = vmatpush1.msra.mxu0 0.0
      %3981 = vmatprep.subr.mxu0 0.0
      %3982 = vmatpush1.msra.mxu0 0.0
      %3983 = vmatprep.subr.mxu0 0.0
      %3984 = vmatpush1.msra.mxu0 0.0
      %3985 = vmatprep.subr.mxu0 0.0
      %3986 = vmatpush1.msra.mxu0 0.0
      %3987 = vmatprep.subr.mxu0 0.0
      %3988 = vmatpush1.msra.mxu0 0.0
      %3989 = vmatprep.subr.mxu0 0.0
      %3990 = vmatpush1.msra.mxu0 0.0
      %3991 = vmatprep.subr.mxu0 0.0
      %3992 = vmatpush1.msra.mxu0 0.0
      %3993 = vmatprep.subr.mxu0 0.0
      %3994 = vmatpush1.msra.mxu0 0.0
      %3995 = vmatprep.subr.mxu0 0.0
      %3996 = vmatpush1.msra.mxu0 0.0
      %3997 = vmatprep.subr.mxu0 0.0
      %3998 = vmatpush1.msra.mxu0 0.0
      %3999 = vmatprep.subr.mxu0 0.0
      %4000 = vmatpush1.msra.mxu0 0.0
      %4001 = vmatprep.subr.mxu0 0.0
      %4002 = vmatpush1.msra.mxu0 0.0
      %4003 = vmatprep.subr.mxu0 0.0
      %4004 = vmatpush1.msra.mxu0 0.0
      %4005 = vmatprep.subr.mxu0 0.0
      %4006 = vmatpush1.msra.mxu0 0.0
      %4007 = vmatprep.subr.mxu0 0.0
      %4008 = vmatpush1.msra.mxu0 0.0
      %4009 = vmatprep.subr.mxu0 0.0
      %4010 = vmatpush1.msra.mxu0 0.0
      %4011 = vmatprep.subr.mxu0 0.0
      %4012 = vmatpush1.msra.mxu0 0.0
      %4013 = vmatprep.subr.mxu0 0.0
      %4014 = vmatpush1.msra.mxu0 0.0
      %4015 = vmatprep.subr.mxu0 0.0
      %4016 = vmatpush1.msra.mxu0 0.0
      %4017 = vmatprep.subr.mxu0 0.0
      %4018 = vmatpush1.msra.mxu0 0.0
      %4019 = vmatprep.mubr.f32.mxu0 0.0
      %4020 = vmatmul.mubr.f32.gmra.mrb[0].mxu0 %v3950
      %v4021 = vpop.f32.mrb[0].mxu0
      %v4022 = vadd.f32 0.0, %v4021
      %v4023 = vpop.f32.mrb[0].mxu0
      %4024 = vmatprep.mubr.f32.mxu0 0.0
      %4025 = vmatmul.mubr.f32.gmra.mrb[0].mxu0 %v3953
      %v4026 = vpop.f32.mrb[0].mxu0
      %v4027 = vadd.f32 0.0, %v4026
      %v4028 = vpop.f32.mrb[0].mxu0
      %4029 = vdwg.mxu0
      %v4030 = vadd.f32 %v3852, %v4022
      %v4031 = vadd.f32 %v3853, %v4027
      %v4032 = vld [vmem:[%s16] sm:$0x1]
      %v4034 = vlaneseq
      %v4035 = vshrl.u32 %v4034, 7
      %v4036 = vsub.s32 0, %v4035
      %v4037 = vrot.slane %v4032, %v4036
      %v4039 = vadd.f32 %v4030, %v4037
      %v4040 = vadd.f32 %v4031, %v4037
      %v4041 = vmax.f32 %v4039, 0.0
      %v4042 = vmax.f32 %v4040, 0.0
      %v4043 = vld [vmem:[%s17] sm:$0xff]
      %v4044 = vld [vmem:[%s17 + $0x8] sm:$0xff]
      %v4045 = vld [vmem:[%s17 + $0x10] sm:$0xff]
      %v4046 = vld [vmem:[%s17 + $0x18] sm:$0xf]
      %vm4047 = vcmask 121856
      %v4049 = vsel %vm4047, %v4043, 0
      %v4052 = vsel %vm4047, %v4044, 0
      %v4055 = vsel %vm4047, %v4045, 0
      %v4058 = vsel %vm4047, %v4046, 0
      %vm4060 = vcmask 1046528
      %v4062 = vsel %vm4060, %v4042, 0
      %4064 = vmatprep.subr.mxu0 0.0
      %4065 = vmatpush1.msra.mxu0 %v4041
      %4066 = vmatprep.subr.mxu0 0.0
      %4067 = vmatpush1.msra.mxu0 %v4062
      %4068 = vmatprep.subr.mxu0 0.0
      %4069 = vmatpush1.msra.mxu0 0.0
      %4070 = vmatprep.subr.mxu0 0.0
      %4071 = vmatpush1.msra.mxu0 0.0
      %4072 = vmatprep.subr.mxu0 0.0
      %4073 = vmatpush1.msra.mxu0 0.0
      %4074 = vmatprep.subr.mxu0 0.0
      %4075 = vmatpush1.msra.mxu0 0.0
      %4076 = vmatprep.subr.mxu0 0.0
      %4077 = vmatpush1.msra.mxu0 0.0
      %4078 = vmatprep.subr.mxu0 0.0
      %4079 = vmatpush1.msra.mxu0 0.0
      %4080 = vmatprep.subr.mxu0 0.0
      %4081 = vmatpush1.msra.mxu0 0.0
      %4082 = vmatprep.subr.mxu0 0.0
      %4083 = vmatpush1.msra.mxu0 0.0
      %4084 = vmatprep.subr.mxu0 0.0
      %4085 = vmatpush1.msra.mxu0 0.0
      %4086 = vmatprep.subr.mxu0 0.0
      %4087 = vmatpush1.msra.mxu0 0.0
      %4088 = vmatprep.subr.mxu0 0.0
      %4089 = vmatpush1.msra.mxu0 0.0
      %4090 = vmatprep.subr.mxu0 0.0
      %4091 = vmatpush1.msra.mxu0 0.0
      %4092 = vmatprep.subr.mxu0 0.0
      %4093 = vmatpush1.msra.mxu0 0.0
      %4094 = vmatprep.subr.mxu0 0.0
      %4095 = vmatpush1.msra.mxu0 0.0
      %4096 = vmatprep.subr.mxu0 0.0
      %4097 = vmatpush1.msra.mxu0 0.0
      %4098 = vmatprep.subr.mxu0 0.0
      %4099 = vmatpush1.msra.mxu0 0.0
      %4100 = vmatprep.subr.mxu0 0.0
      %4101 = vmatpush1.msra.mxu0 0.0
      %4102 = vmatprep.subr.mxu0 0.0
      %4103 = vmatpush1.msra.mxu0 0.0
      %4104 = vmatprep.subr.mxu0 0.0
      %4105 = vmatpush1.msra.mxu0 0.0
      %4106 = vmatprep.subr.mxu0 0.0
      %4107 = vmatpush1.msra.mxu0 0.0
      %4108 = vmatprep.subr.mxu0 0.0
      %4109 = vmatpush1.msra.mxu0 0.0
      %4110 = vmatprep.subr.mxu0 0.0
      %4111 = vmatpush1.msra.mxu0 0.0
      %4112 = vmatprep.subr.mxu0 0.0
      %4113 = vmatpush1.msra.mxu0 0.0
      %4114 = vmatprep.subr.mxu0 0.0
      %4115 = vmatpush1.msra.mxu0 0.0
      %4116 = vmatprep.subr.mxu0 0.0
      %4117 = vmatpush1.msra.mxu0 0.0
      %4118 = vmatprep.subr.mxu0 0.0
      %4119 = vmatpush1.msra.mxu0 0.0
      %4120 = vmatprep.subr.mxu0 0.0
      %4121 = vmatpush1.msra.mxu0 0.0
      %4122 = vmatprep.subr.mxu0 0.0
      %4123 = vmatpush1.msra.mxu0 0.0
      %4124 = vmatprep.subr.mxu0 0.0
      %4125 = vmatpush1.msra.mxu0 0.0
      %4126 = vmatprep.subr.mxu0 0.0
      %4127 = vmatpush1.msra.mxu0 0.0
      %4128 = vmatprep.mubr.f32.mxu0 0.0
      %4129 = vmatmul.mubr.f32.gmra.mrb[0].mxu0 %v4049
      %v4130 = vpop.f32.mrb[0].mxu0
      %v4131 = vadd.f32 0.0, %v4130
      %v4132 = vpop.f32.mrb[0].mxu0
      %4133 = vmatprep.mubr.f32.mxu0 0.0
      %4134 = vmatmul.mubr.f32.gmra.mrb[0].mxu0 %v4052
      %v4135 = vpop.f32.mrb[0].mxu0
      %v4136 = vadd.f32 0.0, %v4135
      %v4137 = vpop.f32.mrb[0].mxu0
      %4138 = vmatprep.mubr.f32.mxu0 0.0
      %4139 = vmatmul.mubr.f32.gmra.mrb[0].mxu0 %v4055
      %v4140 = vpop.f32.mrb[0].mxu0
      %v4141 = vadd.f32 0.0, %v4140
      %v4142 = vpop.f32.mrb[0].mxu0
      %4143 = vmatprep.mubr.f32.mxu0 0.0
      %4144 = vmatmul.mubr.f32.gmra.mrb[0].mxu0 %v4058
      %v4145 = vpop.f32.mrb[0].mxu0
      %v4146 = vadd.f32 0.0, %v4145
      %v4147 = vpop.f32.mrb[0].mxu0
      %4148 = vdwg.mxu0
      %v4149 = vld [vmem:[%s18] sm:$0xff]
      %v4150 = vld [vmem:[%s18 + $0x8] sm:$0xff]
      %v4151 = vld [vmem:[%s18 + $0x10] sm:$0xff]
      %v4152 = vld [vmem:[%s18 + $0x18] sm:$0xff]
      %v4153 = vld [vmem:[%s18 + $0x20] sm:$0xff]
      %v4154 = vld [vmem:[%s18 + $0x28] sm:$0xff]
      %v4155 = vld [vmem:[%s18 + $0x30] sm:$0xff]
      %v4156 = vld [vmem:[%s18 + $0x38] sm:$0xff]
      %v4157 = vld [vmem:[%s18 + $0x40] sm:$0xff]
      %v4158 = vld [vmem:[%s18 + $0x48] sm:$0xff]
      %v4159 = vld [vmem:[%s18 + $0x50] sm:$0xff]
      %v4160 = vld [vmem:[%s18 + $0x58] sm:$0xff]
      %v4161 = vld [vmem:[%s18 + $0x60] sm:$0xff]
      %v4162 = vld [vmem:[%s18 + $0x68] sm:$0xff]
      %v4163 = vld [vmem:[%s18 + $0x70] sm:$0xff]
      %s4164 = scalar_lea.vmem %s17, 32
      %v4165 = vld [vmem:[%s4164] sm:$0xff]
      %v4166 = vld [vmem:[%s4164 + $0x8] sm:$0xff]
      %v4167 = vld [vmem:[%s4164 + $0x10] sm:$0xff]
      %v4168 = vld [vmem:[%s4164 + $0x18] sm:$0xf]
      %v4170 = vsel %vm4047, %v4165, 0
      %v4173 = vsel %vm4047, %v4166, 0
      %v4176 = vsel %vm4047, %v4167, 0
      %v4179 = vsel %vm4047, %v4168, 0
      %4181 = vmatprep.subr.mxu0 0.0
      %4182 = vmatpush1.msra.mxu0 %v4041
      %4183 = vmatprep.subr.mxu0 0.0
      %4184 = vmatpush1.msra.mxu0 %v4062
      %4185 = vmatprep.subr.mxu0 0.0
      %4186 = vmatpush1.msra.mxu0 0.0
      %4187 = vmatprep.subr.mxu0 0.0
      %4188 = vmatpush1.msra.mxu0 0.0
      %4189 = vmatprep.subr.mxu0 0.0
      %4190 = vmatpush1.msra.mxu0 0.0
      %4191 = vmatprep.subr.mxu0 0.0
      %4192 = vmatpush1.msra.mxu0 0.0
      %4193 = vmatprep.subr.mxu0 0.0
      %4194 = vmatpush1.msra.mxu0 0.0
      %4195 = vmatprep.subr.mxu0 0.0
      %4196 = vmatpush1.msra.mxu0 0.0
      %4197 = vmatprep.subr.mxu0 0.0
      %4198 = vmatpush1.msra.mxu0 0.0
      %4199 = vmatprep.subr.mxu0 0.0
      %4200 = vmatpush1.msra.mxu0 0.0
      %4201 = vmatprep.subr.mxu0 0.0
      %4202 = vmatpush1.msra.mxu0 0.0
      %4203 = vmatprep.subr.mxu0 0.0
      %4204 = vmatpush1.msra.mxu0 0.0
      %4205 = vmatprep.subr.mxu0 0.0
      %4206 = vmatpush1.msra.mxu0 0.0
      %4207 = vmatprep.subr.mxu0 0.0
      %4208 = vmatpush1.msra.mxu0 0.0
      %4209 = vmatprep.subr.mxu0 0.0
      %4210 = vmatpush1.msra.mxu0 0.0
      %4211 = vmatprep.subr.mxu0 0.0
      %4212 = vmatpush1.msra.mxu0 0.0
      %4213 = vmatprep.subr.mxu0 0.0
      %4214 = vmatpush1.msra.mxu0 0.0
      %4215 = vmatprep.subr.mxu0 0.0
      %4216 = vmatpush1.msra.mxu0 0.0
      %4217 = vmatprep.subr.mxu0 0.0
      %4218 = vmatpush1.msra.mxu0 0.0
      %4219 = vmatprep.subr.mxu0 0.0
      %4220 = vmatpush1.msra.mxu0 0.0
      %4221 = vmatprep.subr.mxu0 0.0
      %4222 = vmatpush1.msra.mxu0 0.0
      %4223 = vmatprep.subr.mxu0 0.0
      %4224 = vmatpush1.msra.mxu0 0.0
      %4225 = vmatprep.subr.mxu0 0.0
      %4226 = vmatpush1.msra.mxu0 0.0
      %4227 = vmatprep.subr.mxu0 0.0
      %4228 = vmatpush1.msra.mxu0 0.0
      %4229 = vmatprep.subr.mxu0 0.0
      %4230 = vmatpush1.msra.mxu0 0.0
      %4231 = vmatprep.subr.mxu0 0.0
      %4232 = vmatpush1.msra.mxu0 0.0
      %4233 = vmatprep.subr.mxu0 0.0
      %4234 = vmatpush1.msra.mxu0 0.0
      %4235 = vmatprep.subr.mxu0 0.0
      %4236 = vmatpush1.msra.mxu0 0.0
      %4237 = vmatprep.subr.mxu0 0.0
      %4238 = vmatpush1.msra.mxu0 0.0
      %4239 = vmatprep.subr.mxu0 0.0
      %4240 = vmatpush1.msra.mxu0 0.0
      %4241 = vmatprep.subr.mxu0 0.0
      %4242 = vmatpush1.msra.mxu0 0.0
      %4243 = vmatprep.subr.mxu0 0.0
      %4244 = vmatpush1.msra.mxu0 0.0
      %4245 = vmatprep.mubr.f32.mxu0 0.0
      %4246 = vmatmul.mubr.f32.gmra.mrb[0].mxu0 %v4170
      %v4247 = vpop.f32.mrb[0].mxu0
      %v4248 = vadd.f32 0.0, %v4247
      %v4249 = vpop.f32.mrb[0].mxu0
      %4250 = vmatprep.mubr.f32.mxu0 0.0
      %4251 = vmatmul.mubr.f32.gmra.mrb[0].mxu0 %v4173
      %v4252 = vpop.f32.mrb[0].mxu0
      %v4253 = vadd.f32 0.0, %v4252
      %v4254 = vpop.f32.mrb[0].mxu0
      %4255 = vmatprep.mubr.f32.mxu0 0.0
      %4256 = vmatmul.mubr.f32.gmra.mrb[0].mxu0 %v4176
      %v4257 = vpop.f32.mrb[0].mxu0
      %v4258 = vadd.f32 0.0, %v4257
      %v4259 = vpop.f32.mrb[0].mxu0
      %4260 = vmatprep.mubr.f32.mxu0 0.0
      %4261 = vmatmul.mubr.f32.gmra.mrb[0].mxu0 %v4179
      %v4262 = vpop.f32.mrb[0].mxu0
      %v4263 = vadd.f32 0.0, %v4262
      %v4264 = vpop.f32.mrb[0].mxu0
      %4265 = vdwg.mxu0
      %s4266 = scalar_lea.vmem %s18, 120
      %v4267 = vld [vmem:[%s4266] sm:$0xff]
      %v4268 = vld [vmem:[%s4266 + $0x8] sm:$0xff]
      %v4269 = vld [vmem:[%s4266 + $0x10] sm:$0xff]
      %v4270 = vld [vmem:[%s4266 + $0x18] sm:$0xff]
      %v4271 = vld [vmem:[%s4266 + $0x20] sm:$0xff]
      %v4272 = vld [vmem:[%s4266 + $0x28] sm:$0xff]
      %v4273 = vld [vmem:[%s4266 + $0x30] sm:$0xff]
      %v4274 = vld [vmem:[%s4266 + $0x38] sm:$0xff]
      %v4275 = vld [vmem:[%s4266 + $0x40] sm:$0xff]
      %v4276 = vld [vmem:[%s4266 + $0x48] sm:$0xff]
      %v4277 = vld [vmem:[%s4266 + $0x50] sm:$0xff]
      %v4278 = vld [vmem:[%s4266 + $0x58] sm:$0xff]
      %v4279 = vld [vmem:[%s4266 + $0x60] sm:$0xff]
      %v4280 = vld [vmem:[%s4266 + $0x68] sm:$0xff]
      %v4281 = vld [vmem:[%s4266 + $0x70] sm:$0xff]
      %vm4282 = vcmask 982016
      %v4284 = vsel %vm4282, %v4248, 0
      %v4287 = vsel %vm4282, %v4253, 0
      %v4290 = vsel %vm4282, %v4258, 0
      %v4293 = vsel %vm4282, %v4263, 0
      %4295 = vmatprep.subr.mxu0 0.0
      %4296 = vmatpush1.msra.mxu0 %v4267
      %4297 = vmatprep.subr.mxu0 0.0
      %4298 = vmatpush1.msra.mxu0 %v4268
      %4299 = vmatprep.subr.mxu0 0.0
      %4300 = vmatpush1.msra.mxu0 %v4269
      %4301 = vmatprep.subr.mxu0 0.0
      %4302 = vmatpush1.msra.mxu0 %v4270
      %4303 = vmatprep.subr.mxu0 0.0
      %4304 = vmatpush1.msra.mxu0 %v4271
      %4305 = vmatprep.subr.mxu0 0.0
      %4306 = vmatpush1.msra.mxu0 %v4272
      %4307 = vmatprep.subr.mxu0 0.0
      %4308 = vmatpush1.msra.mxu0 %v4273
      %4309 = vmatprep.subr.mxu0 0.0
      %4310 = vmatpush1.msra.mxu0 %v4274
      %4311 = vmatprep.subr.mxu0 0.0
      %4312 = vmatpush1.msra.mxu0 %v4275
      %4313 = vmatprep.subr.mxu0 0.0
      %4314 = vmatpush1.msra.mxu0 %v4276
      %4315 = vmatprep.subr.mxu0 0.0
      %4316 = vmatpush1.msra.mxu0 %v4277
      %4317 = vmatprep.subr.mxu0 0.0
      %4318 = vmatpush1.msra.mxu0 %v4278
      %4319 = vmatprep.subr.mxu0 0.0
      %4320 = vmatpush1.msra.mxu0 %v4279
      %4321 = vmatprep.subr.mxu0 0.0
      %4322 = vmatpush1.msra.mxu0 %v4280
      %4323 = vmatprep.subr.mxu0 0.0
      %4324 = vmatpush1.msra.mxu0 %v4281
      %4325 = vmatprep.subr.mxu0 0.0
      %4326 = vmatpush1.msra.mxu0 0.0
      %4327 = vmatprep.subr.mxu0 0.0
      %4328 = vmatpush1.msra.mxu0 0.0
      %4329 = vmatprep.subr.mxu0 0.0
      %4330 = vmatpush1.msra.mxu0 0.0
      %4331 = vmatprep.subr.mxu0 0.0
      %4332 = vmatpush1.msra.mxu0 0.0
      %4333 = vmatprep.subr.mxu0 0.0
      %4334 = vmatpush1.msra.mxu0 0.0
      %4335 = vmatprep.subr.mxu0 0.0
      %4336 = vmatpush1.msra.mxu0 0.0
      %4337 = vmatprep.subr.mxu0 0.0
      %4338 = vmatpush1.msra.mxu0 0.0
      %4339 = vmatprep.subr.mxu0 0.0
      %4340 = vmatpush1.msra.mxu0 0.0
      %4341 = vmatprep.subr.mxu0 0.0
      %4342 = vmatpush1.msra.mxu0 0.0
      %4343 = vmatprep.subr.mxu0 0.0
      %4344 = vmatpush1.msra.mxu0 0.0
      %4345 = vmatprep.subr.mxu0 0.0
      %4346 = vmatpush1.msra.mxu0 0.0
      %4347 = vmatprep.subr.mxu0 0.0
      %4348 = vmatpush1.msra.mxu0 0.0
      %4349 = vmatprep.subr.mxu0 0.0
      %4350 = vmatpush1.msra.mxu0 0.0
      %4351 = vmatprep.subr.mxu0 0.0
      %4352 = vmatpush1.msra.mxu0 0.0
      %4353 = vmatprep.subr.mxu0 0.0
      %4354 = vmatpush1.msra.mxu0 0.0
      %4355 = vmatprep.subr.mxu0 0.0
      %4356 = vmatpush1.msra.mxu0 0.0
      %4357 = vmatprep.subr.mxu0 0.0
      %4358 = vmatpush1.msra.mxu0 0.0
      %4359 = vmatprep.mubr.f32.mxu0 0.0
      %4360 = vmatmul.mubr.f32.gmra.mrb[0].mxu0 %v4284
      %v4361 = vpop.f32.mrb[0].mxu0
      %v4362 = vadd.f32 0.0, %v4361
      %v4363 = vpop.f32.mrb[0].mxu0
      %4364 = vmatprep.mubr.f32.mxu0 0.0
      %4365 = vmatmul.mubr.f32.gmra.mrb[0].mxu0 %v4287
      %v4366 = vpop.f32.mrb[0].mxu0
      %v4367 = vadd.f32 0.0, %v4366
      %v4368 = vpop.f32.mrb[0].mxu0
      %4369 = vmatprep.mubr.f32.mxu0 0.0
      %4370 = vmatmul.mubr.f32.gmra.mrb[0].mxu0 %v4290
      %v4371 = vpop.f32.mrb[0].mxu0
      %v4372 = vadd.f32 0.0, %v4371
      %v4373 = vpop.f32.mrb[0].mxu0
      %4374 = vmatprep.mubr.f32.mxu0 0.0
      %4375 = vmatmul.mubr.f32.gmra.mrb[0].mxu0 %v4293
      %v4376 = vpop.f32.mrb[0].mxu0
      %v4377 = vadd.f32 0.0, %v4376
      %v4378 = vpop.f32.mrb[0].mxu0
      %4379 = vdwg.mxu0
      %v4381 = vsel %vm4282, %v4131, 0
      %v4384 = vsel %vm4282, %v4136, 0
      %v4387 = vsel %vm4282, %v4141, 0
      %v4390 = vsel %vm4282, %v4146, 0
      %4392 = vmatprep.subr.mxu0 0.0
      %4393 = vmatpush1.msra.mxu0 %v4149
      %4394 = vmatprep.subr.mxu0 0.0
      %4395 = vmatpush1.msra.mxu0 %v4150
      %4396 = vmatprep.subr.mxu0 0.0
      %4397 = vmatpush1.msra.mxu0 %v4151
      %4398 = vmatprep.subr.mxu0 0.0
      %4399 = vmatpush1.msra.mxu0 %v4152
      %4400 = vmatprep.subr.mxu0 0.0
      %4401 = vmatpush1.msra.mxu0 %v4153
      %4402 = vmatprep.subr.mxu0 0.0
      %4403 = vmatpush1.msra.mxu0 %v4154
      %4404 = vmatprep.subr.mxu0 0.0
      %4405 = vmatpush1.msra.mxu0 %v4155
      %4406 = vmatprep.subr.mxu0 0.0
      %4407 = vmatpush1.msra.mxu0 %v4156
      %4408 = vmatprep.subr.mxu0 0.0
      %4409 = vmatpush1.msra.mxu0 %v4157
      %4410 = vmatprep.subr.mxu0 0.0
      %4411 = vmatpush1.msra.mxu0 %v4158
      %4412 = vmatprep.subr.mxu0 0.0
      %4413 = vmatpush1.msra.mxu0 %v4159
      %4414 = vmatprep.subr.mxu0 0.0
      %4415 = vmatpush1.msra.mxu0 %v4160
      %4416 = vmatprep.subr.mxu0 0.0
      %4417 = vmatpush1.msra.mxu0 %v4161
      %4418 = vmatprep.subr.mxu0 0.0
      %4419 = vmatpush1.msra.mxu0 %v4162
      %4420 = vmatprep.subr.mxu0 0.0
      %4421 = vmatpush1.msra.mxu0 %v4163
      %4422 = vmatprep.subr.mxu0 0.0
      %4423 = vmatpush1.msra.mxu0 0.0
      %4424 = vmatprep.subr.mxu0 0.0
      %4425 = vmatpush1.msra.mxu0 0.0
      %4426 = vmatprep.subr.mxu0 0.0
      %4427 = vmatpush1.msra.mxu0 0.0
      %4428 = vmatprep.subr.mxu0 0.0
      %4429 = vmatpush1.msra.mxu0 0.0
      %4430 = vmatprep.subr.mxu0 0.0
      %4431 = vmatpush1.msra.mxu0 0.0
      %4432 = vmatprep.subr.mxu0 0.0
      %4433 = vmatpush1.msra.mxu0 0.0
      %4434 = vmatprep.subr.mxu0 0.0
      %4435 = vmatpush1.msra.mxu0 0.0
      %4436 = vmatprep.subr.mxu0 0.0
      %4437 = vmatpush1.msra.mxu0 0.0
      %4438 = vmatprep.subr.mxu0 0.0
      %4439 = vmatpush1.msra.mxu0 0.0
      %4440 = vmatprep.subr.mxu0 0.0
      %4441 = vmatpush1.msra.mxu0 0.0
      %4442 = vmatprep.subr.mxu0 0.0
      %4443 = vmatpush1.msra.mxu0 0.0
      %4444 = vmatprep.subr.mxu0 0.0
      %4445 = vmatpush1.msra.mxu0 0.0
      %4446 = vmatprep.subr.mxu0 0.0
      %4447 = vmatpush1.msra.mxu0 0.0
      %4448 = vmatprep.subr.mxu0 0.0
      %4449 = vmatpush1.msra.mxu0 0.0
      %4450 = vmatprep.subr.mxu0 0.0
      %4451 = vmatpush1.msra.mxu0 0.0
      %4452 = vmatprep.subr.mxu0 0.0
      %4453 = vmatpush1.msra.mxu0 0.0
      %4454 = vmatprep.subr.mxu0 0.0
      %4455 = vmatpush1.msra.mxu0 0.0
      %4456 = vmatprep.mubr.f32.mxu0 0.0
      %4457 = vmatmul.mubr.f32.gmra.mrb[0].mxu0 %v4381
      %v4458 = vpop.f32.mrb[0].mxu0
      %v4459 = vadd.f32 %v4362, %v4458
      %v4460 = vpop.f32.mrb[0].mxu0
      %4461 = vmatprep.mubr.f32.mxu0 0.0
      %4462 = vmatmul.mubr.f32.gmra.mrb[0].mxu0 %v4384
      %v4463 = vpop.f32.mrb[0].mxu0
      %v4464 = vadd.f32 %v4367, %v4463
      %v4465 = vpop.f32.mrb[0].mxu0
      %4466 = vmatprep.mubr.f32.mxu0 0.0
      %4467 = vmatmul.mubr.f32.gmra.mrb[0].mxu0 %v4387
      %v4468 = vpop.f32.mrb[0].mxu0
      %v4469 = vadd.f32 %v4372, %v4468
      %v4470 = vpop.f32.mrb[0].mxu0
      %4471 = vmatprep.mubr.f32.mxu0 0.0
      %4472 = vmatmul.mubr.f32.gmra.mrb[0].mxu0 %v4390
      %v4473 = vpop.f32.mrb[0].mxu0
      %v4474 = vadd.f32 %v4377, %v4473
      %v4475 = vpop.f32.mrb[0].mxu0
      %4476 = vdwg.mxu0
      %v4477 = vld [vmem:[%s19] sm:$0x1]
      %v4479 = vlaneseq
      %v4480 = vshrl.u32 %v4479, 7
      %v4481 = vsub.s32 0, %v4480
      %v4482 = vrot.slane %v4477, %v4481
      %v4484 = vadd.f32 %v4459, %v4482
      %v4485 = vadd.f32 %v4464, %v4482
      %v4486 = vadd.f32 %v4469, %v4482
      %v4487 = vadd.f32 %v4474, %v4482
      %v4488 = vtanh.pop %v4484
      %v4489 = vtanh.pop %v4485
      %v4490 = vtanh.pop %v4486
      %v4491 = vtanh.pop %v4487
      %4492 = vst.msk [vmem:[%s667] sm:$0xff] %vm674, %v4488
      %4493 = vst.msk [vmem:[%s667 + $0x8] sm:$0xff] %vm674, %v4489
      %4494 = vst.msk [vmem:[%s667 + $0x10] sm:$0xff] %vm674, %v4490
      %vm4495 = vcmask 224256
      %4496 = vst.msk [vmem:[%s667 + $0x18] sm:$0xf] %vm4495, %v4491
      %p4497 = scmp.lt.s32.totalorder %s33, 1
      %s4498 = scalar_select %p4497, %s33, 1
      %s4499 = smul.addr %s4498, 2
      %s4500 = scalar_lea.vmem %s20, %s4499
      %p4501 = scmp.lt.s32.totalorder %s33, 1
      %s4502 = scalar_select %p4501, %s33, 1
      %s4503 = smul.addr %s4502, 4
      %s4504 = smul.addr %s4503, 8
      %s4505 = scalar_lea.vmem %s21, %s4504
      // Predicated region
      $region101: #{conv_autoencoder_forward.1} parent=99 // pred_check
        %p4506 = pneg %p476
      $region102: #{conv_autoencoder_forward.1} parent=99 // pred_check_branch
        %4508 = sbr.rel (%p4506) target = $region104
      $region103: #{conv_autoencoder_forward.1} parent=99 // pred_region
        _
      $region104: #{conv_autoencoder_forward.1} parent=99 // pred_fallthru
        _
      // Predicated region
      $region105: #{conv_autoencoder_forward.1} parent=99 // pred_check
        %p4509 = pneg %p502
      $region106: #{conv_autoencoder_forward.1} parent=99 // pred_check_branch
        %4511 = sbr.rel (%p4509) target = $region108
      $region107: #{conv_autoencoder_forward.1} parent=99 // pred_region
        _
      $region108: #{conv_autoencoder_forward.1} parent=99 // pred_fallthru
        _
    $region100: #{conv_autoencoder_forward.1} parent=5 // pred_fallthru
      _
    %p4512 = scmp.le.s32.totalorder 2, %s28
    // Predicated region
    $region109: #{conv_autoencoder_forward.1} parent=5 // pred_check
      %p4513 = pneg %p4512
    $region110: #{conv_autoencoder_forward.1} parent=5 // pred_check_branch
      %4515 = sbr.rel (%p4513) target = $region112
    $region111: #{conv_autoencoder_forward.1} parent=5 // pred_region
      %s4516 = ssub.s32 %s28, 2
      // Predicated region
      $region113: #{conv_autoencoder_forward.1} parent=111 // pred_check
        %p4517 = pneg %p482
      $region114: #{conv_autoencoder_forward.1} parent=111 // pred_check_branch
        %4519 = sbr.rel (%p4517) target = $region116
      $region115: #{conv_autoencoder_forward.1} parent=111 // pred_region
        %p4520 = scmp.lt.s32.totalorder %s34, 1
        %s4521 = scalar_select %p4520, %s34, 1
        %s4522 = smul.addr %s4521, 2
        %s4523 = scalar_lea.vmem %s20, %s4522
      $region116: #{conv_autoencoder_forward.1} parent=111 // pred_fallthru
        _
      // Predicated region
      $region117: #{conv_autoencoder_forward.1} parent=111 // pred_check
        %p4524 = pneg %p508
      $region118: #{conv_autoencoder_forward.1} parent=111 // pred_check_branch
        %4526 = sbr.rel (%p4524) target = $region120
      $region119: #{conv_autoencoder_forward.1} parent=111 // pred_region
        %p4527 = scmp.lt.s32.totalorder %s34, 1
        %s4528 = scalar_select %p4527, %s34, 1
        %s4529 = smul.addr %s4528, 4
        %s4530 = smul.addr %s4529, 8
        %s4531 = scalar_lea.vmem %s21, %s4530
      $region120: #{conv_autoencoder_forward.1} parent=111 // pred_fallthru
        _
    $region112: #{conv_autoencoder_forward.1} parent=5 // pred_fallthru
      _
  $region6: #{conv_autoencoder_forward.1} parent=0 // loop_footer
    %s32 = sadd.s32 1, %s28
  $region7: #{conv_autoencoder_forward.1} parent=0 // loop_footer_branch
    %27 = sbr.rel target = $region3
  $region8: #{conv_autoencoder_forward.1} parent=0 // loop_exit
    _

</llo_original>
